<compile_context>
chip_gen: v7x
topology: tpu7x:2x2x1
jax: 0.10.0
libtpu: 0.0.40
codegen_flags: <defaults>
</compile_context>

<pallas_src>
import jax
import jax.numpy as jnp
from jax import lax
from jax.experimental import pallas as pl
from jax.experimental.pallas import tpu as pltpu

CIN, CMID, COUT, K = 3, 3, 12, 3
COUT_USED = 3   # only conv2 channels 0..2 are consumed by the split/cat epilogue
C = 3           # CIN == CMID == COUT_USED == 3 (single constant used in the kernel)


def _pick_nb(n, wb, max_lanes=128):
    """Largest divisor of n keeping the packed lane width inside one 128-lane
    vreg column (keeps the per-MAC vreg count minimal)."""
    cap = max(1, (max_lanes - 4) // wb)
    for nb in range(min(n, cap), 0, -1):
        if n % nb == 0:
            return nb
    return 1


def make_fused_kernel(H, W, NB):
    HE = H + 2            # extended conv1 domain height (== zero-padded conv1 height)
    WB = W + 4            # per-image lane block width (input zero-padded by 2)
    LW = NB * WB          # packed lane width of the conv2 accumulator / output slab
    LW1 = LW + 2          # packed lane width of the conv1 accumulator / ypad

    def kernel(x_ref, mask_ref, w1_ref, b1_ref, w2_ref, b2_ref, out_ref):
        # x_ref    : (1, CIN, H+4, LW+4)  VMEM  NB zero-padded images lane-packed
        # mask_ref : (HE, LW1)            VMEM  1.0 on conv1-output interior, else 0.0
        # w1_ref   : (C*CIN*K*K,)         SMEM  flat conv1 weights, OIHW order
        # b1_ref   : (C,)                 SMEM
        # w2_ref   : (C*CMID*K*K,)        SMEM  flat conv2 weights (out-ch 0..2), OIHW
        # b2_ref   : (C,)                 SMEM
        # out_ref  : (1, 2*C, H, LW)      VMEM  channels 0..2 = cat, 3..5 = splits
        mask = mask_ref[...]

        # ---- conv1: 3 -> 3, 3x3, stride 1, pad 1, evaluated on the extended
        # (H+2, W+2) domain for all NB lane-packed images at once.  Shifted
        # windows are read directly from the input ref and hoisted out of the
        # output-channel loop (27 window loads per conv, not 27 x n_out).
        acc1 = [b1_ref[oc] + jnp.zeros((HE, LW1), jnp.float32) for oc in range(C)]
        for ic in range(CIN):
            for kh in range(K):
                for kw in range(K):
                    s = x_ref[0, ic, kh:kh + HE, kw:kw + LW1]
                    for oc in range(C):
                        widx = ((oc * CIN + ic) * K + kh) * K + kw
                        acc1[oc] = acc1[oc] + w1_ref[widx] * s
        # Zero the 1-wide halo ring and the cross-image junk lanes: conv2 then
        # sees the conv1 result zero-padded by 1, entirely in registers.
        ypad = [a * mask for a in acc1]

        # ---- conv2: 3x3, stride 1, pad 1; only the 3 channels the forward
        # actually returns.  Same lane packing; windows hoisted out of the
        # output-channel loop.
        acc2 = [b2_ref[oc] + jnp.zeros((H, LW), jnp.float32) for oc in range(C)]
        for ic in range(C):
            for kh in range(K):
                for kw in range(K):
                    s = ypad[ic][kh:kh + H, kw:kw + LW]
                    for oc in range(C):
                        widx = ((oc * C + ic) * K + kh) * K + kw
                        acc2[oc] = acc2[oc] + w2_ref[widx] * s

        # ---- fused split/cat epilogue: dump the register slabs into a single
        # contiguous output block (one dense HBM DMA per grid step).
        # Channels 0..2 = concatenated tensor, channels 3..5 = the 3 splits.
        for oc in range(C):
            out_ref[0, oc] = acc2[oc]
            out_ref[0, C + oc] = acc2[oc]

    return kernel


def features_split_cat_pallas(x, w1, b1, w2, b2):
    """Fused Conv2d(3,3,3,1,1) -> Conv2d(3,12,3,1,1) -> split[1,1,1] -> cat."""
    N, Cx, H, W = x.shape
    assert Cx == CIN
    HP, HE = H + 4, H + 2
    WB = W + 4
    NB = _pick_nb(N, WB)
    n_steps = N // NB
    LW, LW1, LWX = NB * WB, NB * WB + 2, NB * WB + 4

    # ---- wrapper-side layout plumbing (pads / transposes / reshapes only) ----
    # Pack NB zero-padded images side by side along the lane axis, per channel,
    # plus 4 trailing zero lanes so the in-kernel shifted windows stay in-bounds.
    xp = jnp.pad(x.astype(jnp.float32), ((0, 0), (0, 0), (2, 2), (2, 2)))   # (N, CIN, HP, WB)
    xpk = xp.reshape(n_steps, NB, CIN, HP, WB).transpose(0, 2, 3, 1, 4)
    xpk = xpk.reshape(n_steps, CIN, HP, LW)
    xpk = jnp.pad(xpk, ((0, 0), (0, 0), (0, 0), (0, 4)))                    # (n_steps, CIN, HP, LWX)

    # Interior mask for the extended conv1 output: keeps the true conv1 pixels,
    # zeros the halo ring, the per-image junk lanes and the trailing pad lanes.
    col = jnp.arange(LW1)
    col_ok = ((col % WB) >= 1) & ((col % WB) <= W) & (col < LW)
    row = jnp.arange(HE)
    row_ok = (row >= 1) & (row <= H)
    mask = (row_ok[:, None] & col_ok[None, :]).astype(jnp.float32)          # (HE, LW1)

    w1f = w1.reshape(-1).astype(jnp.float32)
    b1f = b1.astype(jnp.float32)
    w2f = w2[:COUT_USED].reshape(-1).astype(jnp.float32)   # only the 3 used out-channels
    b2f = b2[:COUT_USED].astype(jnp.float32)

    smem = pl.BlockSpec(memory_space=pltpu.MemorySpace.SMEM)
    out = pl.pallas_call(
        make_fused_kernel(H, W, NB),
        out_shape=jax.ShapeDtypeStruct((n_steps, 2 * COUT_USED, H, LW), jnp.float32),
        grid_spec=pltpu.PrefetchScalarGridSpec(
            num_scalar_prefetch=0,
            grid=(n_steps,),
            in_specs=[
                pl.BlockSpec((1, CIN, HP, LWX), lambda s: (s, 0, 0, 0)),
                pl.BlockSpec((HE, LW1), lambda s: (0, 0)),
                smem,   # w1 flat
                smem,   # b1
                smem,   # w2 (first 3 out-channels) flat
                smem,   # b2 (first 3 out-channels)
            ],
            out_specs=pl.BlockSpec((1, 2 * COUT_USED, H, LW),
                                   lambda s: (s, 0, 0, 0)),
        ),
        compiler_params=pltpu.CompilerParams(
            dimension_semantics=("parallel",)),
    )(xpk, mask, w1f, b1f, w2f, b2f)

    # ---- unpack the single contiguous slab (cheap XLA slices/reshapes) ----
    # out[s, c, h, nb*WB + w]  ->  (n = s*NB + nb, c, h, w)
    out = out.reshape(n_steps, 2 * COUT_USED, H, NB, WB)[..., :W]
    out = out.transpose(0, 3, 1, 2, 4).reshape(N, 2 * COUT_USED, H, W)
    cat = out[:, 0:COUT_USED]
    splits = tuple(out[:, COUT_USED + i:COUT_USED + i + 1] for i in range(COUT_USED))
    return cat, splits


def model_forward(x, params):
    w1, b1, w2, b2 = params
    return features_split_cat_pallas(x, w1, b1, w2, b2)


def reference_forward(x, params):
    """Pure-JAX reference using lax.conv for verification."""
    w1, b1, w2, b2 = params
    dn = lax.conv_dimension_numbers(x.shape, w1.shape, ("NCHW", "OIHW", "NCHW"))
    y1 = lax.conv_general_dilated(x, w1, (1, 1), ((1, 1), (1, 1)),
                                  dimension_numbers=dn) + b1[None, :, None, None]
    dn2 = lax.conv_dimension_numbers(y1.shape, w2.shape, ("NCHW", "OIHW", "NCHW"))
    v1 = lax.conv_general_dilated(y1, w2, (1, 1), ((1, 1), (1, 1)),
                                  dimension_numbers=dn2) + b2[None, :, None, None]
    splits = (v1[:, 0:1], v1[:, 1:2], v1[:, 2:3])
    return jnp.concatenate(splits, axis=1), splits


if __name__ == "__main__":
    key = jax.random.PRNGKey(0)
    k_x, k_w1, k_b1, k_w2, k_b2 = jax.random.split(key, 5)

    # Small shapes consistent with the module: batch=2, 3 in-channels, 16x16.
    N, H, W = 2, 16, 16
    x = jax.random.normal(k_x, (N, CIN, H, W), dtype=jnp.float32)

    w1 = 0.1 * jax.random.normal(k_w1, (CMID, CIN, K, K), dtype=jnp.float32)
    b1 = 0.1 * jax.random.normal(k_b1, (CMID,), dtype=jnp.float32)
    w2 = 0.1 * jax.random.normal(k_w2, (COUT, CMID, K, K), dtype=jnp.float32)
    b2 = 0.1 * jax.random.normal(k_b2, (COUT,), dtype=jnp.float32)
    params = (w1, b1, w2, b2)

    fwd = jax.jit(model_forward)
    cat_out, split_out = fwd(x, params)
    jax.block_until_ready(cat_out)
    for s in split_out:
        jax.block_until_ready(s)

    # Verify against pure-JAX reference.
    ref_cat, ref_splits = reference_forward(x, params)
    assert cat_out.shape == (N, 3, H, W)
    assert all(s.shape == (N, 1, H, W) for s in split_out)
    assert jnp.allclose(cat_out, ref_cat, atol=1e-4, rtol=1e-4)
    for a, b in zip(split_out, ref_splits):
        assert jnp.allclose(a, b, atol=1e-4, rtol=1e-4)

    print("KERNEL_OK")
</pallas_src>

<mosaic_0001>
module attributes {stable_mosaic.version = 11 : i64} {
  func.func @kernel(%arg0: i32, %arg1: memref<1x3x20x44xf32, #tpu.memory_space<vmem>>, %arg2: memref<18x42xf32, #tpu.memory_space<vmem>>, %arg3: memref<81xf32, #tpu.memory_space<smem>>, %arg4: memref<3xf32, #tpu.memory_space<smem>>, %arg5: memref<81xf32, #tpu.memory_space<smem>>, %arg6: memref<3xf32, #tpu.memory_space<smem>>, %arg7: memref<1x6x16x40xf32, #tpu.memory_space<vmem>>) attributes {dimension_semantics = [#tpu.dimension_semantics<parallel>], iteration_bounds = array<i64: 1>, scalar_prefetch = 0 : i64, scratch_operands = 0 : i64, tpu.core_type = #tpu.core_type<tc>, window_params = [{transform_indices = @transform_0, window_bounds = array<i64: 1, 3, 20, 44>}, {pipeline_mode = #tpu.pipeline_mode<synchronous>, transform_indices = @transform_1, window_bounds = array<i64: 18, 42>}, {transform_indices = @transform_2, window_bounds = array<i64: 81>}, {transform_indices = @transform_3, window_bounds = array<i64: 3>}, {transform_indices = @transform_4, window_bounds = array<i64: 81>}, {transform_indices = @transform_5, window_bounds = array<i64: 3>}, {transform_indices = @transform_6, window_bounds = array<i64: 1, 6, 16, 40>}]} {
    %c0 = arith.constant 0 : index
    %c0_0 = arith.constant 0 : index
    %0 = vector.load %arg2[%c0, %c0_0] : memref<18x42xf32, #tpu.memory_space<vmem>>, vector<18x42xf32>
    %c0_1 = arith.constant 0 : index
    %1 = memref.load %arg4[%c0_1] : memref<3xf32, #tpu.memory_space<smem>>
    %cst = arith.constant 0.000000e+00 : f32
    %2 = vector.broadcast %cst : f32 to vector<18x42xf32>
    %3 = vector.broadcast %1 : f32 to vector<18x42xf32>
    %4 = arith.addf %3, %2 : vector<18x42xf32>
    %c1 = arith.constant 1 : index
    %5 = memref.load %arg4[%c1] : memref<3xf32, #tpu.memory_space<smem>>
    %cst_2 = arith.constant 0.000000e+00 : f32
    %6 = vector.broadcast %cst_2 : f32 to vector<18x42xf32>
    %7 = vector.broadcast %5 : f32 to vector<18x42xf32>
    %8 = arith.addf %7, %6 : vector<18x42xf32>
    %c2 = arith.constant 2 : index
    %9 = memref.load %arg4[%c2] : memref<3xf32, #tpu.memory_space<smem>>
    %cst_3 = arith.constant 0.000000e+00 : f32
    %10 = vector.broadcast %cst_3 : f32 to vector<18x42xf32>
    %11 = vector.broadcast %9 : f32 to vector<18x42xf32>
    %12 = arith.addf %11, %10 : vector<18x42xf32>
    %c0_4 = arith.constant 0 : index
    %c0_5 = arith.constant 0 : index
    %c0_6 = arith.constant 0 : index
    %c0_7 = arith.constant 0 : index
    %13 = vector.load %arg1[%c0_4, %c0_5, %c0_6, %c0_7] : memref<1x3x20x44xf32, #tpu.memory_space<vmem>>, vector<1x1x18x42xf32>
    %14 = vector.shape_cast %13 : vector<1x1x18x42xf32> to vector<18x42xf32>
    %c0_8 = arith.constant 0 : index
    %15 = memref.load %arg3[%c0_8] : memref<81xf32, #tpu.memory_space<smem>>
    %16 = vector.broadcast %15 : f32 to vector<18x42xf32>
    %17 = arith.mulf %16, %14 : vector<18x42xf32>
    %18 = arith.addf %4, %17 : vector<18x42xf32>
    %c27 = arith.constant 27 : index
    %19 = memref.load %arg3[%c27] : memref<81xf32, #tpu.memory_space<smem>>
    %20 = vector.broadcast %19 : f32 to vector<18x42xf32>
    %21 = arith.mulf %20, %14 : vector<18x42xf32>
    %22 = arith.addf %8, %21 : vector<18x42xf32>
    %c54 = arith.constant 54 : index
    %23 = memref.load %arg3[%c54] : memref<81xf32, #tpu.memory_space<smem>>
    %24 = vector.broadcast %23 : f32 to vector<18x42xf32>
    %25 = arith.mulf %24, %14 : vector<18x42xf32>
    %26 = arith.addf %12, %25 : vector<18x42xf32>
    %c0_9 = arith.constant 0 : index
    %c0_10 = arith.constant 0 : index
    %c0_11 = arith.constant 0 : index
    %c1_12 = arith.constant 1 : index
    %27 = vector.load %arg1[%c0_9, %c0_10, %c0_11, %c1_12] : memref<1x3x20x44xf32, #tpu.memory_space<vmem>>, vector<1x1x18x42xf32>
    %28 = vector.shape_cast %27 : vector<1x1x18x42xf32> to vector<18x42xf32>
    %c1_13 = arith.constant 1 : index
    %29 = memref.load %arg3[%c1_13] : memref<81xf32, #tpu.memory_space<smem>>
    %30 = vector.broadcast %29 : f32 to vector<18x42xf32>
    %31 = arith.mulf %30, %28 : vector<18x42xf32>
    %32 = arith.addf %18, %31 : vector<18x42xf32>
    %c28 = arith.constant 28 : index
    %33 = memref.load %arg3[%c28] : memref<81xf32, #tpu.memory_space<smem>>
    %34 = vector.broadcast %33 : f32 to vector<18x42xf32>
    %35 = arith.mulf %34, %28 : vector<18x42xf32>
    %36 = arith.addf %22, %35 : vector<18x42xf32>
    %c55 = arith.constant 55 : index
    %37 = memref.load %arg3[%c55] : memref<81xf32, #tpu.memory_space<smem>>
    %38 = vector.broadcast %37 : f32 to vector<18x42xf32>
    %39 = arith.mulf %38, %28 : vector<18x42xf32>
    %40 = arith.addf %26, %39 : vector<18x42xf32>
    %c0_14 = arith.constant 0 : index
    %c0_15 = arith.constant 0 : index
    %c0_16 = arith.constant 0 : index
    %c2_17 = arith.constant 2 : index
    %41 = vector.load %arg1[%c0_14, %c0_15, %c0_16, %c2_17] : memref<1x3x20x44xf32, #tpu.memory_space<vmem>>, vector<1x1x18x42xf32>
    %42 = vector.shape_cast %41 : vector<1x1x18x42xf32> to vector<18x42xf32>
    %c2_18 = arith.constant 2 : index
    %43 = memref.load %arg3[%c2_18] : memref<81xf32, #tpu.memory_space<smem>>
    %44 = vector.broadcast %43 : f32 to vector<18x42xf32>
    %45 = arith.mulf %44, %42 : vector<18x42xf32>
    %46 = arith.addf %32, %45 : vector<18x42xf32>
    %c29 = arith.constant 29 : index
    %47 = memref.load %arg3[%c29] : memref<81xf32, #tpu.memory_space<smem>>
    %48 = vector.broadcast %47 : f32 to vector<18x42xf32>
    %49 = arith.mulf %48, %42 : vector<18x42xf32>
    %50 = arith.addf %36, %49 : vector<18x42xf32>
    %c56 = arith.constant 56 : index
    %51 = memref.load %arg3[%c56] : memref<81xf32, #tpu.memory_space<smem>>
    %52 = vector.broadcast %51 : f32 to vector<18x42xf32>
    %53 = arith.mulf %52, %42 : vector<18x42xf32>
    %54 = arith.addf %40, %53 : vector<18x42xf32>
    %c0_19 = arith.constant 0 : index
    %c0_20 = arith.constant 0 : index
    %c1_21 = arith.constant 1 : index
    %c0_22 = arith.constant 0 : index
    %55 = vector.load %arg1[%c0_19, %c0_20, %c1_21, %c0_22] : memref<1x3x20x44xf32, #tpu.memory_space<vmem>>, vector<1x1x18x42xf32>
    %56 = vector.shape_cast %55 : vector<1x1x18x42xf32> to vector<18x42xf32>
    %c3 = arith.constant 3 : index
    %57 = memref.load %arg3[%c3] : memref<81xf32, #tpu.memory_space<smem>>
    %58 = vector.broadcast %57 : f32 to vector<18x42xf32>
    %59 = arith.mulf %58, %56 : vector<18x42xf32>
    %60 = arith.addf %46, %59 : vector<18x42xf32>
    %c30 = arith.constant 30 : index
    %61 = memref.load %arg3[%c30] : memref<81xf32, #tpu.memory_space<smem>>
    %62 = vector.broadcast %61 : f32 to vector<18x42xf32>
    %63 = arith.mulf %62, %56 : vector<18x42xf32>
    %64 = arith.addf %50, %63 : vector<18x42xf32>
    %c57 = arith.constant 57 : index
    %65 = memref.load %arg3[%c57] : memref<81xf32, #tpu.memory_space<smem>>
    %66 = vector.broadcast %65 : f32 to vector<18x42xf32>
    %67 = arith.mulf %66, %56 : vector<18x42xf32>
    %68 = arith.addf %54, %67 : vector<18x42xf32>
    %c0_23 = arith.constant 0 : index
    %c0_24 = arith.constant 0 : index
    %c1_25 = arith.constant 1 : index
    %c1_26 = arith.constant 1 : index
    %69 = vector.load %arg1[%c0_23, %c0_24, %c1_25, %c1_26] : memref<1x3x20x44xf32, #tpu.memory_space<vmem>>, vector<1x1x18x42xf32>
    %70 = vector.shape_cast %69 : vector<1x1x18x42xf32> to vector<18x42xf32>
    %c4 = arith.constant 4 : index
    %71 = memref.load %arg3[%c4] : memref<81xf32, #tpu.memory_space<smem>>
    %72 = vector.broadcast %71 : f32 to vector<18x42xf32>
    %73 = arith.mulf %72, %70 : vector<18x42xf32>
    %74 = arith.addf %60, %73 : vector<18x42xf32>
    %c31 = arith.constant 31 : index
    %75 = memref.load %arg3[%c31] : memref<81xf32, #tpu.memory_space<smem>>
    %76 = vector.broadcast %75 : f32 to vector<18x42xf32>
    %77 = arith.mulf %76, %70 : vector<18x42xf32>
    %78 = arith.addf %64, %77 : vector<18x42xf32>
    %c58 = arith.constant 58 : index
    %79 = memref.load %arg3[%c58] : memref<81xf32, #tpu.memory_space<smem>>
    %80 = vector.broadcast %79 : f32 to vector<18x42xf32>
    %81 = arith.mulf %80, %70 : vector<18x42xf32>
    %82 = arith.addf %68, %81 : vector<18x42xf32>
    %c0_27 = arith.constant 0 : index
    %c0_28 = arith.constant 0 : index
    %c1_29 = arith.constant 1 : index
    %c2_30 = arith.constant 2 : index
    %83 = vector.load %arg1[%c0_27, %c0_28, %c1_29, %c2_30] : memref<1x3x20x44xf32, #tpu.memory_space<vmem>>, vector<1x1x18x42xf32>
    %84 = vector.shape_cast %83 : vector<1x1x18x42xf32> to vector<18x42xf32>
    %c5 = arith.constant 5 : index
    %85 = memref.load %arg3[%c5] : memref<81xf32, #tpu.memory_space<smem>>
    %86 = vector.broadcast %85 : f32 to vector<18x42xf32>
    %87 = arith.mulf %86, %84 : vector<18x42xf32>
    %88 = arith.addf %74, %87 : vector<18x42xf32>
    %c32 = arith.constant 32 : index
    %89 = memref.load %arg3[%c32] : memref<81xf32, #tpu.memory_space<smem>>
    %90 = vector.broadcast %89 : f32 to vector<18x42xf32>
    %91 = arith.mulf %90, %84 : vector<18x42xf32>
    %92 = arith.addf %78, %91 : vector<18x42xf32>
    %c59 = arith.constant 59 : index
    %93 = memref.load %arg3[%c59] : memref<81xf32, #tpu.memory_space<smem>>
    %94 = vector.broadcast %93 : f32 to vector<18x42xf32>
    %95 = arith.mulf %94, %84 : vector<18x42xf32>
    %96 = arith.addf %82, %95 : vector<18x42xf32>
    %c0_31 = arith.constant 0 : index
    %c0_32 = arith.constant 0 : index
    %c2_33 = arith.constant 2 : index
    %c0_34 = arith.constant 0 : index
    %97 = vector.load %arg1[%c0_31, %c0_32, %c2_33, %c0_34] : memref<1x3x20x44xf32, #tpu.memory_space<vmem>>, vector<1x1x18x42xf32>
    %98 = vector.shape_cast %97 : vector<1x1x18x42xf32> to vector<18x42xf32>
    %c6 = arith.constant 6 : index
    %99 = memref.load %arg3[%c6] : memref<81xf32, #tpu.memory_space<smem>>
    %100 = vector.broadcast %99 : f32 to vector<18x42xf32>
    %101 = arith.mulf %100, %98 : vector<18x42xf32>
    %102 = arith.addf %88, %101 : vector<18x42xf32>
    %c33 = arith.constant 33 : index
    %103 = memref.load %arg3[%c33] : memref<81xf32, #tpu.memory_space<smem>>
    %104 = vector.broadcast %103 : f32 to vector<18x42xf32>
    %105 = arith.mulf %104, %98 : vector<18x42xf32>
    %106 = arith.addf %92, %105 : vector<18x42xf32>
    %c60 = arith.constant 60 : index
    %107 = memref.load %arg3[%c60] : memref<81xf32, #tpu.memory_space<smem>>
    %108 = vector.broadcast %107 : f32 to vector<18x42xf32>
    %109 = arith.mulf %108, %98 : vector<18x42xf32>
    %110 = arith.addf %96, %109 : vector<18x42xf32>
    %c0_35 = arith.constant 0 : index
    %c0_36 = arith.constant 0 : index
    %c2_37 = arith.constant 2 : index
    %c1_38 = arith.constant 1 : index
    %111 = vector.load %arg1[%c0_35, %c0_36, %c2_37, %c1_38] : memref<1x3x20x44xf32, #tpu.memory_space<vmem>>, vector<1x1x18x42xf32>
    %112 = vector.shape_cast %111 : vector<1x1x18x42xf32> to vector<18x42xf32>
    %c7 = arith.constant 7 : index
    %113 = memref.load %arg3[%c7] : memref<81xf32, #tpu.memory_space<smem>>
    %114 = vector.broadcast %113 : f32 to vector<18x42xf32>
    %115 = arith.mulf %114, %112 : vector<18x42xf32>
    %116 = arith.addf %102, %115 : vector<18x42xf32>
    %c34 = arith.constant 34 : index
    %117 = memref.load %arg3[%c34] : memref<81xf32, #tpu.memory_space<smem>>
    %118 = vector.broadcast %117 : f32 to vector<18x42xf32>
    %119 = arith.mulf %118, %112 : vector<18x42xf32>
    %120 = arith.addf %106, %119 : vector<18x42xf32>
    %c61 = arith.constant 61 : index
    %121 = memref.load %arg3[%c61] : memref<81xf32, #tpu.memory_space<smem>>
    %122 = vector.broadcast %121 : f32 to vector<18x42xf32>
    %123 = arith.mulf %122, %112 : vector<18x42xf32>
    %124 = arith.addf %110, %123 : vector<18x42xf32>
    %c0_39 = arith.constant 0 : index
    %c0_40 = arith.constant 0 : index
    %c2_41 = arith.constant 2 : index
    %c2_42 = arith.constant 2 : index
    %125 = vector.load %arg1[%c0_39, %c0_40, %c2_41, %c2_42] : memref<1x3x20x44xf32, #tpu.memory_space<vmem>>, vector<1x1x18x42xf32>
    %126 = vector.shape_cast %125 : vector<1x1x18x42xf32> to vector<18x42xf32>
    %c8 = arith.constant 8 : index
    %127 = memref.load %arg3[%c8] : memref<81xf32, #tpu.memory_space<smem>>
    %128 = vector.broadcast %127 : f32 to vector<18x42xf32>
    %129 = arith.mulf %128, %126 : vector<18x42xf32>
    %130 = arith.addf %116, %129 : vector<18x42xf32>
    %c35 = arith.constant 35 : index
    %131 = memref.load %arg3[%c35] : memref<81xf32, #tpu.memory_space<smem>>
    %132 = vector.broadcast %131 : f32 to vector<18x42xf32>
    %133 = arith.mulf %132, %126 : vector<18x42xf32>
    %134 = arith.addf %120, %133 : vector<18x42xf32>
    %c62 = arith.constant 62 : index
    %135 = memref.load %arg3[%c62] : memref<81xf32, #tpu.memory_space<smem>>
    %136 = vector.broadcast %135 : f32 to vector<18x42xf32>
    %137 = arith.mulf %136, %126 : vector<18x42xf32>
    %138 = arith.addf %124, %137 : vector<18x42xf32>
    %c0_43 = arith.constant 0 : index
    %c1_44 = arith.constant 1 : index
    %c0_45 = arith.constant 0 : index
    %c0_46 = arith.constant 0 : index
    %139 = vector.load %arg1[%c0_43, %c1_44, %c0_45, %c0_46] : memref<1x3x20x44xf32, #tpu.memory_space<vmem>>, vector<1x1x18x42xf32>
    %140 = vector.shape_cast %139 : vector<1x1x18x42xf32> to vector<18x42xf32>
    %c9 = arith.constant 9 : index
    %141 = memref.load %arg3[%c9] : memref<81xf32, #tpu.memory_space<smem>>
    %142 = vector.broadcast %141 : f32 to vector<18x42xf32>
    %143 = arith.mulf %142, %140 : vector<18x42xf32>
    %144 = arith.addf %130, %143 : vector<18x42xf32>
    %c36 = arith.constant 36 : index
    %145 = memref.load %arg3[%c36] : memref<81xf32, #tpu.memory_space<smem>>
    %146 = vector.broadcast %145 : f32 to vector<18x42xf32>
    %147 = arith.mulf %146, %140 : vector<18x42xf32>
    %148 = arith.addf %134, %147 : vector<18x42xf32>
    %c63 = arith.constant 63 : index
    %149 = memref.load %arg3[%c63] : memref<81xf32, #tpu.memory_space<smem>>
    %150 = vector.broadcast %149 : f32 to vector<18x42xf32>
    %151 = arith.mulf %150, %140 : vector<18x42xf32>
    %152 = arith.addf %138, %151 : vector<18x42xf32>
    %c0_47 = arith.constant 0 : index
    %c1_48 = arith.constant 1 : index
    %c0_49 = arith.constant 0 : index
    %c1_50 = arith.constant 1 : index
    %153 = vector.load %arg1[%c0_47, %c1_48, %c0_49, %c1_50] : memref<1x3x20x44xf32, #tpu.memory_space<vmem>>, vector<1x1x18x42xf32>
    %154 = vector.shape_cast %153 : vector<1x1x18x42xf32> to vector<18x42xf32>
    %c10 = arith.constant 10 : index
    %155 = memref.load %arg3[%c10] : memref<81xf32, #tpu.memory_space<smem>>
    %156 = vector.broadcast %155 : f32 to vector<18x42xf32>
    %157 = arith.mulf %156, %154 : vector<18x42xf32>
    %158 = arith.addf %144, %157 : vector<18x42xf32>
    %c37 = arith.constant 37 : index
    %159 = memref.load %arg3[%c37] : memref<81xf32, #tpu.memory_space<smem>>
    %160 = vector.broadcast %159 : f32 to vector<18x42xf32>
    %161 = arith.mulf %160, %154 : vector<18x42xf32>
    %162 = arith.addf %148, %161 : vector<18x42xf32>
    %c64 = arith.constant 64 : index
    %163 = memref.load %arg3[%c64] : memref<81xf32, #tpu.memory_space<smem>>
    %164 = vector.broadcast %163 : f32 to vector<18x42xf32>
    %165 = arith.mulf %164, %154 : vector<18x42xf32>
    %166 = arith.addf %152, %165 : vector<18x42xf32>
    %c0_51 = arith.constant 0 : index
    %c1_52 = arith.constant 1 : index
    %c0_53 = arith.constant 0 : index
    %c2_54 = arith.constant 2 : index
    %167 = vector.load %arg1[%c0_51, %c1_52, %c0_53, %c2_54] : memref<1x3x20x44xf32, #tpu.memory_space<vmem>>, vector<1x1x18x42xf32>
    %168 = vector.shape_cast %167 : vector<1x1x18x42xf32> to vector<18x42xf32>
    %c11 = arith.constant 11 : index
    %169 = memref.load %arg3[%c11] : memref<81xf32, #tpu.memory_space<smem>>
    %170 = vector.broadcast %169 : f32 to vector<18x42xf32>
    %171 = arith.mulf %170, %168 : vector<18x42xf32>
    %172 = arith.addf %158, %171 : vector<18x42xf32>
    %c38 = arith.constant 38 : index
    %173 = memref.load %arg3[%c38] : memref<81xf32, #tpu.memory_space<smem>>
    %174 = vector.broadcast %173 : f32 to vector<18x42xf32>
    %175 = arith.mulf %174, %168 : vector<18x42xf32>
    %176 = arith.addf %162, %175 : vector<18x42xf32>
    %c65 = arith.constant 65 : index
    %177 = memref.load %arg3[%c65] : memref<81xf32, #tpu.memory_space<smem>>
    %178 = vector.broadcast %177 : f32 to vector<18x42xf32>
    %179 = arith.mulf %178, %168 : vector<18x42xf32>
    %180 = arith.addf %166, %179 : vector<18x42xf32>
    %c0_55 = arith.constant 0 : index
    %c1_56 = arith.constant 1 : index
    %c1_57 = arith.constant 1 : index
    %c0_58 = arith.constant 0 : index
    %181 = vector.load %arg1[%c0_55, %c1_56, %c1_57, %c0_58] : memref<1x3x20x44xf32, #tpu.memory_space<vmem>>, vector<1x1x18x42xf32>
    %182 = vector.shape_cast %181 : vector<1x1x18x42xf32> to vector<18x42xf32>
    %c12 = arith.constant 12 : index
    %183 = memref.load %arg3[%c12] : memref<81xf32, #tpu.memory_space<smem>>
    %184 = vector.broadcast %183 : f32 to vector<18x42xf32>
    %185 = arith.mulf %184, %182 : vector<18x42xf32>
    %186 = arith.addf %172, %185 : vector<18x42xf32>
    %c39 = arith.constant 39 : index
    %187 = memref.load %arg3[%c39] : memref<81xf32, #tpu.memory_space<smem>>
    %188 = vector.broadcast %187 : f32 to vector<18x42xf32>
    %189 = arith.mulf %188, %182 : vector<18x42xf32>
    %190 = arith.addf %176, %189 : vector<18x42xf32>
    %c66 = arith.constant 66 : index
    %191 = memref.load %arg3[%c66] : memref<81xf32, #tpu.memory_space<smem>>
    %192 = vector.broadcast %191 : f32 to vector<18x42xf32>
    %193 = arith.mulf %192, %182 : vector<18x42xf32>
    %194 = arith.addf %180, %193 : vector<18x42xf32>
    %c0_59 = arith.constant 0 : index
    %c1_60 = arith.constant 1 : index
    %c1_61 = arith.constant 1 : index
    %c1_62 = arith.constant 1 : index
    %195 = vector.load %arg1[%c0_59, %c1_60, %c1_61, %c1_62] : memref<1x3x20x44xf32, #tpu.memory_space<vmem>>, vector<1x1x18x42xf32>
    %196 = vector.shape_cast %195 : vector<1x1x18x42xf32> to vector<18x42xf32>
    %c13 = arith.constant 13 : index
    %197 = memref.load %arg3[%c13] : memref<81xf32, #tpu.memory_space<smem>>
    %198 = vector.broadcast %197 : f32 to vector<18x42xf32>
    %199 = arith.mulf %198, %196 : vector<18x42xf32>
    %200 = arith.addf %186, %199 : vector<18x42xf32>
    %c40 = arith.constant 40 : index
    %201 = memref.load %arg3[%c40] : memref<81xf32, #tpu.memory_space<smem>>
    %202 = vector.broadcast %201 : f32 to vector<18x42xf32>
    %203 = arith.mulf %202, %196 : vector<18x42xf32>
    %204 = arith.addf %190, %203 : vector<18x42xf32>
    %c67 = arith.constant 67 : index
    %205 = memref.load %arg3[%c67] : memref<81xf32, #tpu.memory_space<smem>>
    %206 = vector.broadcast %205 : f32 to vector<18x42xf32>
    %207 = arith.mulf %206, %196 : vector<18x42xf32>
    %208 = arith.addf %194, %207 : vector<18x42xf32>
    %c0_63 = arith.constant 0 : index
    %c1_64 = arith.constant 1 : index
    %c1_65 = arith.constant 1 : index
    %c2_66 = arith.constant 2 : index
    %209 = vector.load %arg1[%c0_63, %c1_64, %c1_65, %c2_66] : memref<1x3x20x44xf32, #tpu.memory_space<vmem>>, vector<1x1x18x42xf32>
    %210 = vector.shape_cast %209 : vector<1x1x18x42xf32> to vector<18x42xf32>
    %c14 = arith.constant 14 : index
    %211 = memref.load %arg3[%c14] : memref<81xf32, #tpu.memory_space<smem>>
    %212 = vector.broadcast %211 : f32 to vector<18x42xf32>
    %213 = arith.mulf %212, %210 : vector<18x42xf32>
    %214 = arith.addf %200, %213 : vector<18x42xf32>
    %c41 = arith.constant 41 : index
    %215 = memref.load %arg3[%c41] : memref<81xf32, #tpu.memory_space<smem>>
    %216 = vector.broadcast %215 : f32 to vector<18x42xf32>
    %217 = arith.mulf %216, %210 : vector<18x42xf32>
    %218 = arith.addf %204, %217 : vector<18x42xf32>
    %c68 = arith.constant 68 : index
    %219 = memref.load %arg3[%c68] : memref<81xf32, #tpu.memory_space<smem>>
    %220 = vector.broadcast %219 : f32 to vector<18x42xf32>
    %221 = arith.mulf %220, %210 : vector<18x42xf32>
    %222 = arith.addf %208, %221 : vector<18x42xf32>
    %c0_67 = arith.constant 0 : index
    %c1_68 = arith.constant 1 : index
    %c2_69 = arith.constant 2 : index
    %c0_70 = arith.constant 0 : index
    %223 = vector.load %arg1[%c0_67, %c1_68, %c2_69, %c0_70] : memref<1x3x20x44xf32, #tpu.memory_space<vmem>>, vector<1x1x18x42xf32>
    %224 = vector.shape_cast %223 : vector<1x1x18x42xf32> to vector<18x42xf32>
    %c15 = arith.constant 15 : index
    %225 = memref.load %arg3[%c15] : memref<81xf32, #tpu.memory_space<smem>>
    %226 = vector.broadcast %225 : f32 to vector<18x42xf32>
    %227 = arith.mulf %226, %224 : vector<18x42xf32>
    %228 = arith.addf %214, %227 : vector<18x42xf32>
    %c42 = arith.constant 42 : index
    %229 = memref.load %arg3[%c42] : memref<81xf32, #tpu.memory_space<smem>>
    %230 = vector.broadcast %229 : f32 to vector<18x42xf32>
    %231 = arith.mulf %230, %224 : vector<18x42xf32>
    %232 = arith.addf %218, %231 : vector<18x42xf32>
    %c69 = arith.constant 69 : index
    %233 = memref.load %arg3[%c69] : memref<81xf32, #tpu.memory_space<smem>>
    %234 = vector.broadcast %233 : f32 to vector<18x42xf32>
    %235 = arith.mulf %234, %224 : vector<18x42xf32>
    %236 = arith.addf %222, %235 : vector<18x42xf32>
    %c0_71 = arith.constant 0 : index
    %c1_72 = arith.constant 1 : index
    %c2_73 = arith.constant 2 : index
    %c1_74 = arith.constant 1 : index
    %237 = vector.load %arg1[%c0_71, %c1_72, %c2_73, %c1_74] : memref<1x3x20x44xf32, #tpu.memory_space<vmem>>, vector<1x1x18x42xf32>
    %238 = vector.shape_cast %237 : vector<1x1x18x42xf32> to vector<18x42xf32>
    %c16 = arith.constant 16 : index
    %239 = memref.load %arg3[%c16] : memref<81xf32, #tpu.memory_space<smem>>
    %240 = vector.broadcast %239 : f32 to vector<18x42xf32>
    %241 = arith.mulf %240, %238 : vector<18x42xf32>
    %242 = arith.addf %228, %241 : vector<18x42xf32>
    %c43 = arith.constant 43 : index
    %243 = memref.load %arg3[%c43] : memref<81xf32, #tpu.memory_space<smem>>
    %244 = vector.broadcast %243 : f32 to vector<18x42xf32>
    %245 = arith.mulf %244, %238 : vector<18x42xf32>
    %246 = arith.addf %232, %245 : vector<18x42xf32>
    %c70 = arith.constant 70 : index
    %247 = memref.load %arg3[%c70] : memref<81xf32, #tpu.memory_space<smem>>
    %248 = vector.broadcast %247 : f32 to vector<18x42xf32>
    %249 = arith.mulf %248, %238 : vector<18x42xf32>
    %250 = arith.addf %236, %249 : vector<18x42xf32>
    %c0_75 = arith.constant 0 : index
    %c1_76 = arith.constant 1 : index
    %c2_77 = arith.constant 2 : index
    %c2_78 = arith.constant 2 : index
    %251 = vector.load %arg1[%c0_75, %c1_76, %c2_77, %c2_78] : memref<1x3x20x44xf32, #tpu.memory_space<vmem>>, vector<1x1x18x42xf32>
    %252 = vector.shape_cast %251 : vector<1x1x18x42xf32> to vector<18x42xf32>
    %c17 = arith.constant 17 : index
    %253 = memref.load %arg3[%c17] : memref<81xf32, #tpu.memory_space<smem>>
    %254 = vector.broadcast %253 : f32 to vector<18x42xf32>
    %255 = arith.mulf %254, %252 : vector<18x42xf32>
    %256 = arith.addf %242, %255 : vector<18x42xf32>
    %c44 = arith.constant 44 : index
    %257 = memref.load %arg3[%c44] : memref<81xf32, #tpu.memory_space<smem>>
    %258 = vector.broadcast %257 : f32 to vector<18x42xf32>
    %259 = arith.mulf %258, %252 : vector<18x42xf32>
    %260 = arith.addf %246, %259 : vector<18x42xf32>
    %c71 = arith.constant 71 : index
    %261 = memref.load %arg3[%c71] : memref<81xf32, #tpu.memory_space<smem>>
    %262 = vector.broadcast %261 : f32 to vector<18x42xf32>
    %263 = arith.mulf %262, %252 : vector<18x42xf32>
    %264 = arith.addf %250, %263 : vector<18x42xf32>
    %c0_79 = arith.constant 0 : index
    %c2_80 = arith.constant 2 : index
    %c0_81 = arith.constant 0 : index
    %c0_82 = arith.constant 0 : index
    %265 = vector.load %arg1[%c0_79, %c2_80, %c0_81, %c0_82] : memref<1x3x20x44xf32, #tpu.memory_space<vmem>>, vector<1x1x18x42xf32>
    %266 = vector.shape_cast %265 : vector<1x1x18x42xf32> to vector<18x42xf32>
    %c18 = arith.constant 18 : index
    %267 = memref.load %arg3[%c18] : memref<81xf32, #tpu.memory_space<smem>>
    %268 = vector.broadcast %267 : f32 to vector<18x42xf32>
    %269 = arith.mulf %268, %266 : vector<18x42xf32>
    %270 = arith.addf %256, %269 : vector<18x42xf32>
    %c45 = arith.constant 45 : index
    %271 = memref.load %arg3[%c45] : memref<81xf32, #tpu.memory_space<smem>>
    %272 = vector.broadcast %271 : f32 to vector<18x42xf32>
    %273 = arith.mulf %272, %266 : vector<18x42xf32>
    %274 = arith.addf %260, %273 : vector<18x42xf32>
    %c72 = arith.constant 72 : index
    %275 = memref.load %arg3[%c72] : memref<81xf32, #tpu.memory_space<smem>>
    %276 = vector.broadcast %275 : f32 to vector<18x42xf32>
    %277 = arith.mulf %276, %266 : vector<18x42xf32>
    %278 = arith.addf %264, %277 : vector<18x42xf32>
    %c0_83 = arith.constant 0 : index
    %c2_84 = arith.constant 2 : index
    %c0_85 = arith.constant 0 : index
    %c1_86 = arith.constant 1 : index
    %279 = vector.load %arg1[%c0_83, %c2_84, %c0_85, %c1_86] : memref<1x3x20x44xf32, #tpu.memory_space<vmem>>, vector<1x1x18x42xf32>
    %280 = vector.shape_cast %279 : vector<1x1x18x42xf32> to vector<18x42xf32>
    %c19 = arith.constant 19 : index
    %281 = memref.load %arg3[%c19] : memref<81xf32, #tpu.memory_space<smem>>
    %282 = vector.broadcast %281 : f32 to vector<18x42xf32>
    %283 = arith.mulf %282, %280 : vector<18x42xf32>
    %284 = arith.addf %270, %283 : vector<18x42xf32>
    %c46 = arith.constant 46 : index
    %285 = memref.load %arg3[%c46] : memref<81xf32, #tpu.memory_space<smem>>
    %286 = vector.broadcast %285 : f32 to vector<18x42xf32>
    %287 = arith.mulf %286, %280 : vector<18x42xf32>
    %288 = arith.addf %274, %287 : vector<18x42xf32>
    %c73 = arith.constant 73 : index
    %289 = memref.load %arg3[%c73] : memref<81xf32, #tpu.memory_space<smem>>
    %290 = vector.broadcast %289 : f32 to vector<18x42xf32>
    %291 = arith.mulf %290, %280 : vector<18x42xf32>
    %292 = arith.addf %278, %291 : vector<18x42xf32>
    %c0_87 = arith.constant 0 : index
    %c2_88 = arith.constant 2 : index
    %c0_89 = arith.constant 0 : index
    %c2_90 = arith.constant 2 : index
    %293 = vector.load %arg1[%c0_87, %c2_88, %c0_89, %c2_90] : memref<1x3x20x44xf32, #tpu.memory_space<vmem>>, vector<1x1x18x42xf32>
    %294 = vector.shape_cast %293 : vector<1x1x18x42xf32> to vector<18x42xf32>
    %c20 = arith.constant 20 : index
    %295 = memref.load %arg3[%c20] : memref<81xf32, #tpu.memory_space<smem>>
    %296 = vector.broadcast %295 : f32 to vector<18x42xf32>
    %297 = arith.mulf %296, %294 : vector<18x42xf32>
    %298 = arith.addf %284, %297 : vector<18x42xf32>
    %c47 = arith.constant 47 : index
    %299 = memref.load %arg3[%c47] : memref<81xf32, #tpu.memory_space<smem>>
    %300 = vector.broadcast %299 : f32 to vector<18x42xf32>
    %301 = arith.mulf %300, %294 : vector<18x42xf32>
    %302 = arith.addf %288, %301 : vector<18x42xf32>
    %c74 = arith.constant 74 : index
    %303 = memref.load %arg3[%c74] : memref<81xf32, #tpu.memory_space<smem>>
    %304 = vector.broadcast %303 : f32 to vector<18x42xf32>
    %305 = arith.mulf %304, %294 : vector<18x42xf32>
    %306 = arith.addf %292, %305 : vector<18x42xf32>
    %c0_91 = arith.constant 0 : index
    %c2_92 = arith.constant 2 : index
    %c1_93 = arith.constant 1 : index
    %c0_94 = arith.constant 0 : index
    %307 = vector.load %arg1[%c0_91, %c2_92, %c1_93, %c0_94] : memref<1x3x20x44xf32, #tpu.memory_space<vmem>>, vector<1x1x18x42xf32>
    %308 = vector.shape_cast %307 : vector<1x1x18x42xf32> to vector<18x42xf32>
    %c21 = arith.constant 21 : index
    %309 = memref.load %arg3[%c21] : memref<81xf32, #tpu.memory_space<smem>>
    %310 = vector.broadcast %309 : f32 to vector<18x42xf32>
    %311 = arith.mulf %310, %308 : vector<18x42xf32>
    %312 = arith.addf %298, %311 : vector<18x42xf32>
    %c48 = arith.constant 48 : index
    %313 = memref.load %arg3[%c48] : memref<81xf32, #tpu.memory_space<smem>>
    %314 = vector.broadcast %313 : f32 to vector<18x42xf32>
    %315 = arith.mulf %314, %308 : vector<18x42xf32>
    %316 = arith.addf %302, %315 : vector<18x42xf32>
    %c75 = arith.constant 75 : index
    %317 = memref.load %arg3[%c75] : memref<81xf32, #tpu.memory_space<smem>>
    %318 = vector.broadcast %317 : f32 to vector<18x42xf32>
    %319 = arith.mulf %318, %308 : vector<18x42xf32>
    %320 = arith.addf %306, %319 : vector<18x42xf32>
    %c0_95 = arith.constant 0 : index
    %c2_96 = arith.constant 2 : index
    %c1_97 = arith.constant 1 : index
    %c1_98 = arith.constant 1 : index
    %321 = vector.load %arg1[%c0_95, %c2_96, %c1_97, %c1_98] : memref<1x3x20x44xf32, #tpu.memory_space<vmem>>, vector<1x1x18x42xf32>
    %322 = vector.shape_cast %321 : vector<1x1x18x42xf32> to vector<18x42xf32>
    %c22 = arith.constant 22 : index
    %323 = memref.load %arg3[%c22] : memref<81xf32, #tpu.memory_space<smem>>
    %324 = vector.broadcast %323 : f32 to vector<18x42xf32>
    %325 = arith.mulf %324, %322 : vector<18x42xf32>
    %326 = arith.addf %312, %325 : vector<18x42xf32>
    %c49 = arith.constant 49 : index
    %327 = memref.load %arg3[%c49] : memref<81xf32, #tpu.memory_space<smem>>
    %328 = vector.broadcast %327 : f32 to vector<18x42xf32>
    %329 = arith.mulf %328, %322 : vector<18x42xf32>
    %330 = arith.addf %316, %329 : vector<18x42xf32>
    %c76 = arith.constant 76 : index
    %331 = memref.load %arg3[%c76] : memref<81xf32, #tpu.memory_space<smem>>
    %332 = vector.broadcast %331 : f32 to vector<18x42xf32>
    %333 = arith.mulf %332, %322 : vector<18x42xf32>
    %334 = arith.addf %320, %333 : vector<18x42xf32>
    %c0_99 = arith.constant 0 : index
    %c2_100 = arith.constant 2 : index
    %c1_101 = arith.constant 1 : index
    %c2_102 = arith.constant 2 : index
    %335 = vector.load %arg1[%c0_99, %c2_100, %c1_101, %c2_102] : memref<1x3x20x44xf32, #tpu.memory_space<vmem>>, vector<1x1x18x42xf32>
    %336 = vector.shape_cast %335 : vector<1x1x18x42xf32> to vector<18x42xf32>
    %c23 = arith.constant 23 : index
    %337 = memref.load %arg3[%c23] : memref<81xf32, #tpu.memory_space<smem>>
    %338 = vector.broadcast %337 : f32 to vector<18x42xf32>
    %339 = arith.mulf %338, %336 : vector<18x42xf32>
    %340 = arith.addf %326, %339 : vector<18x42xf32>
    %c50 = arith.constant 50 : index
    %341 = memref.load %arg3[%c50] : memref<81xf32, #tpu.memory_space<smem>>
    %342 = vector.broadcast %341 : f32 to vector<18x42xf32>
    %343 = arith.mulf %342, %336 : vector<18x42xf32>
    %344 = arith.addf %330, %343 : vector<18x42xf32>
    %c77 = arith.constant 77 : index
    %345 = memref.load %arg3[%c77] : memref<81xf32, #tpu.memory_space<smem>>
    %346 = vector.broadcast %345 : f32 to vector<18x42xf32>
    %347 = arith.mulf %346, %336 : vector<18x42xf32>
    %348 = arith.addf %334, %347 : vector<18x42xf32>
    %c0_103 = arith.constant 0 : index
    %c2_104 = arith.constant 2 : index
    %c2_105 = arith.constant 2 : index
    %c0_106 = arith.constant 0 : index
    %349 = vector.load %arg1[%c0_103, %c2_104, %c2_105, %c0_106] : memref<1x3x20x44xf32, #tpu.memory_space<vmem>>, vector<1x1x18x42xf32>
    %350 = vector.shape_cast %349 : vector<1x1x18x42xf32> to vector<18x42xf32>
    %c24 = arith.constant 24 : index
    %351 = memref.load %arg3[%c24] : memref<81xf32, #tpu.memory_space<smem>>
    %352 = vector.broadcast %351 : f32 to vector<18x42xf32>
    %353 = arith.mulf %352, %350 : vector<18x42xf32>
    %354 = arith.addf %340, %353 : vector<18x42xf32>
    %c51 = arith.constant 51 : index
    %355 = memref.load %arg3[%c51] : memref<81xf32, #tpu.memory_space<smem>>
    %356 = vector.broadcast %355 : f32 to vector<18x42xf32>
    %357 = arith.mulf %356, %350 : vector<18x42xf32>
    %358 = arith.addf %344, %357 : vector<18x42xf32>
    %c78 = arith.constant 78 : index
    %359 = memref.load %arg3[%c78] : memref<81xf32, #tpu.memory_space<smem>>
    %360 = vector.broadcast %359 : f32 to vector<18x42xf32>
    %361 = arith.mulf %360, %350 : vector<18x42xf32>
    %362 = arith.addf %348, %361 : vector<18x42xf32>
    %c0_107 = arith.constant 0 : index
    %c2_108 = arith.constant 2 : index
    %c2_109 = arith.constant 2 : index
    %c1_110 = arith.constant 1 : index
    %363 = vector.load %arg1[%c0_107, %c2_108, %c2_109, %c1_110] : memref<1x3x20x44xf32, #tpu.memory_space<vmem>>, vector<1x1x18x42xf32>
    %364 = vector.shape_cast %363 : vector<1x1x18x42xf32> to vector<18x42xf32>
    %c25 = arith.constant 25 : index
    %365 = memref.load %arg3[%c25] : memref<81xf32, #tpu.memory_space<smem>>
    %366 = vector.broadcast %365 : f32 to vector<18x42xf32>
    %367 = arith.mulf %366, %364 : vector<18x42xf32>
    %368 = arith.addf %354, %367 : vector<18x42xf32>
    %c52 = arith.constant 52 : index
    %369 = memref.load %arg3[%c52] : memref<81xf32, #tpu.memory_space<smem>>
    %370 = vector.broadcast %369 : f32 to vector<18x42xf32>
    %371 = arith.mulf %370, %364 : vector<18x42xf32>
    %372 = arith.addf %358, %371 : vector<18x42xf32>
    %c79 = arith.constant 79 : index
    %373 = memref.load %arg3[%c79] : memref<81xf32, #tpu.memory_space<smem>>
    %374 = vector.broadcast %373 : f32 to vector<18x42xf32>
    %375 = arith.mulf %374, %364 : vector<18x42xf32>
    %376 = arith.addf %362, %375 : vector<18x42xf32>
    %c0_111 = arith.constant 0 : index
    %c2_112 = arith.constant 2 : index
    %c2_113 = arith.constant 2 : index
    %c2_114 = arith.constant 2 : index
    %377 = vector.load %arg1[%c0_111, %c2_112, %c2_113, %c2_114] : memref<1x3x20x44xf32, #tpu.memory_space<vmem>>, vector<1x1x18x42xf32>
    %378 = vector.shape_cast %377 : vector<1x1x18x42xf32> to vector<18x42xf32>
    %c26 = arith.constant 26 : index
    %379 = memref.load %arg3[%c26] : memref<81xf32, #tpu.memory_space<smem>>
    %380 = vector.broadcast %379 : f32 to vector<18x42xf32>
    %381 = arith.mulf %380, %378 : vector<18x42xf32>
    %382 = arith.addf %368, %381 : vector<18x42xf32>
    %c53 = arith.constant 53 : index
    %383 = memref.load %arg3[%c53] : memref<81xf32, #tpu.memory_space<smem>>
    %384 = vector.broadcast %383 : f32 to vector<18x42xf32>
    %385 = arith.mulf %384, %378 : vector<18x42xf32>
    %386 = arith.addf %372, %385 : vector<18x42xf32>
    %c80 = arith.constant 80 : index
    %387 = memref.load %arg3[%c80] : memref<81xf32, #tpu.memory_space<smem>>
    %388 = vector.broadcast %387 : f32 to vector<18x42xf32>
    %389 = arith.mulf %388, %378 : vector<18x42xf32>
    %390 = arith.addf %376, %389 : vector<18x42xf32>
    %391 = arith.mulf %382, %0 : vector<18x42xf32>
    %392 = arith.mulf %386, %0 : vector<18x42xf32>
    %393 = arith.mulf %390, %0 : vector<18x42xf32>
    %c0_115 = arith.constant 0 : index
    %394 = memref.load %arg6[%c0_115] : memref<3xf32, #tpu.memory_space<smem>>
    %cst_116 = arith.constant 0.000000e+00 : f32
    %395 = vector.broadcast %cst_116 : f32 to vector<16x40xf32>
    %396 = vector.broadcast %394 : f32 to vector<16x40xf32>
    %397 = arith.addf %396, %395 : vector<16x40xf32>
    %c1_117 = arith.constant 1 : index
    %398 = memref.load %arg6[%c1_117] : memref<3xf32, #tpu.memory_space<smem>>
    %cst_118 = arith.constant 0.000000e+00 : f32
    %399 = vector.broadcast %cst_118 : f32 to vector<16x40xf32>
    %400 = vector.broadcast %398 : f32 to vector<16x40xf32>
    %401 = arith.addf %400, %399 : vector<16x40xf32>
    %c2_119 = arith.constant 2 : index
    %402 = memref.load %arg6[%c2_119] : memref<3xf32, #tpu.memory_space<smem>>
    %cst_120 = arith.constant 0.000000e+00 : f32
    %403 = vector.broadcast %cst_120 : f32 to vector<16x40xf32>
    %404 = vector.broadcast %402 : f32 to vector<16x40xf32>
    %405 = arith.addf %404, %403 : vector<16x40xf32>
    %406 = vector.extract_strided_slice %391 {offsets = [0, 0], sizes = [16, 40], strides = [1, 1]} : vector<18x42xf32> to vector<16x40xf32>
    %c0_121 = arith.constant 0 : index
    %407 = memref.load %arg5[%c0_121] : memref<81xf32, #tpu.memory_space<smem>>
    %408 = vector.broadcast %407 : f32 to vector<16x40xf32>
    %409 = arith.mulf %408, %406 : vector<16x40xf32>
    %410 = arith.addf %397, %409 : vector<16x40xf32>
    %c27_122 = arith.constant 27 : index
    %411 = memref.load %arg5[%c27_122] : memref<81xf32, #tpu.memory_space<smem>>
    %412 = vector.broadcast %411 : f32 to vector<16x40xf32>
    %413 = arith.mulf %412, %406 : vector<16x40xf32>
    %414 = arith.addf %401, %413 : vector<16x40xf32>
    %c54_123 = arith.constant 54 : index
    %415 = memref.load %arg5[%c54_123] : memref<81xf32, #tpu.memory_space<smem>>
    %416 = vector.broadcast %415 : f32 to vector<16x40xf32>
    %417 = arith.mulf %416, %406 : vector<16x40xf32>
    %418 = arith.addf %405, %417 : vector<16x40xf32>
    %419 = vector.extract_strided_slice %391 {offsets = [0, 1], sizes = [16, 40], strides = [1, 1]} : vector<18x42xf32> to vector<16x40xf32>
    %c1_124 = arith.constant 1 : index
    %420 = memref.load %arg5[%c1_124] : memref<81xf32, #tpu.memory_space<smem>>
    %421 = vector.broadcast %420 : f32 to vector<16x40xf32>
    %422 = arith.mulf %421, %419 : vector<16x40xf32>
    %423 = arith.addf %410, %422 : vector<16x40xf32>
    %c28_125 = arith.constant 28 : index
    %424 = memref.load %arg5[%c28_125] : memref<81xf32, #tpu.memory_space<smem>>
    %425 = vector.broadcast %424 : f32 to vector<16x40xf32>
    %426 = arith.mulf %425, %419 : vector<16x40xf32>
    %427 = arith.addf %414, %426 : vector<16x40xf32>
    %c55_126 = arith.constant 55 : index
    %428 = memref.load %arg5[%c55_126] : memref<81xf32, #tpu.memory_space<smem>>
    %429 = vector.broadcast %428 : f32 to vector<16x40xf32>
    %430 = arith.mulf %429, %419 : vector<16x40xf32>
    %431 = arith.addf %418, %430 : vector<16x40xf32>
    %432 = vector.extract_strided_slice %391 {offsets = [0, 2], sizes = [16, 40], strides = [1, 1]} : vector<18x42xf32> to vector<16x40xf32>
    %c2_127 = arith.constant 2 : index
    %433 = memref.load %arg5[%c2_127] : memref<81xf32, #tpu.memory_space<smem>>
    %434 = vector.broadcast %433 : f32 to vector<16x40xf32>
    %435 = arith.mulf %434, %432 : vector<16x40xf32>
    %436 = arith.addf %423, %435 : vector<16x40xf32>
    %c29_128 = arith.constant 29 : index
    %437 = memref.load %arg5[%c29_128] : memref<81xf32, #tpu.memory_space<smem>>
    %438 = vector.broadcast %437 : f32 to vector<16x40xf32>
    %439 = arith.mulf %438, %432 : vector<16x40xf32>
    %440 = arith.addf %427, %439 : vector<16x40xf32>
    %c56_129 = arith.constant 56 : index
    %441 = memref.load %arg5[%c56_129] : memref<81xf32, #tpu.memory_space<smem>>
    %442 = vector.broadcast %441 : f32 to vector<16x40xf32>
    %443 = arith.mulf %442, %432 : vector<16x40xf32>
    %444 = arith.addf %431, %443 : vector<16x40xf32>
    %445 = vector.extract_strided_slice %391 {offsets = [1, 0], sizes = [16, 40], strides = [1, 1]} : vector<18x42xf32> to vector<16x40xf32>
    %c3_130 = arith.constant 3 : index
    %446 = memref.load %arg5[%c3_130] : memref<81xf32, #tpu.memory_space<smem>>
    %447 = vector.broadcast %446 : f32 to vector<16x40xf32>
    %448 = arith.mulf %447, %445 : vector<16x40xf32>
    %449 = arith.addf %436, %448 : vector<16x40xf32>
    %c30_131 = arith.constant 30 : index
    %450 = memref.load %arg5[%c30_131] : memref<81xf32, #tpu.memory_space<smem>>
    %451 = vector.broadcast %450 : f32 to vector<16x40xf32>
    %452 = arith.mulf %451, %445 : vector<16x40xf32>
    %453 = arith.addf %440, %452 : vector<16x40xf32>
    %c57_132 = arith.constant 57 : index
    %454 = memref.load %arg5[%c57_132] : memref<81xf32, #tpu.memory_space<smem>>
    %455 = vector.broadcast %454 : f32 to vector<16x40xf32>
    %456 = arith.mulf %455, %445 : vector<16x40xf32>
    %457 = arith.addf %444, %456 : vector<16x40xf32>
    %458 = vector.extract_strided_slice %391 {offsets = [1, 1], sizes = [16, 40], strides = [1, 1]} : vector<18x42xf32> to vector<16x40xf32>
    %c4_133 = arith.constant 4 : index
    %459 = memref.load %arg5[%c4_133] : memref<81xf32, #tpu.memory_space<smem>>
    %460 = vector.broadcast %459 : f32 to vector<16x40xf32>
    %461 = arith.mulf %460, %458 : vector<16x40xf32>
    %462 = arith.addf %449, %461 : vector<16x40xf32>
    %c31_134 = arith.constant 31 : index
    %463 = memref.load %arg5[%c31_134] : memref<81xf32, #tpu.memory_space<smem>>
    %464 = vector.broadcast %463 : f32 to vector<16x40xf32>
    %465 = arith.mulf %464, %458 : vector<16x40xf32>
    %466 = arith.addf %453, %465 : vector<16x40xf32>
    %c58_135 = arith.constant 58 : index
    %467 = memref.load %arg5[%c58_135] : memref<81xf32, #tpu.memory_space<smem>>
    %468 = vector.broadcast %467 : f32 to vector<16x40xf32>
    %469 = arith.mulf %468, %458 : vector<16x40xf32>
    %470 = arith.addf %457, %469 : vector<16x40xf32>
    %471 = vector.extract_strided_slice %391 {offsets = [1, 2], sizes = [16, 40], strides = [1, 1]} : vector<18x42xf32> to vector<16x40xf32>
    %c5_136 = arith.constant 5 : index
    %472 = memref.load %arg5[%c5_136] : memref<81xf32, #tpu.memory_space<smem>>
    %473 = vector.broadcast %472 : f32 to vector<16x40xf32>
    %474 = arith.mulf %473, %471 : vector<16x40xf32>
    %475 = arith.addf %462, %474 : vector<16x40xf32>
    %c32_137 = arith.constant 32 : index
    %476 = memref.load %arg5[%c32_137] : memref<81xf32, #tpu.memory_space<smem>>
    %477 = vector.broadcast %476 : f32 to vector<16x40xf32>
    %478 = arith.mulf %477, %471 : vector<16x40xf32>
    %479 = arith.addf %466, %478 : vector<16x40xf32>
    %c59_138 = arith.constant 59 : index
    %480 = memref.load %arg5[%c59_138] : memref<81xf32, #tpu.memory_space<smem>>
    %481 = vector.broadcast %480 : f32 to vector<16x40xf32>
    %482 = arith.mulf %481, %471 : vector<16x40xf32>
    %483 = arith.addf %470, %482 : vector<16x40xf32>
    %484 = vector.extract_strided_slice %391 {offsets = [2, 0], sizes = [16, 40], strides = [1, 1]} : vector<18x42xf32> to vector<16x40xf32>
    %c6_139 = arith.constant 6 : index
    %485 = memref.load %arg5[%c6_139] : memref<81xf32, #tpu.memory_space<smem>>
    %486 = vector.broadcast %485 : f32 to vector<16x40xf32>
    %487 = arith.mulf %486, %484 : vector<16x40xf32>
    %488 = arith.addf %475, %487 : vector<16x40xf32>
    %c33_140 = arith.constant 33 : index
    %489 = memref.load %arg5[%c33_140] : memref<81xf32, #tpu.memory_space<smem>>
    %490 = vector.broadcast %489 : f32 to vector<16x40xf32>
    %491 = arith.mulf %490, %484 : vector<16x40xf32>
    %492 = arith.addf %479, %491 : vector<16x40xf32>
    %c60_141 = arith.constant 60 : index
    %493 = memref.load %arg5[%c60_141] : memref<81xf32, #tpu.memory_space<smem>>
    %494 = vector.broadcast %493 : f32 to vector<16x40xf32>
    %495 = arith.mulf %494, %484 : vector<16x40xf32>
    %496 = arith.addf %483, %495 : vector<16x40xf32>
    %497 = vector.extract_strided_slice %391 {offsets = [2, 1], sizes = [16, 40], strides = [1, 1]} : vector<18x42xf32> to vector<16x40xf32>
    %c7_142 = arith.constant 7 : index
    %498 = memref.load %arg5[%c7_142] : memref<81xf32, #tpu.memory_space<smem>>
    %499 = vector.broadcast %498 : f32 to vector<16x40xf32>
    %500 = arith.mulf %499, %497 : vector<16x40xf32>
    %501 = arith.addf %488, %500 : vector<16x40xf32>
    %c34_143 = arith.constant 34 : index
    %502 = memref.load %arg5[%c34_143] : memref<81xf32, #tpu.memory_space<smem>>
    %503 = vector.broadcast %502 : f32 to vector<16x40xf32>
    %504 = arith.mulf %503, %497 : vector<16x40xf32>
    %505 = arith.addf %492, %504 : vector<16x40xf32>
    %c61_144 = arith.constant 61 : index
    %506 = memref.load %arg5[%c61_144] : memref<81xf32, #tpu.memory_space<smem>>
    %507 = vector.broadcast %506 : f32 to vector<16x40xf32>
    %508 = arith.mulf %507, %497 : vector<16x40xf32>
    %509 = arith.addf %496, %508 : vector<16x40xf32>
    %510 = vector.extract_strided_slice %391 {offsets = [2, 2], sizes = [16, 40], strides = [1, 1]} : vector<18x42xf32> to vector<16x40xf32>
    %c8_145 = arith.constant 8 : index
    %511 = memref.load %arg5[%c8_145] : memref<81xf32, #tpu.memory_space<smem>>
    %512 = vector.broadcast %511 : f32 to vector<16x40xf32>
    %513 = arith.mulf %512, %510 : vector<16x40xf32>
    %514 = arith.addf %501, %513 : vector<16x40xf32>
    %c35_146 = arith.constant 35 : index
    %515 = memref.load %arg5[%c35_146] : memref<81xf32, #tpu.memory_space<smem>>
    %516 = vector.broadcast %515 : f32 to vector<16x40xf32>
    %517 = arith.mulf %516, %510 : vector<16x40xf32>
    %518 = arith.addf %505, %517 : vector<16x40xf32>
    %c62_147 = arith.constant 62 : index
    %519 = memref.load %arg5[%c62_147] : memref<81xf32, #tpu.memory_space<smem>>
    %520 = vector.broadcast %519 : f32 to vector<16x40xf32>
    %521 = arith.mulf %520, %510 : vector<16x40xf32>
    %522 = arith.addf %509, %521 : vector<16x40xf32>
    %523 = vector.extract_strided_slice %392 {offsets = [0, 0], sizes = [16, 40], strides = [1, 1]} : vector<18x42xf32> to vector<16x40xf32>
    %c9_148 = arith.constant 9 : index
    %524 = memref.load %arg5[%c9_148] : memref<81xf32, #tpu.memory_space<smem>>
    %525 = vector.broadcast %524 : f32 to vector<16x40xf32>
    %526 = arith.mulf %525, %523 : vector<16x40xf32>
    %527 = arith.addf %514, %526 : vector<16x40xf32>
    %c36_149 = arith.constant 36 : index
    %528 = memref.load %arg5[%c36_149] : memref<81xf32, #tpu.memory_space<smem>>
    %529 = vector.broadcast %528 : f32 to vector<16x40xf32>
    %530 = arith.mulf %529, %523 : vector<16x40xf32>
    %531 = arith.addf %518, %530 : vector<16x40xf32>
    %c63_150 = arith.constant 63 : index
    %532 = memref.load %arg5[%c63_150] : memref<81xf32, #tpu.memory_space<smem>>
    %533 = vector.broadcast %532 : f32 to vector<16x40xf32>
    %534 = arith.mulf %533, %523 : vector<16x40xf32>
    %535 = arith.addf %522, %534 : vector<16x40xf32>
    %536 = vector.extract_strided_slice %392 {offsets = [0, 1], sizes = [16, 40], strides = [1, 1]} : vector<18x42xf32> to vector<16x40xf32>
    %c10_151 = arith.constant 10 : index
    %537 = memref.load %arg5[%c10_151] : memref<81xf32, #tpu.memory_space<smem>>
    %538 = vector.broadcast %537 : f32 to vector<16x40xf32>
    %539 = arith.mulf %538, %536 : vector<16x40xf32>
    %540 = arith.addf %527, %539 : vector<16x40xf32>
    %c37_152 = arith.constant 37 : index
    %541 = memref.load %arg5[%c37_152] : memref<81xf32, #tpu.memory_space<smem>>
    %542 = vector.broadcast %541 : f32 to vector<16x40xf32>
    %543 = arith.mulf %542, %536 : vector<16x40xf32>
    %544 = arith.addf %531, %543 : vector<16x40xf32>
    %c64_153 = arith.constant 64 : index
    %545 = memref.load %arg5[%c64_153] : memref<81xf32, #tpu.memory_space<smem>>
    %546 = vector.broadcast %545 : f32 to vector<16x40xf32>
    %547 = arith.mulf %546, %536 : vector<16x40xf32>
    %548 = arith.addf %535, %547 : vector<16x40xf32>
    %549 = vector.extract_strided_slice %392 {offsets = [0, 2], sizes = [16, 40], strides = [1, 1]} : vector<18x42xf32> to vector<16x40xf32>
    %c11_154 = arith.constant 11 : index
    %550 = memref.load %arg5[%c11_154] : memref<81xf32, #tpu.memory_space<smem>>
    %551 = vector.broadcast %550 : f32 to vector<16x40xf32>
    %552 = arith.mulf %551, %549 : vector<16x40xf32>
    %553 = arith.addf %540, %552 : vector<16x40xf32>
    %c38_155 = arith.constant 38 : index
    %554 = memref.load %arg5[%c38_155] : memref<81xf32, #tpu.memory_space<smem>>
    %555 = vector.broadcast %554 : f32 to vector<16x40xf32>
    %556 = arith.mulf %555, %549 : vector<16x40xf32>
    %557 = arith.addf %544, %556 : vector<16x40xf32>
    %c65_156 = arith.constant 65 : index
    %558 = memref.load %arg5[%c65_156] : memref<81xf32, #tpu.memory_space<smem>>
    %559 = vector.broadcast %558 : f32 to vector<16x40xf32>
    %560 = arith.mulf %559, %549 : vector<16x40xf32>
    %561 = arith.addf %548, %560 : vector<16x40xf32>
    %562 = vector.extract_strided_slice %392 {offsets = [1, 0], sizes = [16, 40], strides = [1, 1]} : vector<18x42xf32> to vector<16x40xf32>
    %c12_157 = arith.constant 12 : index
    %563 = memref.load %arg5[%c12_157] : memref<81xf32, #tpu.memory_space<smem>>
    %564 = vector.broadcast %563 : f32 to vector<16x40xf32>
    %565 = arith.mulf %564, %562 : vector<16x40xf32>
    %566 = arith.addf %553, %565 : vector<16x40xf32>
    %c39_158 = arith.constant 39 : index
    %567 = memref.load %arg5[%c39_158] : memref<81xf32, #tpu.memory_space<smem>>
    %568 = vector.broadcast %567 : f32 to vector<16x40xf32>
    %569 = arith.mulf %568, %562 : vector<16x40xf32>
    %570 = arith.addf %557, %569 : vector<16x40xf32>
    %c66_159 = arith.constant 66 : index
    %571 = memref.load %arg5[%c66_159] : memref<81xf32, #tpu.memory_space<smem>>
    %572 = vector.broadcast %571 : f32 to vector<16x40xf32>
    %573 = arith.mulf %572, %562 : vector<16x40xf32>
    %574 = arith.addf %561, %573 : vector<16x40xf32>
    %575 = vector.extract_strided_slice %392 {offsets = [1, 1], sizes = [16, 40], strides = [1, 1]} : vector<18x42xf32> to vector<16x40xf32>
    %c13_160 = arith.constant 13 : index
    %576 = memref.load %arg5[%c13_160] : memref<81xf32, #tpu.memory_space<smem>>
    %577 = vector.broadcast %576 : f32 to vector<16x40xf32>
    %578 = arith.mulf %577, %575 : vector<16x40xf32>
    %579 = arith.addf %566, %578 : vector<16x40xf32>
    %c40_161 = arith.constant 40 : index
    %580 = memref.load %arg5[%c40_161] : memref<81xf32, #tpu.memory_space<smem>>
    %581 = vector.broadcast %580 : f32 to vector<16x40xf32>
    %582 = arith.mulf %581, %575 : vector<16x40xf32>
    %583 = arith.addf %570, %582 : vector<16x40xf32>
    %c67_162 = arith.constant 67 : index
    %584 = memref.load %arg5[%c67_162] : memref<81xf32, #tpu.memory_space<smem>>
    %585 = vector.broadcast %584 : f32 to vector<16x40xf32>
    %586 = arith.mulf %585, %575 : vector<16x40xf32>
    %587 = arith.addf %574, %586 : vector<16x40xf32>
    %588 = vector.extract_strided_slice %392 {offsets = [1, 2], sizes = [16, 40], strides = [1, 1]} : vector<18x42xf32> to vector<16x40xf32>
    %c14_163 = arith.constant 14 : index
    %589 = memref.load %arg5[%c14_163] : memref<81xf32, #tpu.memory_space<smem>>
    %590 = vector.broadcast %589 : f32 to vector<16x40xf32>
    %591 = arith.mulf %590, %588 : vector<16x40xf32>
    %592 = arith.addf %579, %591 : vector<16x40xf32>
    %c41_164 = arith.constant 41 : index
    %593 = memref.load %arg5[%c41_164] : memref<81xf32, #tpu.memory_space<smem>>
    %594 = vector.broadcast %593 : f32 to vector<16x40xf32>
    %595 = arith.mulf %594, %588 : vector<16x40xf32>
    %596 = arith.addf %583, %595 : vector<16x40xf32>
    %c68_165 = arith.constant 68 : index
    %597 = memref.load %arg5[%c68_165] : memref<81xf32, #tpu.memory_space<smem>>
    %598 = vector.broadcast %597 : f32 to vector<16x40xf32>
    %599 = arith.mulf %598, %588 : vector<16x40xf32>
    %600 = arith.addf %587, %599 : vector<16x40xf32>
    %601 = vector.extract_strided_slice %392 {offsets = [2, 0], sizes = [16, 40], strides = [1, 1]} : vector<18x42xf32> to vector<16x40xf32>
    %c15_166 = arith.constant 15 : index
    %602 = memref.load %arg5[%c15_166] : memref<81xf32, #tpu.memory_space<smem>>
    %603 = vector.broadcast %602 : f32 to vector<16x40xf32>
    %604 = arith.mulf %603, %601 : vector<16x40xf32>
    %605 = arith.addf %592, %604 : vector<16x40xf32>
    %c42_167 = arith.constant 42 : index
    %606 = memref.load %arg5[%c42_167] : memref<81xf32, #tpu.memory_space<smem>>
    %607 = vector.broadcast %606 : f32 to vector<16x40xf32>
    %608 = arith.mulf %607, %601 : vector<16x40xf32>
    %609 = arith.addf %596, %608 : vector<16x40xf32>
    %c69_168 = arith.constant 69 : index
    %610 = memref.load %arg5[%c69_168] : memref<81xf32, #tpu.memory_space<smem>>
    %611 = vector.broadcast %610 : f32 to vector<16x40xf32>
    %612 = arith.mulf %611, %601 : vector<16x40xf32>
    %613 = arith.addf %600, %612 : vector<16x40xf32>
    %614 = vector.extract_strided_slice %392 {offsets = [2, 1], sizes = [16, 40], strides = [1, 1]} : vector<18x42xf32> to vector<16x40xf32>
    %c16_169 = arith.constant 16 : index
    %615 = memref.load %arg5[%c16_169] : memref<81xf32, #tpu.memory_space<smem>>
    %616 = vector.broadcast %615 : f32 to vector<16x40xf32>
    %617 = arith.mulf %616, %614 : vector<16x40xf32>
    %618 = arith.addf %605, %617 : vector<16x40xf32>
    %c43_170 = arith.constant 43 : index
    %619 = memref.load %arg5[%c43_170] : memref<81xf32, #tpu.memory_space<smem>>
    %620 = vector.broadcast %619 : f32 to vector<16x40xf32>
    %621 = arith.mulf %620, %614 : vector<16x40xf32>
    %622 = arith.addf %609, %621 : vector<16x40xf32>
    %c70_171 = arith.constant 70 : index
    %623 = memref.load %arg5[%c70_171] : memref<81xf32, #tpu.memory_space<smem>>
    %624 = vector.broadcast %623 : f32 to vector<16x40xf32>
    %625 = arith.mulf %624, %614 : vector<16x40xf32>
    %626 = arith.addf %613, %625 : vector<16x40xf32>
    %627 = vector.extract_strided_slice %392 {offsets = [2, 2], sizes = [16, 40], strides = [1, 1]} : vector<18x42xf32> to vector<16x40xf32>
    %c17_172 = arith.constant 17 : index
    %628 = memref.load %arg5[%c17_172] : memref<81xf32, #tpu.memory_space<smem>>
    %629 = vector.broadcast %628 : f32 to vector<16x40xf32>
    %630 = arith.mulf %629, %627 : vector<16x40xf32>
    %631 = arith.addf %618, %630 : vector<16x40xf32>
    %c44_173 = arith.constant 44 : index
    %632 = memref.load %arg5[%c44_173] : memref<81xf32, #tpu.memory_space<smem>>
    %633 = vector.broadcast %632 : f32 to vector<16x40xf32>
    %634 = arith.mulf %633, %627 : vector<16x40xf32>
    %635 = arith.addf %622, %634 : vector<16x40xf32>
    %c71_174 = arith.constant 71 : index
    %636 = memref.load %arg5[%c71_174] : memref<81xf32, #tpu.memory_space<smem>>
    %637 = vector.broadcast %636 : f32 to vector<16x40xf32>
    %638 = arith.mulf %637, %627 : vector<16x40xf32>
    %639 = arith.addf %626, %638 : vector<16x40xf32>
    %640 = vector.extract_strided_slice %393 {offsets = [0, 0], sizes = [16, 40], strides = [1, 1]} : vector<18x42xf32> to vector<16x40xf32>
    %c18_175 = arith.constant 18 : index
    %641 = memref.load %arg5[%c18_175] : memref<81xf32, #tpu.memory_space<smem>>
    %642 = vector.broadcast %641 : f32 to vector<16x40xf32>
    %643 = arith.mulf %642, %640 : vector<16x40xf32>
    %644 = arith.addf %631, %643 : vector<16x40xf32>
    %c45_176 = arith.constant 45 : index
    %645 = memref.load %arg5[%c45_176] : memref<81xf32, #tpu.memory_space<smem>>
    %646 = vector.broadcast %645 : f32 to vector<16x40xf32>
    %647 = arith.mulf %646, %640 : vector<16x40xf32>
    %648 = arith.addf %635, %647 : vector<16x40xf32>
    %c72_177 = arith.constant 72 : index
    %649 = memref.load %arg5[%c72_177] : memref<81xf32, #tpu.memory_space<smem>>
    %650 = vector.broadcast %649 : f32 to vector<16x40xf32>
    %651 = arith.mulf %650, %640 : vector<16x40xf32>
    %652 = arith.addf %639, %651 : vector<16x40xf32>
    %653 = vector.extract_strided_slice %393 {offsets = [0, 1], sizes = [16, 40], strides = [1, 1]} : vector<18x42xf32> to vector<16x40xf32>
    %c19_178 = arith.constant 19 : index
    %654 = memref.load %arg5[%c19_178] : memref<81xf32, #tpu.memory_space<smem>>
    %655 = vector.broadcast %654 : f32 to vector<16x40xf32>
    %656 = arith.mulf %655, %653 : vector<16x40xf32>
    %657 = arith.addf %644, %656 : vector<16x40xf32>
    %c46_179 = arith.constant 46 : index
    %658 = memref.load %arg5[%c46_179] : memref<81xf32, #tpu.memory_space<smem>>
    %659 = vector.broadcast %658 : f32 to vector<16x40xf32>
    %660 = arith.mulf %659, %653 : vector<16x40xf32>
    %661 = arith.addf %648, %660 : vector<16x40xf32>
    %c73_180 = arith.constant 73 : index
    %662 = memref.load %arg5[%c73_180] : memref<81xf32, #tpu.memory_space<smem>>
    %663 = vector.broadcast %662 : f32 to vector<16x40xf32>
    %664 = arith.mulf %663, %653 : vector<16x40xf32>
    %665 = arith.addf %652, %664 : vector<16x40xf32>
    %666 = vector.extract_strided_slice %393 {offsets = [0, 2], sizes = [16, 40], strides = [1, 1]} : vector<18x42xf32> to vector<16x40xf32>
    %c20_181 = arith.constant 20 : index
    %667 = memref.load %arg5[%c20_181] : memref<81xf32, #tpu.memory_space<smem>>
    %668 = vector.broadcast %667 : f32 to vector<16x40xf32>
    %669 = arith.mulf %668, %666 : vector<16x40xf32>
    %670 = arith.addf %657, %669 : vector<16x40xf32>
    %c47_182 = arith.constant 47 : index
    %671 = memref.load %arg5[%c47_182] : memref<81xf32, #tpu.memory_space<smem>>
    %672 = vector.broadcast %671 : f32 to vector<16x40xf32>
    %673 = arith.mulf %672, %666 : vector<16x40xf32>
    %674 = arith.addf %661, %673 : vector<16x40xf32>
    %c74_183 = arith.constant 74 : index
    %675 = memref.load %arg5[%c74_183] : memref<81xf32, #tpu.memory_space<smem>>
    %676 = vector.broadcast %675 : f32 to vector<16x40xf32>
    %677 = arith.mulf %676, %666 : vector<16x40xf32>
    %678 = arith.addf %665, %677 : vector<16x40xf32>
    %679 = vector.extract_strided_slice %393 {offsets = [1, 0], sizes = [16, 40], strides = [1, 1]} : vector<18x42xf32> to vector<16x40xf32>
    %c21_184 = arith.constant 21 : index
    %680 = memref.load %arg5[%c21_184] : memref<81xf32, #tpu.memory_space<smem>>
    %681 = vector.broadcast %680 : f32 to vector<16x40xf32>
    %682 = arith.mulf %681, %679 : vector<16x40xf32>
    %683 = arith.addf %670, %682 : vector<16x40xf32>
    %c48_185 = arith.constant 48 : index
    %684 = memref.load %arg5[%c48_185] : memref<81xf32, #tpu.memory_space<smem>>
    %685 = vector.broadcast %684 : f32 to vector<16x40xf32>
    %686 = arith.mulf %685, %679 : vector<16x40xf32>
    %687 = arith.addf %674, %686 : vector<16x40xf32>
    %c75_186 = arith.constant 75 : index
    %688 = memref.load %arg5[%c75_186] : memref<81xf32, #tpu.memory_space<smem>>
    %689 = vector.broadcast %688 : f32 to vector<16x40xf32>
    %690 = arith.mulf %689, %679 : vector<16x40xf32>
    %691 = arith.addf %678, %690 : vector<16x40xf32>
    %692 = vector.extract_strided_slice %393 {offsets = [1, 1], sizes = [16, 40], strides = [1, 1]} : vector<18x42xf32> to vector<16x40xf32>
    %c22_187 = arith.constant 22 : index
    %693 = memref.load %arg5[%c22_187] : memref<81xf32, #tpu.memory_space<smem>>
    %694 = vector.broadcast %693 : f32 to vector<16x40xf32>
    %695 = arith.mulf %694, %692 : vector<16x40xf32>
    %696 = arith.addf %683, %695 : vector<16x40xf32>
    %c49_188 = arith.constant 49 : index
    %697 = memref.load %arg5[%c49_188] : memref<81xf32, #tpu.memory_space<smem>>
    %698 = vector.broadcast %697 : f32 to vector<16x40xf32>
    %699 = arith.mulf %698, %692 : vector<16x40xf32>
    %700 = arith.addf %687, %699 : vector<16x40xf32>
    %c76_189 = arith.constant 76 : index
    %701 = memref.load %arg5[%c76_189] : memref<81xf32, #tpu.memory_space<smem>>
    %702 = vector.broadcast %701 : f32 to vector<16x40xf32>
    %703 = arith.mulf %702, %692 : vector<16x40xf32>
    %704 = arith.addf %691, %703 : vector<16x40xf32>
    %705 = vector.extract_strided_slice %393 {offsets = [1, 2], sizes = [16, 40], strides = [1, 1]} : vector<18x42xf32> to vector<16x40xf32>
    %c23_190 = arith.constant 23 : index
    %706 = memref.load %arg5[%c23_190] : memref<81xf32, #tpu.memory_space<smem>>
    %707 = vector.broadcast %706 : f32 to vector<16x40xf32>
    %708 = arith.mulf %707, %705 : vector<16x40xf32>
    %709 = arith.addf %696, %708 : vector<16x40xf32>
    %c50_191 = arith.constant 50 : index
    %710 = memref.load %arg5[%c50_191] : memref<81xf32, #tpu.memory_space<smem>>
    %711 = vector.broadcast %710 : f32 to vector<16x40xf32>
    %712 = arith.mulf %711, %705 : vector<16x40xf32>
    %713 = arith.addf %700, %712 : vector<16x40xf32>
    %c77_192 = arith.constant 77 : index
    %714 = memref.load %arg5[%c77_192] : memref<81xf32, #tpu.memory_space<smem>>
    %715 = vector.broadcast %714 : f32 to vector<16x40xf32>
    %716 = arith.mulf %715, %705 : vector<16x40xf32>
    %717 = arith.addf %704, %716 : vector<16x40xf32>
    %718 = vector.extract_strided_slice %393 {offsets = [2, 0], sizes = [16, 40], strides = [1, 1]} : vector<18x42xf32> to vector<16x40xf32>
    %c24_193 = arith.constant 24 : index
    %719 = memref.load %arg5[%c24_193] : memref<81xf32, #tpu.memory_space<smem>>
    %720 = vector.broadcast %719 : f32 to vector<16x40xf32>
    %721 = arith.mulf %720, %718 : vector<16x40xf32>
    %722 = arith.addf %709, %721 : vector<16x40xf32>
    %c51_194 = arith.constant 51 : index
    %723 = memref.load %arg5[%c51_194] : memref<81xf32, #tpu.memory_space<smem>>
    %724 = vector.broadcast %723 : f32 to vector<16x40xf32>
    %725 = arith.mulf %724, %718 : vector<16x40xf32>
    %726 = arith.addf %713, %725 : vector<16x40xf32>
    %c78_195 = arith.constant 78 : index
    %727 = memref.load %arg5[%c78_195] : memref<81xf32, #tpu.memory_space<smem>>
    %728 = vector.broadcast %727 : f32 to vector<16x40xf32>
    %729 = arith.mulf %728, %718 : vector<16x40xf32>
    %730 = arith.addf %717, %729 : vector<16x40xf32>
    %731 = vector.extract_strided_slice %393 {offsets = [2, 1], sizes = [16, 40], strides = [1, 1]} : vector<18x42xf32> to vector<16x40xf32>
    %c25_196 = arith.constant 25 : index
    %732 = memref.load %arg5[%c25_196] : memref<81xf32, #tpu.memory_space<smem>>
    %733 = vector.broadcast %732 : f32 to vector<16x40xf32>
    %734 = arith.mulf %733, %731 : vector<16x40xf32>
    %735 = arith.addf %722, %734 : vector<16x40xf32>
    %c52_197 = arith.constant 52 : index
    %736 = memref.load %arg5[%c52_197] : memref<81xf32, #tpu.memory_space<smem>>
    %737 = vector.broadcast %736 : f32 to vector<16x40xf32>
    %738 = arith.mulf %737, %731 : vector<16x40xf32>
    %739 = arith.addf %726, %738 : vector<16x40xf32>
    %c79_198 = arith.constant 79 : index
    %740 = memref.load %arg5[%c79_198] : memref<81xf32, #tpu.memory_space<smem>>
    %741 = vector.broadcast %740 : f32 to vector<16x40xf32>
    %742 = arith.mulf %741, %731 : vector<16x40xf32>
    %743 = arith.addf %730, %742 : vector<16x40xf32>
    %744 = vector.extract_strided_slice %393 {offsets = [2, 2], sizes = [16, 40], strides = [1, 1]} : vector<18x42xf32> to vector<16x40xf32>
    %c26_199 = arith.constant 26 : index
    %745 = memref.load %arg5[%c26_199] : memref<81xf32, #tpu.memory_space<smem>>
    %746 = vector.broadcast %745 : f32 to vector<16x40xf32>
    %747 = arith.mulf %746, %744 : vector<16x40xf32>
    %748 = arith.addf %735, %747 : vector<16x40xf32>
    %c53_200 = arith.constant 53 : index
    %749 = memref.load %arg5[%c53_200] : memref<81xf32, #tpu.memory_space<smem>>
    %750 = vector.broadcast %749 : f32 to vector<16x40xf32>
    %751 = arith.mulf %750, %744 : vector<16x40xf32>
    %752 = arith.addf %739, %751 : vector<16x40xf32>
    %c80_201 = arith.constant 80 : index
    %753 = memref.load %arg5[%c80_201] : memref<81xf32, #tpu.memory_space<smem>>
    %754 = vector.broadcast %753 : f32 to vector<16x40xf32>
    %755 = arith.mulf %754, %744 : vector<16x40xf32>
    %756 = arith.addf %743, %755 : vector<16x40xf32>
    %c0_202 = arith.constant 0 : index
    %c0_203 = arith.constant 0 : index
    %c0_204 = arith.constant 0 : index
    %c0_205 = arith.constant 0 : index
    %757 = vector.load %arg7[%c0_202, %c0_203, %c0_204, %c0_205] : memref<1x6x16x40xf32, #tpu.memory_space<vmem>>, vector<1x1x16x40xf32>
    %758 = vector.shape_cast %757 : vector<1x1x16x40xf32> to vector<16x40xf32>
    %759 = vector.shape_cast %748 : vector<16x40xf32> to vector<1x1x16x40xf32>
    tpu.vector_store %arg7[%c0_202, %c0_203, %c0_204, %c0_205], %759 {strides = array<i32>} : memref<1x6x16x40xf32, #tpu.memory_space<vmem>>, vector<1x1x16x40xf32>,
    %c0_206 = arith.constant 0 : index
    %c3_207 = arith.constant 3 : index
    %c0_208 = arith.constant 0 : index
    %c0_209 = arith.constant 0 : index
    %760 = vector.load %arg7[%c0_206, %c3_207, %c0_208, %c0_209] : memref<1x6x16x40xf32, #tpu.memory_space<vmem>>, vector<1x1x16x40xf32>
    %761 = vector.shape_cast %760 : vector<1x1x16x40xf32> to vector<16x40xf32>
    %762 = vector.shape_cast %748 : vector<16x40xf32> to vector<1x1x16x40xf32>
    tpu.vector_store %arg7[%c0_206, %c3_207, %c0_208, %c0_209], %762 {strides = array<i32>} : memref<1x6x16x40xf32, #tpu.memory_space<vmem>>, vector<1x1x16x40xf32>,
    %c0_210 = arith.constant 0 : index
    %c1_211 = arith.constant 1 : index
    %c0_212 = arith.constant 0 : index
    %c0_213 = arith.constant 0 : index
    %763 = vector.load %arg7[%c0_210, %c1_211, %c0_212, %c0_213] : memref<1x6x16x40xf32, #tpu.memory_space<vmem>>, vector<1x1x16x40xf32>
    %764 = vector.shape_cast %763 : vector<1x1x16x40xf32> to vector<16x40xf32>
    %765 = vector.shape_cast %752 : vector<16x40xf32> to vector<1x1x16x40xf32>
    tpu.vector_store %arg7[%c0_210, %c1_211, %c0_212, %c0_213], %765 {strides = array<i32>} : memref<1x6x16x40xf32, #tpu.memory_space<vmem>>, vector<1x1x16x40xf32>,
    %c0_214 = arith.constant 0 : index
    %c4_215 = arith.constant 4 : index
    %c0_216 = arith.constant 0 : index
    %c0_217 = arith.constant 0 : index
    %766 = vector.load %arg7[%c0_214, %c4_215, %c0_216, %c0_217] : memref<1x6x16x40xf32, #tpu.memory_space<vmem>>, vector<1x1x16x40xf32>
    %767 = vector.shape_cast %766 : vector<1x1x16x40xf32> to vector<16x40xf32>
    %768 = vector.shape_cast %752 : vector<16x40xf32> to vector<1x1x16x40xf32>
    tpu.vector_store %arg7[%c0_214, %c4_215, %c0_216, %c0_217], %768 {strides = array<i32>} : memref<1x6x16x40xf32, #tpu.memory_space<vmem>>, vector<1x1x16x40xf32>,
    %c0_218 = arith.constant 0 : index
    %c2_219 = arith.constant 2 : index
    %c0_220 = arith.constant 0 : index
    %c0_221 = arith.constant 0 : index
    %769 = vector.load %arg7[%c0_218, %c2_219, %c0_220, %c0_221] : memref<1x6x16x40xf32, #tpu.memory_space<vmem>>, vector<1x1x16x40xf32>
    %770 = vector.shape_cast %769 : vector<1x1x16x40xf32> to vector<16x40xf32>
    %771 = vector.shape_cast %756 : vector<16x40xf32> to vector<1x1x16x40xf32>
    tpu.vector_store %arg7[%c0_218, %c2_219, %c0_220, %c0_221], %771 {strides = array<i32>} : memref<1x6x16x40xf32, #tpu.memory_space<vmem>>, vector<1x1x16x40xf32>,
    %c0_222 = arith.constant 0 : index
    %c5_223 = arith.constant 5 : index
    %c0_224 = arith.constant 0 : index
    %c0_225 = arith.constant 0 : index
    %772 = vector.load %arg7[%c0_222, %c5_223, %c0_224, %c0_225] : memref<1x6x16x40xf32, #tpu.memory_space<vmem>>, vector<1x1x16x40xf32>
    %773 = vector.shape_cast %772 : vector<1x1x16x40xf32> to vector<16x40xf32>
    %774 = vector.shape_cast %756 : vector<16x40xf32> to vector<1x1x16x40xf32>
    tpu.vector_store %arg7[%c0_222, %c5_223, %c0_224, %c0_225], %774 {strides = array<i32>} : memref<1x6x16x40xf32, #tpu.memory_space<vmem>>, vector<1x1x16x40xf32>,
    return
  }
  func.func @transform_0(%arg0: i32) -> (i32, i32, i32, i32) {
    %c0_i32 = arith.constant 0 : i32
    %c0_i32_0 = arith.constant 0 : i32
    %c0_i32_1 = arith.constant 0 : i32
    %c0_i32_2 = arith.constant 0 : i32
    return %arg0, %c0_i32, %c0_i32_0, %c0_i32_1 : i32, i32, i32, i32
  }
  func.func @transform_1(%arg0: i32) -> (i32, i32) {
    %c0_i32 = arith.constant 0 : i32
    %c0_i32_0 = arith.constant 0 : i32
    %c0_i32_1 = arith.constant 0 : i32
    return %c0_i32, %c0_i32_0 : i32, i32
  }
  func.func @transform_2(%arg0: i32) -> i32 {
    %c0_i32 = arith.constant 0 : i32
    %c0_i32_0 = arith.constant 0 : i32
    return %c0_i32 : i32
  }
  func.func @transform_3(%arg0: i32) -> i32 {
    %c0_i32 = arith.constant 0 : i32
    %c0_i32_0 = arith.constant 0 : i32
    return %c0_i32 : i32
  }
  func.func @transform_4(%arg0: i32) -> i32 {
    %c0_i32 = arith.constant 0 : i32
    %c0_i32_0 = arith.constant 0 : i32
    return %c0_i32 : i32
  }
  func.func @transform_5(%arg0: i32) -> i32 {
    %c0_i32 = arith.constant 0 : i32
    %c0_i32_0 = arith.constant 0 : i32
    return %c0_i32 : i32
  }
  func.func @transform_6(%arg0: i32) -> (i32, i32, i32, i32) {
    %c0_i32 = arith.constant 0 : i32
    %c0_i32_0 = arith.constant 0 : i32
    %c0_i32_1 = arith.constant 0 : i32
    %c0_i32_2 = arith.constant 0 : i32
    return %arg0, %c0_i32, %c0_i32_0, %c0_i32_1 : i32, i32, i32, i32
  }
}

</mosaic_0001>

<llo_original>
// kernel: model_forward.1
$region0: #{model_forward.1}
  #allocation0 [shape = 'u32[]', space=smem, size = 0x4, offset = 0x4, fixed_abs, tag = 'smem constant byte address 0x4 - core index']
  #allocation1 [shape = 'u32[144,128]{1,0:T(1,128)}', space=vmem, size = 0x12000, scoped, tag = 'internal scratch']
  %s0 = inlined_call_operand.vmem [shape: f32[1,3,20,44], index: 0, kind: input, shape index: {}]
  %s1 = inlined_call_operand.vmem [shape: f32[18,42], index: 1, kind: input, shape index: {}]
  %s2 = inlined_call_operand.vmem [shape: f32[81], index: 2, kind: input, shape index: {}]
  %s3 = inlined_call_operand.vmem [shape: f32[3], index: 3, kind: input, shape index: {}]
  %s4 = inlined_call_operand.vmem [shape: f32[81], index: 4, kind: input, shape index: {}]
  %s5 = inlined_call_operand.vmem [shape: f32[3], index: 5, kind: input, shape index: {}]
  %s6 = inlined_call_operand.vmem [shape: f32[1,6,16,40], index: 6, kind: output, shape index: {}]
  %s7 = sld [smem:[#allocation0]]
  $region50: #{model_forward.1} parent=0
    _
  %s9 = ssub.s32 1, %s7
  %s10 = scalar_select 0, %s9, %s7
  $region1: #{model_forward.1} parent=0
    #allocation2 [shape = 'u8[512]{0}', space=smem, size = 0x200, scoped, tag = 'input window, operand 2, single buffered']
    #allocation3 [shape = 's32[1]{0}', space=sflag, size = 0x4, scoped, tag = 'scoped memory for model_forward.1']
    #allocation4 [shape = 'u8[512]{0}', space=smem, size = 0x200, scoped, tag = 'input window, operand 3, single buffered']
    #allocation5 [shape = 's32[1]{0}', space=sflag, size = 0x4, scoped, tag = 'scoped memory for model_forward.1']
    #allocation6 [shape = 'u8[512]{0}', space=smem, size = 0x200, scoped, tag = 'input window, operand 4, single buffered']
    #allocation7 [shape = 'u8[512]{0}', space=smem, size = 0x200, scoped, tag = 'input window, operand 5, single buffered']
    #allocation8 [shape = 's32[1]{0}', space=sflag, size = 0x4, scoped, tag = 'scoped memory for model_forward.1']
    %11 = vsyncpa [#allocation3], 0
    %12 = vsyncpa [#allocation5], 0
    %13 = vsyncpa [#allocation8], 0
    // Predicated region
    $region2: #{model_forward.1} parent=1 // pred_check
      _
    $region3: #{model_forward.1} parent=1 // pred_check_branch
      %15 = sbr.rel (0) target = $region5
    $region4: #{model_forward.1} parent=1 // pred_region
      _
    $region5: #{model_forward.1} parent=1 // pred_fallthru
      _
    // Predicated region
    $region6: #{model_forward.1} parent=1 // pred_check
      _
    $region7: #{model_forward.1} parent=1 // pred_check_branch
      %17 = sbr.rel (0) target = $region9
    $region8: #{model_forward.1} parent=1 // pred_region
      _
    $region9: #{model_forward.1} parent=1 // pred_fallthru
      _
    // Predicated region
    $region10: #{model_forward.1} parent=1 // pred_check
      _
    $region11: #{model_forward.1} parent=1 // pred_check_branch
      %19 = sbr.rel (0) target = $region13
    $region12: #{model_forward.1} parent=1 // pred_region
      %s21 = ssub.s32 16, 16
      %22 = vsyncadd [#allocation3], %s21
      %s24 = sshll.u32 %s2, 4
      %s25 = int_to_ptr.vmem [resolvable:$true] %s24
      %27 = dma.vmem_to_smem %s25, 16, [#allocation2], [#allocation3]
    $region13: #{model_forward.1} parent=1 // pred_fallthru
      _
    // Predicated region
    $region14: #{model_forward.1} parent=1 // pred_check
      _
    $region15: #{model_forward.1} parent=1 // pred_check_branch
      %29 = sbr.rel (0) target = $region17
    $region16: #{model_forward.1} parent=1 // pred_region
      %s31 = ssub.s32 16, 16
      %32 = vsyncadd [#allocation5], %s31
      %s34 = sshll.u32 %s3, 4
      %s35 = int_to_ptr.vmem [resolvable:$true] %s34
      %37 = dma.vmem_to_smem %s35, 16, [#allocation4], [#allocation5]
    $region17: #{model_forward.1} parent=1 // pred_fallthru
      _
    // Predicated region
    $region18: #{model_forward.1} parent=1 // pred_check
      _
    $region19: #{model_forward.1} parent=1 // pred_check_branch
      %39 = sbr.rel (0) target = $region21
    $region20: #{model_forward.1} parent=1 // pred_region
      %s41 = ssub.s32 16, 16
      %42 = vsyncadd [#allocation5], %s41
      %s44 = sshll.u32 %s4, 4
      %s45 = int_to_ptr.vmem [resolvable:$true] %s44
      %47 = dma.vmem_to_smem %s45, 16, [#allocation6], [#allocation5]
    $region21: #{model_forward.1} parent=1 // pred_fallthru
      _
    // Predicated region
    $region22: #{model_forward.1} parent=1 // pred_check
      _
    $region23: #{model_forward.1} parent=1 // pred_check_branch
      %49 = sbr.rel (0) target = $region25
    $region24: #{model_forward.1} parent=1 // pred_region
      %s51 = ssub.s32 16, 16
      %52 = vsyncadd [#allocation8], %s51
      %s54 = sshll.u32 %s5, 4
      %s55 = int_to_ptr.vmem [resolvable:$true] %s54
      %57 = dma.vmem_to_smem %s55, 16, [#allocation7], [#allocation8]
    $region25: #{model_forward.1} parent=1 // pred_fallthru
      _
    // Predicated region
    $region26: #{model_forward.1} parent=1 // pred_check
      _
    $region27: #{model_forward.1} parent=1 // pred_check_branch
      %59 = sbr.rel (0) target = $region29
    $region28: #{model_forward.1} parent=1 // pred_region
      %60 = dma.done [#allocation3], 16
    $region29: #{model_forward.1} parent=1 // pred_fallthru
      _
    // Predicated region
    $region30: #{model_forward.1} parent=1 // pred_check
      _
    $region31: #{model_forward.1} parent=1 // pred_check_branch
      %62 = sbr.rel (0) target = $region33
    $region32: #{model_forward.1} parent=1 // pred_region
      %63 = dma.done [#allocation5], 16
    $region33: #{model_forward.1} parent=1 // pred_fallthru
      _
    // Predicated region
    $region34: #{model_forward.1} parent=1 // pred_check
      _
    $region35: #{model_forward.1} parent=1 // pred_check_branch
      %65 = sbr.rel (0) target = $region37
    $region36: #{model_forward.1} parent=1 // pred_region
      %66 = dma.done [#allocation5], 16
    $region37: #{model_forward.1} parent=1 // pred_fallthru
      _
    // Predicated region
    $region38: #{model_forward.1} parent=1 // pred_check
      _
    $region39: #{model_forward.1} parent=1 // pred_check_branch
      %68 = sbr.rel (0) target = $region41
    $region40: #{model_forward.1} parent=1 // pred_region
      %69 = dma.done [#allocation8], 16
    $region41: #{model_forward.1} parent=1 // pred_fallthru
      _
    %70 = sfence
    %v71 = vld [vmem:[%s1] sm:$0xff]
    %v72 = vld [vmem:[%s1 + $0x8] sm:$0xff]
    %v73 = vld [vmem:[%s1 + $0x10] sm:$0x3]
    %s74 = sld [smem:[#allocation4]]
    %v75 = vstv %s74
    %v76 = vadd.f32 %v75, 0.0
    %s77 = sld [smem:[#allocation4 + $0x1]]
    %v78 = vstv %s77
    %v79 = vadd.f32 %v78, 0.0
    %s80 = sld [smem:[#allocation4 + $0x2]]
    %v81 = vstv %s80
    %v82 = vadd.f32 %v81, 0.0
    %v83 = vld [vmem:[%s0] sm:$0xff]
    %v84 = vld [vmem:[%s0 + $0x8] sm:$0xff]
    %v85 = vld [vmem:[%s0 + $0x10] sm:$0x3]
    %s86 = sld [smem:[#allocation2]]
    %v87 = vstv %s86
    %v88 = vmul.f32 %v87, %v83
    %v89 = vmul.f32 %v87, %v84
    %v90 = vmul.f32 %v87, %v85
    %v91 = vadd.f32 %v76, %v88
    %v92 = vadd.f32 %v76, %v89
    %v93 = vadd.f32 %v76, %v90
    %s94 = sld [smem:[#allocation2 + $0x1b]]
    %v95 = vstv %s94
    %v96 = vmul.f32 %v95, %v83
    %v97 = vmul.f32 %v95, %v84
    %v98 = vmul.f32 %v95, %v85
    %v99 = vadd.f32 %v79, %v96
    %v100 = vadd.f32 %v79, %v97
    %v101 = vadd.f32 %v79, %v98
    %s102 = sld [smem:[#allocation2 + $0x36]]
    %v103 = vstv %s102
    %v104 = vmul.f32 %v103, %v83
    %v105 = vmul.f32 %v103, %v84
    %v106 = vmul.f32 %v103, %v85
    %v107 = vadd.f32 %v82, %v104
    %v108 = vadd.f32 %v82, %v105
    %v109 = vadd.f32 %v82, %v106
    %s110 = sld [smem:[#allocation2 + $0x1]]
    %v111 = vstv %s110
    %v112 = vmul.f32 %v111, %v83
    %v113 = vmul.f32 %v111, %v84
    %v114 = vmul.f32 %v111, %v85
    %118 = vrot.lane.b32.xlu0 %v112, 127
    %v119 = vpop.permute.xlu0 %118
    %120 = vrot.lane.b32.xlu0 %v113, 127
    %v121 = vpop.permute.xlu0 %120
    %122 = vrot.lane.b32.xlu0 %v114, 127
    %v123 = vpop.permute.xlu0 %122
    %v127 = vadd.f32 %v91, %v119
    %v128 = vadd.f32 %v92, %v121
    %v129 = vadd.f32 %v93, %v123
    %s130 = sld [smem:[#allocation2 + $0x1c]]
    %v131 = vstv %s130
    %v132 = vmul.f32 %v131, %v83
    %v133 = vmul.f32 %v131, %v84
    %v134 = vmul.f32 %v131, %v85
    %138 = vrot.lane.b32.xlu0 %v132, 127
    %v139 = vpop.permute.xlu0 %138
    %140 = vrot.lane.b32.xlu0 %v133, 127
    %v141 = vpop.permute.xlu0 %140
    %142 = vrot.lane.b32.xlu0 %v134, 127
    %v143 = vpop.permute.xlu0 %142
    %v147 = vadd.f32 %v99, %v139
    %v148 = vadd.f32 %v100, %v141
    %v149 = vadd.f32 %v101, %v143
    %s150 = sld [smem:[#allocation2 + $0x37]]
    %v151 = vstv %s150
    %v152 = vmul.f32 %v151, %v83
    %v153 = vmul.f32 %v151, %v84
    %v154 = vmul.f32 %v151, %v85
    %158 = vrot.lane.b32.xlu0 %v152, 127
    %v159 = vpop.permute.xlu0 %158
    %160 = vrot.lane.b32.xlu0 %v153, 127
    %v161 = vpop.permute.xlu0 %160
    %162 = vrot.lane.b32.xlu0 %v154, 127
    %v163 = vpop.permute.xlu0 %162
    %v167 = vadd.f32 %v107, %v159
    %v168 = vadd.f32 %v108, %v161
    %v169 = vadd.f32 %v109, %v163
    %s170 = sld [smem:[#allocation2 + $0x2]]
    %v171 = vstv %s170
    %v172 = vmul.f32 %v171, %v83
    %v173 = vmul.f32 %v171, %v84
    %v174 = vmul.f32 %v171, %v85
    %178 = vrot.lane.b32.xlu0 %v172, 126
    %v179 = vpop.permute.xlu0 %178
    %180 = vrot.lane.b32.xlu0 %v173, 126
    %v181 = vpop.permute.xlu0 %180
    %182 = vrot.lane.b32.xlu0 %v174, 126
    %v183 = vpop.permute.xlu0 %182
    %v187 = vadd.f32 %v127, %v179
    %v188 = vadd.f32 %v128, %v181
    %v189 = vadd.f32 %v129, %v183
    %s190 = sld [smem:[#allocation2 + $0x1d]]
    %v191 = vstv %s190
    %v192 = vmul.f32 %v191, %v83
    %v193 = vmul.f32 %v191, %v84
    %v194 = vmul.f32 %v191, %v85
    %198 = vrot.lane.b32.xlu0 %v192, 126
    %v199 = vpop.permute.xlu0 %198
    %200 = vrot.lane.b32.xlu0 %v193, 126
    %v201 = vpop.permute.xlu0 %200
    %202 = vrot.lane.b32.xlu0 %v194, 126
    %v203 = vpop.permute.xlu0 %202
    %v207 = vadd.f32 %v147, %v199
    %v208 = vadd.f32 %v148, %v201
    %v209 = vadd.f32 %v149, %v203
    %s210 = sld [smem:[#allocation2 + $0x38]]
    %v211 = vstv %s210
    %v212 = vmul.f32 %v211, %v83
    %v213 = vmul.f32 %v211, %v84
    %v214 = vmul.f32 %v211, %v85
    %218 = vrot.lane.b32.xlu0 %v212, 126
    %v219 = vpop.permute.xlu0 %218
    %220 = vrot.lane.b32.xlu0 %v213, 126
    %v221 = vpop.permute.xlu0 %220
    %222 = vrot.lane.b32.xlu0 %v214, 126
    %v223 = vpop.permute.xlu0 %222
    %v227 = vadd.f32 %v167, %v219
    %v228 = vadd.f32 %v168, %v221
    %v229 = vadd.f32 %v169, %v223
    %v230 = vld [vmem:[%s0 + $0x1] sm:$0xff]
    %v231 = vld [vmem:[%s0 + $0x9] sm:$0xff]
    %v232 = vld [vmem:[%s0 + $0x11] sm:$0x3]
    %s233 = sld [smem:[#allocation2 + $0x3]]
    %v234 = vstv %s233
    %v235 = vmul.f32 %v234, %v230
    %v236 = vmul.f32 %v234, %v231
    %v237 = vmul.f32 %v234, %v232
    %v238 = vadd.f32 %v187, %v235
    %v239 = vadd.f32 %v188, %v236
    %v240 = vadd.f32 %v189, %v237
    %s241 = sld [smem:[#allocation2 + $0x1e]]
    %v242 = vstv %s241
    %v243 = vmul.f32 %v242, %v230
    %v244 = vmul.f32 %v242, %v231
    %v245 = vmul.f32 %v242, %v232
    %v246 = vadd.f32 %v207, %v243
    %v247 = vadd.f32 %v208, %v244
    %v248 = vadd.f32 %v209, %v245
    %s249 = sld [smem:[#allocation2 + $0x39]]
    %v250 = vstv %s249
    %v251 = vmul.f32 %v250, %v230
    %v252 = vmul.f32 %v250, %v231
    %v253 = vmul.f32 %v250, %v232
    %v254 = vadd.f32 %v227, %v251
    %v255 = vadd.f32 %v228, %v252
    %v256 = vadd.f32 %v229, %v253
    %s257 = sld [smem:[#allocation2 + $0x4]]
    %v258 = vstv %s257
    %v259 = vmul.f32 %v258, %v230
    %v260 = vmul.f32 %v258, %v231
    %v261 = vmul.f32 %v258, %v232
    %265 = vrot.lane.b32.xlu0 %v259, 127
    %v266 = vpop.permute.xlu0 %265
    %267 = vrot.lane.b32.xlu0 %v260, 127
    %v268 = vpop.permute.xlu0 %267
    %269 = vrot.lane.b32.xlu0 %v261, 127
    %v270 = vpop.permute.xlu0 %269
    %v274 = vadd.f32 %v238, %v266
    %v275 = vadd.f32 %v239, %v268
    %v276 = vadd.f32 %v240, %v270
    %s277 = sld [smem:[#allocation2 + $0x1f]]
    %v278 = vstv %s277
    %v279 = vmul.f32 %v278, %v230
    %v280 = vmul.f32 %v278, %v231
    %v281 = vmul.f32 %v278, %v232
    %285 = vrot.lane.b32.xlu0 %v279, 127
    %v286 = vpop.permute.xlu0 %285
    %287 = vrot.lane.b32.xlu0 %v280, 127
    %v288 = vpop.permute.xlu0 %287
    %289 = vrot.lane.b32.xlu0 %v281, 127
    %v290 = vpop.permute.xlu0 %289
    %v294 = vadd.f32 %v246, %v286
    %v295 = vadd.f32 %v247, %v288
    %v296 = vadd.f32 %v248, %v290
    %s297 = sld [smem:[#allocation2 + $0x3a]]
    %v298 = vstv %s297
    %v299 = vmul.f32 %v298, %v230
    %v300 = vmul.f32 %v298, %v231
    %v301 = vmul.f32 %v298, %v232
    %305 = vrot.lane.b32.xlu0 %v299, 127
    %v306 = vpop.permute.xlu0 %305
    %307 = vrot.lane.b32.xlu0 %v300, 127
    %v308 = vpop.permute.xlu0 %307
    %309 = vrot.lane.b32.xlu0 %v301, 127
    %v310 = vpop.permute.xlu0 %309
    %v314 = vadd.f32 %v254, %v306
    %v315 = vadd.f32 %v255, %v308
    %v316 = vadd.f32 %v256, %v310
    %s317 = sld [smem:[#allocation2 + $0x5]]
    %v318 = vstv %s317
    %v319 = vmul.f32 %v318, %v230
    %v320 = vmul.f32 %v318, %v231
    %v321 = vmul.f32 %v318, %v232
    %325 = vrot.lane.b32.xlu0 %v319, 126
    %v326 = vpop.permute.xlu0 %325
    %327 = vrot.lane.b32.xlu0 %v320, 126
    %v328 = vpop.permute.xlu0 %327
    %329 = vrot.lane.b32.xlu0 %v321, 126
    %v330 = vpop.permute.xlu0 %329
    %v334 = vadd.f32 %v274, %v326
    %v335 = vadd.f32 %v275, %v328
    %v336 = vadd.f32 %v276, %v330
    %s337 = sld [smem:[#allocation2 + $0x20]]
    %v338 = vstv %s337
    %v339 = vmul.f32 %v338, %v230
    %v340 = vmul.f32 %v338, %v231
    %v341 = vmul.f32 %v338, %v232
    %345 = vrot.lane.b32.xlu0 %v339, 126
    %v346 = vpop.permute.xlu0 %345
    %347 = vrot.lane.b32.xlu0 %v340, 126
    %v348 = vpop.permute.xlu0 %347
    %349 = vrot.lane.b32.xlu0 %v341, 126
    %v350 = vpop.permute.xlu0 %349
    %v354 = vadd.f32 %v294, %v346
    %v355 = vadd.f32 %v295, %v348
    %v356 = vadd.f32 %v296, %v350
    %s357 = sld [smem:[#allocation2 + $0x3b]]
    %v358 = vstv %s357
    %v359 = vmul.f32 %v358, %v230
    %v360 = vmul.f32 %v358, %v231
    %v361 = vmul.f32 %v358, %v232
    %365 = vrot.lane.b32.xlu0 %v359, 126
    %v366 = vpop.permute.xlu0 %365
    %367 = vrot.lane.b32.xlu0 %v360, 126
    %v368 = vpop.permute.xlu0 %367
    %369 = vrot.lane.b32.xlu0 %v361, 126
    %v370 = vpop.permute.xlu0 %369
    %v374 = vadd.f32 %v314, %v366
    %v375 = vadd.f32 %v315, %v368
    %v376 = vadd.f32 %v316, %v370
    %v377 = vld [vmem:[%s0 + $0x2] sm:$0xff]
    %v378 = vld [vmem:[%s0 + $0xa] sm:$0xff]
    %v379 = vld [vmem:[%s0 + $0x12] sm:$0x3]
    %s380 = sld [smem:[#allocation2 + $0x6]]
    %v381 = vstv %s380
    %v382 = vmul.f32 %v381, %v377
    %v383 = vmul.f32 %v381, %v378
    %v384 = vmul.f32 %v381, %v379
    %v385 = vadd.f32 %v334, %v382
    %v386 = vadd.f32 %v335, %v383
    %v387 = vadd.f32 %v336, %v384
    %s388 = sld [smem:[#allocation2 + $0x21]]
    %v389 = vstv %s388
    %v390 = vmul.f32 %v389, %v377
    %v391 = vmul.f32 %v389, %v378
    %v392 = vmul.f32 %v389, %v379
    %v393 = vadd.f32 %v354, %v390
    %v394 = vadd.f32 %v355, %v391
    %v395 = vadd.f32 %v356, %v392
    %s396 = sld [smem:[#allocation2 + $0x3c]]
    %v397 = vstv %s396
    %v398 = vmul.f32 %v397, %v377
    %v399 = vmul.f32 %v397, %v378
    %v400 = vmul.f32 %v397, %v379
    %v401 = vadd.f32 %v374, %v398
    %v402 = vadd.f32 %v375, %v399
    %v403 = vadd.f32 %v376, %v400
    %s404 = sld [smem:[#allocation2 + $0x7]]
    %v405 = vstv %s404
    %v406 = vmul.f32 %v405, %v377
    %v407 = vmul.f32 %v405, %v378
    %v408 = vmul.f32 %v405, %v379
    %412 = vrot.lane.b32.xlu0 %v406, 127
    %v413 = vpop.permute.xlu0 %412
    %414 = vrot.lane.b32.xlu0 %v407, 127
    %v415 = vpop.permute.xlu0 %414
    %416 = vrot.lane.b32.xlu0 %v408, 127
    %v417 = vpop.permute.xlu0 %416
    %v421 = vadd.f32 %v385, %v413
    %v422 = vadd.f32 %v386, %v415
    %v423 = vadd.f32 %v387, %v417
    %s424 = sld [smem:[#allocation2 + $0x22]]
    %v425 = vstv %s424
    %v426 = vmul.f32 %v425, %v377
    %v427 = vmul.f32 %v425, %v378
    %v428 = vmul.f32 %v425, %v379
    %432 = vrot.lane.b32.xlu0 %v426, 127
    %v433 = vpop.permute.xlu0 %432
    %434 = vrot.lane.b32.xlu0 %v427, 127
    %v435 = vpop.permute.xlu0 %434
    %436 = vrot.lane.b32.xlu0 %v428, 127
    %v437 = vpop.permute.xlu0 %436
    %v441 = vadd.f32 %v393, %v433
    %v442 = vadd.f32 %v394, %v435
    %v443 = vadd.f32 %v395, %v437
    %s444 = sld [smem:[#allocation2 + $0x3d]]
    %v445 = vstv %s444
    %v446 = vmul.f32 %v445, %v377
    %v447 = vmul.f32 %v445, %v378
    %v448 = vmul.f32 %v445, %v379
    %452 = vrot.lane.b32.xlu0 %v446, 127
    %v453 = vpop.permute.xlu0 %452
    %454 = vrot.lane.b32.xlu0 %v447, 127
    %v455 = vpop.permute.xlu0 %454
    %456 = vrot.lane.b32.xlu0 %v448, 127
    %v457 = vpop.permute.xlu0 %456
    %v461 = vadd.f32 %v401, %v453
    %v462 = vadd.f32 %v402, %v455
    %v463 = vadd.f32 %v403, %v457
    %s464 = sld [smem:[#allocation2 + $0x8]]
    %v465 = vstv %s464
    %v466 = vmul.f32 %v465, %v377
    %v467 = vmul.f32 %v465, %v378
    %v468 = vmul.f32 %v465, %v379
    %472 = vrot.lane.b32.xlu0 %v466, 126
    %v473 = vpop.permute.xlu0 %472
    %474 = vrot.lane.b32.xlu0 %v467, 126
    %v475 = vpop.permute.xlu0 %474
    %476 = vrot.lane.b32.xlu0 %v468, 126
    %v477 = vpop.permute.xlu0 %476
    %v481 = vadd.f32 %v421, %v473
    %v482 = vadd.f32 %v422, %v475
    %v483 = vadd.f32 %v423, %v477
    %s484 = sld [smem:[#allocation2 + $0x23]]
    %v485 = vstv %s484
    %v486 = vmul.f32 %v485, %v377
    %v487 = vmul.f32 %v485, %v378
    %v488 = vmul.f32 %v485, %v379
    %492 = vrot.lane.b32.xlu0 %v486, 126
    %v493 = vpop.permute.xlu0 %492
    %494 = vrot.lane.b32.xlu0 %v487, 126
    %v495 = vpop.permute.xlu0 %494
    %496 = vrot.lane.b32.xlu0 %v488, 126
    %v497 = vpop.permute.xlu0 %496
    %v501 = vadd.f32 %v441, %v493
    %v502 = vadd.f32 %v442, %v495
    %v503 = vadd.f32 %v443, %v497
    %s504 = sld [smem:[#allocation2 + $0x3e]]
    %v505 = vstv %s504
    %v506 = vmul.f32 %v505, %v377
    %v507 = vmul.f32 %v505, %v378
    %v508 = vmul.f32 %v505, %v379
    %512 = vrot.lane.b32.xlu0 %v506, 126
    %v513 = vpop.permute.xlu0 %512
    %514 = vrot.lane.b32.xlu0 %v507, 126
    %v515 = vpop.permute.xlu0 %514
    %516 = vrot.lane.b32.xlu0 %v508, 126
    %v517 = vpop.permute.xlu0 %516
    %v521 = vadd.f32 %v461, %v513
    %v522 = vadd.f32 %v462, %v515
    %v523 = vadd.f32 %v463, %v517
    %s524 = scalar_lea.vmem %s0, 24
    %v525 = vld [vmem:[%s524] sm:$0xff]
    %v526 = vld [vmem:[%s524 + $0x8] sm:$0xff]
    %v527 = vld [vmem:[%s524 + $0x10] sm:$0x3]
    %s528 = sld [smem:[#allocation2 + $0x9]]
    %v529 = vstv %s528
    %v530 = vmul.f32 %v529, %v525
    %v531 = vmul.f32 %v529, %v526
    %v532 = vmul.f32 %v529, %v527
    %v533 = vadd.f32 %v481, %v530
    %v534 = vadd.f32 %v482, %v531
    %v535 = vadd.f32 %v483, %v532
    %s536 = sld [smem:[#allocation2 + $0x24]]
    %v537 = vstv %s536
    %v538 = vmul.f32 %v537, %v525
    %v539 = vmul.f32 %v537, %v526
    %v540 = vmul.f32 %v537, %v527
    %v541 = vadd.f32 %v501, %v538
    %v542 = vadd.f32 %v502, %v539
    %v543 = vadd.f32 %v503, %v540
    %s544 = sld [smem:[#allocation2 + $0x3f]]
    %v545 = vstv %s544
    %v546 = vmul.f32 %v545, %v525
    %v547 = vmul.f32 %v545, %v526
    %v548 = vmul.f32 %v545, %v527
    %v549 = vadd.f32 %v521, %v546
    %v550 = vadd.f32 %v522, %v547
    %v551 = vadd.f32 %v523, %v548
    %s552 = sld [smem:[#allocation2 + $0xa]]
    %v553 = vstv %s552
    %v554 = vmul.f32 %v553, %v525
    %v555 = vmul.f32 %v553, %v526
    %v556 = vmul.f32 %v553, %v527
    %560 = vrot.lane.b32.xlu0 %v554, 127
    %v561 = vpop.permute.xlu0 %560
    %562 = vrot.lane.b32.xlu0 %v555, 127
    %v563 = vpop.permute.xlu0 %562
    %564 = vrot.lane.b32.xlu0 %v556, 127
    %v565 = vpop.permute.xlu0 %564
    %v569 = vadd.f32 %v533, %v561
    %v570 = vadd.f32 %v534, %v563
    %v571 = vadd.f32 %v535, %v565
    %s572 = sld [smem:[#allocation2 + $0x25]]
    %v573 = vstv %s572
    %v574 = vmul.f32 %v573, %v525
    %v575 = vmul.f32 %v573, %v526
    %v576 = vmul.f32 %v573, %v527
    %580 = vrot.lane.b32.xlu0 %v574, 127
    %v581 = vpop.permute.xlu0 %580
    %582 = vrot.lane.b32.xlu0 %v575, 127
    %v583 = vpop.permute.xlu0 %582
    %584 = vrot.lane.b32.xlu0 %v576, 127
    %v585 = vpop.permute.xlu0 %584
    %v589 = vadd.f32 %v541, %v581
    %v590 = vadd.f32 %v542, %v583
    %v591 = vadd.f32 %v543, %v585
    %s592 = sld [smem:[#allocation2 + $0x40]]
    %v593 = vstv %s592
    %v594 = vmul.f32 %v593, %v525
    %v595 = vmul.f32 %v593, %v526
    %v596 = vmul.f32 %v593, %v527
    %600 = vrot.lane.b32.xlu0 %v594, 127
    %v601 = vpop.permute.xlu0 %600
    %602 = vrot.lane.b32.xlu0 %v595, 127
    %v603 = vpop.permute.xlu0 %602
    %604 = vrot.lane.b32.xlu0 %v596, 127
    %v605 = vpop.permute.xlu0 %604
    %v609 = vadd.f32 %v549, %v601
    %v610 = vadd.f32 %v550, %v603
    %v611 = vadd.f32 %v551, %v605
    %s612 = sld [smem:[#allocation2 + $0xb]]
    %v613 = vstv %s612
    %v614 = vmul.f32 %v613, %v525
    %v615 = vmul.f32 %v613, %v526
    %v616 = vmul.f32 %v613, %v527
    %620 = vrot.lane.b32.xlu0 %v614, 126
    %v621 = vpop.permute.xlu0 %620
    %622 = vrot.lane.b32.xlu0 %v615, 126
    %v623 = vpop.permute.xlu0 %622
    %624 = vrot.lane.b32.xlu0 %v616, 126
    %v625 = vpop.permute.xlu0 %624
    %v629 = vadd.f32 %v569, %v621
    %v630 = vadd.f32 %v570, %v623
    %v631 = vadd.f32 %v571, %v625
    %s632 = sld [smem:[#allocation2 + $0x26]]
    %v633 = vstv %s632
    %v634 = vmul.f32 %v633, %v525
    %v635 = vmul.f32 %v633, %v526
    %v636 = vmul.f32 %v633, %v527
    %640 = vrot.lane.b32.xlu0 %v634, 126
    %v641 = vpop.permute.xlu0 %640
    %642 = vrot.lane.b32.xlu0 %v635, 126
    %v643 = vpop.permute.xlu0 %642
    %644 = vrot.lane.b32.xlu0 %v636, 126
    %v645 = vpop.permute.xlu0 %644
    %v649 = vadd.f32 %v589, %v641
    %v650 = vadd.f32 %v590, %v643
    %v651 = vadd.f32 %v591, %v645
    %s652 = sld [smem:[#allocation2 + $0x41]]
    %v653 = vstv %s652
    %v654 = vmul.f32 %v653, %v525
    %v655 = vmul.f32 %v653, %v526
    %v656 = vmul.f32 %v653, %v527
    %660 = vrot.lane.b32.xlu0 %v654, 126
    %v661 = vpop.permute.xlu0 %660
    %662 = vrot.lane.b32.xlu0 %v655, 126
    %v663 = vpop.permute.xlu0 %662
    %664 = vrot.lane.b32.xlu0 %v656, 126
    %v665 = vpop.permute.xlu0 %664
    %v669 = vadd.f32 %v609, %v661
    %v670 = vadd.f32 %v610, %v663
    %v671 = vadd.f32 %v611, %v665
    %v672 = vld [vmem:[%s524 + $0x1] sm:$0xff]
    %v673 = vld [vmem:[%s524 + $0x9] sm:$0xff]
    %v674 = vld [vmem:[%s524 + $0x11] sm:$0x3]
    %s675 = sld [smem:[#allocation2 + $0xc]]
    %v676 = vstv %s675
    %v677 = vmul.f32 %v676, %v672
    %v678 = vmul.f32 %v676, %v673
    %v679 = vmul.f32 %v676, %v674
    %v680 = vadd.f32 %v629, %v677
    %v681 = vadd.f32 %v630, %v678
    %v682 = vadd.f32 %v631, %v679
    %s683 = sld [smem:[#allocation2 + $0x27]]
    %v684 = vstv %s683
    %v685 = vmul.f32 %v684, %v672
    %v686 = vmul.f32 %v684, %v673
    %v687 = vmul.f32 %v684, %v674
    %v688 = vadd.f32 %v649, %v685
    %v689 = vadd.f32 %v650, %v686
    %v690 = vadd.f32 %v651, %v687
    %s691 = sld [smem:[#allocation2 + $0x42]]
    %v692 = vstv %s691
    %v693 = vmul.f32 %v692, %v672
    %v694 = vmul.f32 %v692, %v673
    %v695 = vmul.f32 %v692, %v674
    %v696 = vadd.f32 %v669, %v693
    %v697 = vadd.f32 %v670, %v694
    %v698 = vadd.f32 %v671, %v695
    %s699 = sld [smem:[#allocation2 + $0xd]]
    %v700 = vstv %s699
    %v701 = vmul.f32 %v700, %v672
    %v702 = vmul.f32 %v700, %v673
    %v703 = vmul.f32 %v700, %v674
    %707 = vrot.lane.b32.xlu0 %v701, 127
    %v708 = vpop.permute.xlu0 %707
    %709 = vrot.lane.b32.xlu0 %v702, 127
    %v710 = vpop.permute.xlu0 %709
    %711 = vrot.lane.b32.xlu0 %v703, 127
    %v712 = vpop.permute.xlu0 %711
    %v716 = vadd.f32 %v680, %v708
    %v717 = vadd.f32 %v681, %v710
    %v718 = vadd.f32 %v682, %v712
    %s719 = sld [smem:[#allocation2 + $0x28]]
    %v720 = vstv %s719
    %v721 = vmul.f32 %v720, %v672
    %v722 = vmul.f32 %v720, %v673
    %v723 = vmul.f32 %v720, %v674
    %727 = vrot.lane.b32.xlu0 %v721, 127
    %v728 = vpop.permute.xlu0 %727
    %729 = vrot.lane.b32.xlu0 %v722, 127
    %v730 = vpop.permute.xlu0 %729
    %731 = vrot.lane.b32.xlu0 %v723, 127
    %v732 = vpop.permute.xlu0 %731
    %v736 = vadd.f32 %v688, %v728
    %v737 = vadd.f32 %v689, %v730
    %v738 = vadd.f32 %v690, %v732
    %s739 = sld [smem:[#allocation2 + $0x43]]
    %v740 = vstv %s739
    %v741 = vmul.f32 %v740, %v672
    %v742 = vmul.f32 %v740, %v673
    %v743 = vmul.f32 %v740, %v674
    %747 = vrot.lane.b32.xlu0 %v741, 127
    %v748 = vpop.permute.xlu0 %747
    %749 = vrot.lane.b32.xlu0 %v742, 127
    %v750 = vpop.permute.xlu0 %749
    %751 = vrot.lane.b32.xlu0 %v743, 127
    %v752 = vpop.permute.xlu0 %751
    %v756 = vadd.f32 %v696, %v748
    %v757 = vadd.f32 %v697, %v750
    %v758 = vadd.f32 %v698, %v752
    %s759 = sld [smem:[#allocation2 + $0xe]]
    %v760 = vstv %s759
    %v761 = vmul.f32 %v760, %v672
    %v762 = vmul.f32 %v760, %v673
    %v763 = vmul.f32 %v760, %v674
    %767 = vrot.lane.b32.xlu0 %v761, 126
    %v768 = vpop.permute.xlu0 %767
    %769 = vrot.lane.b32.xlu0 %v762, 126
    %v770 = vpop.permute.xlu0 %769
    %771 = vrot.lane.b32.xlu0 %v763, 126
    %v772 = vpop.permute.xlu0 %771
    %v776 = vadd.f32 %v716, %v768
    %v777 = vadd.f32 %v717, %v770
    %v778 = vadd.f32 %v718, %v772
    %s779 = sld [smem:[#allocation2 + $0x29]]
    %v780 = vstv %s779
    %v781 = vmul.f32 %v780, %v672
    %v782 = vmul.f32 %v780, %v673
    %v783 = vmul.f32 %v780, %v674
    %787 = vrot.lane.b32.xlu0 %v781, 126
    %v788 = vpop.permute.xlu0 %787
    %789 = vrot.lane.b32.xlu0 %v782, 126
    %v790 = vpop.permute.xlu0 %789
    %791 = vrot.lane.b32.xlu0 %v783, 126
    %v792 = vpop.permute.xlu0 %791
    %v796 = vadd.f32 %v736, %v788
    %v797 = vadd.f32 %v737, %v790
    %v798 = vadd.f32 %v738, %v792
    %s799 = sld [smem:[#allocation2 + $0x44]]
    %v800 = vstv %s799
    %v801 = vmul.f32 %v800, %v672
    %v802 = vmul.f32 %v800, %v673
    %v803 = vmul.f32 %v800, %v674
    %807 = vrot.lane.b32.xlu0 %v801, 126
    %v808 = vpop.permute.xlu0 %807
    %809 = vrot.lane.b32.xlu0 %v802, 126
    %v810 = vpop.permute.xlu0 %809
    %811 = vrot.lane.b32.xlu0 %v803, 126
    %v812 = vpop.permute.xlu0 %811
    %v816 = vadd.f32 %v756, %v808
    %v817 = vadd.f32 %v757, %v810
    %v818 = vadd.f32 %v758, %v812
    %v819 = vld [vmem:[%s524 + $0x2] sm:$0xff]
    %v820 = vld [vmem:[%s524 + $0xa] sm:$0xff]
    %v821 = vld [vmem:[%s524 + $0x12] sm:$0x3]
    %s822 = sld [smem:[#allocation2 + $0xf]]
    %v823 = vstv %s822
    %v824 = vmul.f32 %v823, %v819
    %v825 = vmul.f32 %v823, %v820
    %v826 = vmul.f32 %v823, %v821
    %v827 = vadd.f32 %v776, %v824
    %v828 = vadd.f32 %v777, %v825
    %v829 = vadd.f32 %v778, %v826
    %s830 = sld [smem:[#allocation2 + $0x2a]]
    %v831 = vstv %s830
    %v832 = vmul.f32 %v831, %v819
    %v833 = vmul.f32 %v831, %v820
    %v834 = vmul.f32 %v831, %v821
    %v835 = vadd.f32 %v796, %v832
    %v836 = vadd.f32 %v797, %v833
    %v837 = vadd.f32 %v798, %v834
    %s838 = sld [smem:[#allocation2 + $0x45]]
    %v839 = vstv %s838
    %v840 = vmul.f32 %v839, %v819
    %v841 = vmul.f32 %v839, %v820
    %v842 = vmul.f32 %v839, %v821
    %v843 = vadd.f32 %v816, %v840
    %v844 = vadd.f32 %v817, %v841
    %v845 = vadd.f32 %v818, %v842
    %s846 = sld [smem:[#allocation2 + $0x10]]
    %v847 = vstv %s846
    %v848 = vmul.f32 %v847, %v819
    %v849 = vmul.f32 %v847, %v820
    %v850 = vmul.f32 %v847, %v821
    %854 = vrot.lane.b32.xlu0 %v848, 127
    %v855 = vpop.permute.xlu0 %854
    %856 = vrot.lane.b32.xlu0 %v849, 127
    %v857 = vpop.permute.xlu0 %856
    %858 = vrot.lane.b32.xlu0 %v850, 127
    %v859 = vpop.permute.xlu0 %858
    %v863 = vadd.f32 %v827, %v855
    %v864 = vadd.f32 %v828, %v857
    %v865 = vadd.f32 %v829, %v859
    %s866 = sld [smem:[#allocation2 + $0x2b]]
    %v867 = vstv %s866
    %v868 = vmul.f32 %v867, %v819
    %v869 = vmul.f32 %v867, %v820
    %v870 = vmul.f32 %v867, %v821
    %874 = vrot.lane.b32.xlu0 %v868, 127
    %v875 = vpop.permute.xlu0 %874
    %876 = vrot.lane.b32.xlu0 %v869, 127
    %v877 = vpop.permute.xlu0 %876
    %878 = vrot.lane.b32.xlu0 %v870, 127
    %v879 = vpop.permute.xlu0 %878
    %v883 = vadd.f32 %v835, %v875
    %v884 = vadd.f32 %v836, %v877
    %v885 = vadd.f32 %v837, %v879
    %s886 = sld [smem:[#allocation2 + $0x46]]
    %v887 = vstv %s886
    %v888 = vmul.f32 %v887, %v819
    %v889 = vmul.f32 %v887, %v820
    %v890 = vmul.f32 %v887, %v821
    %894 = vrot.lane.b32.xlu0 %v888, 127
    %v895 = vpop.permute.xlu0 %894
    %896 = vrot.lane.b32.xlu0 %v889, 127
    %v897 = vpop.permute.xlu0 %896
    %898 = vrot.lane.b32.xlu0 %v890, 127
    %v899 = vpop.permute.xlu0 %898
    %v903 = vadd.f32 %v843, %v895
    %v904 = vadd.f32 %v844, %v897
    %v905 = vadd.f32 %v845, %v899
    %s906 = sld [smem:[#allocation2 + $0x11]]
    %v907 = vstv %s906
    %v908 = vmul.f32 %v907, %v819
    %v909 = vmul.f32 %v907, %v820
    %v910 = vmul.f32 %v907, %v821
    %914 = vrot.lane.b32.xlu0 %v908, 126
    %v915 = vpop.permute.xlu0 %914
    %916 = vrot.lane.b32.xlu0 %v909, 126
    %v917 = vpop.permute.xlu0 %916
    %918 = vrot.lane.b32.xlu0 %v910, 126
    %v919 = vpop.permute.xlu0 %918
    %v923 = vadd.f32 %v863, %v915
    %v924 = vadd.f32 %v864, %v917
    %v925 = vadd.f32 %v865, %v919
    %s926 = sld [smem:[#allocation2 + $0x2c]]
    %v927 = vstv %s926
    %v928 = vmul.f32 %v927, %v819
    %v929 = vmul.f32 %v927, %v820
    %v930 = vmul.f32 %v927, %v821
    %934 = vrot.lane.b32.xlu0 %v928, 126
    %v935 = vpop.permute.xlu0 %934
    %936 = vrot.lane.b32.xlu0 %v929, 126
    %v937 = vpop.permute.xlu0 %936
    %938 = vrot.lane.b32.xlu0 %v930, 126
    %v939 = vpop.permute.xlu0 %938
    %v943 = vadd.f32 %v883, %v935
    %v944 = vadd.f32 %v884, %v937
    %v945 = vadd.f32 %v885, %v939
    %s946 = sld [smem:[#allocation2 + $0x47]]
    %v947 = vstv %s946
    %v948 = vmul.f32 %v947, %v819
    %v949 = vmul.f32 %v947, %v820
    %v950 = vmul.f32 %v947, %v821
    %954 = vrot.lane.b32.xlu0 %v948, 126
    %v955 = vpop.permute.xlu0 %954
    %956 = vrot.lane.b32.xlu0 %v949, 126
    %v957 = vpop.permute.xlu0 %956
    %958 = vrot.lane.b32.xlu0 %v950, 126
    %v959 = vpop.permute.xlu0 %958
    %v963 = vadd.f32 %v903, %v955
    %v964 = vadd.f32 %v904, %v957
    %v965 = vadd.f32 %v905, %v959
    %s966 = scalar_lea.vmem %s0, 48
    %v967 = vld [vmem:[%s966] sm:$0xff]
    %v968 = vld [vmem:[%s966 + $0x8] sm:$0xff]
    %v969 = vld [vmem:[%s966 + $0x10] sm:$0x3]
    %s970 = sld [smem:[#allocation2 + $0x12]]
    %v971 = vstv %s970
    %v972 = vmul.f32 %v971, %v967
    %v973 = vmul.f32 %v971, %v968
    %v974 = vmul.f32 %v971, %v969
    %v975 = vadd.f32 %v923, %v972
    %v976 = vadd.f32 %v924, %v973
    %v977 = vadd.f32 %v925, %v974
    %s978 = sld [smem:[#allocation2 + $0x2d]]
    %v979 = vstv %s978
    %v980 = vmul.f32 %v979, %v967
    %v981 = vmul.f32 %v979, %v968
    %v982 = vmul.f32 %v979, %v969
    %v983 = vadd.f32 %v943, %v980
    %v984 = vadd.f32 %v944, %v981
    %v985 = vadd.f32 %v945, %v982
    %s986 = sld [smem:[#allocation2 + $0x48]]
    %v987 = vstv %s986
    %v988 = vmul.f32 %v987, %v967
    %v989 = vmul.f32 %v987, %v968
    %v990 = vmul.f32 %v987, %v969
    %v991 = vadd.f32 %v963, %v988
    %v992 = vadd.f32 %v964, %v989
    %v993 = vadd.f32 %v965, %v990
    %s994 = sld [smem:[#allocation2 + $0x13]]
    %v995 = vstv %s994
    %v996 = vmul.f32 %v995, %v967
    %v997 = vmul.f32 %v995, %v968
    %v998 = vmul.f32 %v995, %v969
    %1002 = vrot.lane.b32.xlu0 %v996, 127
    %v1003 = vpop.permute.xlu0 %1002
    %1004 = vrot.lane.b32.xlu0 %v997, 127
    %v1005 = vpop.permute.xlu0 %1004
    %1006 = vrot.lane.b32.xlu0 %v998, 127
    %v1007 = vpop.permute.xlu0 %1006
    %v1011 = vadd.f32 %v975, %v1003
    %v1012 = vadd.f32 %v976, %v1005
    %v1013 = vadd.f32 %v977, %v1007
    %s1014 = sld [smem:[#allocation2 + $0x2e]]
    %v1015 = vstv %s1014
    %v1016 = vmul.f32 %v1015, %v967
    %v1017 = vmul.f32 %v1015, %v968
    %v1018 = vmul.f32 %v1015, %v969
    %1022 = vrot.lane.b32.xlu0 %v1016, 127
    %v1023 = vpop.permute.xlu0 %1022
    %1024 = vrot.lane.b32.xlu0 %v1017, 127
    %v1025 = vpop.permute.xlu0 %1024
    %1026 = vrot.lane.b32.xlu0 %v1018, 127
    %v1027 = vpop.permute.xlu0 %1026
    %v1031 = vadd.f32 %v983, %v1023
    %v1032 = vadd.f32 %v984, %v1025
    %v1033 = vadd.f32 %v985, %v1027
    %s1034 = sld [smem:[#allocation2 + $0x49]]
    %v1035 = vstv %s1034
    %v1036 = vmul.f32 %v1035, %v967
    %v1037 = vmul.f32 %v1035, %v968
    %v1038 = vmul.f32 %v1035, %v969
    %1042 = vrot.lane.b32.xlu0 %v1036, 127
    %v1043 = vpop.permute.xlu0 %1042
    %1044 = vrot.lane.b32.xlu0 %v1037, 127
    %v1045 = vpop.permute.xlu0 %1044
    %1046 = vrot.lane.b32.xlu0 %v1038, 127
    %v1047 = vpop.permute.xlu0 %1046
    %v1051 = vadd.f32 %v991, %v1043
    %v1052 = vadd.f32 %v992, %v1045
    %v1053 = vadd.f32 %v993, %v1047
    %s1054 = sld [smem:[#allocation2 + $0x14]]
    %v1055 = vstv %s1054
    %v1056 = vmul.f32 %v1055, %v967
    %v1057 = vmul.f32 %v1055, %v968
    %v1058 = vmul.f32 %v1055, %v969
    %1062 = vrot.lane.b32.xlu0 %v1056, 126
    %v1063 = vpop.permute.xlu0 %1062
    %1064 = vrot.lane.b32.xlu0 %v1057, 126
    %v1065 = vpop.permute.xlu0 %1064
    %1066 = vrot.lane.b32.xlu0 %v1058, 126
    %v1067 = vpop.permute.xlu0 %1066
    %v1071 = vadd.f32 %v1011, %v1063
    %v1072 = vadd.f32 %v1012, %v1065
    %v1073 = vadd.f32 %v1013, %v1067
    %s1074 = sld [smem:[#allocation2 + $0x2f]]
    %v1075 = vstv %s1074
    %v1076 = vmul.f32 %v1075, %v967
    %v1077 = vmul.f32 %v1075, %v968
    %v1078 = vmul.f32 %v1075, %v969
    %1082 = vrot.lane.b32.xlu0 %v1076, 126
    %v1083 = vpop.permute.xlu0 %1082
    %1084 = vrot.lane.b32.xlu0 %v1077, 126
    %v1085 = vpop.permute.xlu0 %1084
    %1086 = vrot.lane.b32.xlu0 %v1078, 126
    %v1087 = vpop.permute.xlu0 %1086
    %v1091 = vadd.f32 %v1031, %v1083
    %v1092 = vadd.f32 %v1032, %v1085
    %v1093 = vadd.f32 %v1033, %v1087
    %s1094 = sld [smem:[#allocation2 + $0x4a]]
    %v1095 = vstv %s1094
    %v1096 = vmul.f32 %v1095, %v967
    %v1097 = vmul.f32 %v1095, %v968
    %v1098 = vmul.f32 %v1095, %v969
    %1102 = vrot.lane.b32.xlu0 %v1096, 126
    %v1103 = vpop.permute.xlu0 %1102
    %1104 = vrot.lane.b32.xlu0 %v1097, 126
    %v1105 = vpop.permute.xlu0 %1104
    %1106 = vrot.lane.b32.xlu0 %v1098, 126
    %v1107 = vpop.permute.xlu0 %1106
    %v1111 = vadd.f32 %v1051, %v1103
    %v1112 = vadd.f32 %v1052, %v1105
    %v1113 = vadd.f32 %v1053, %v1107
    %v1114 = vld [vmem:[%s966 + $0x1] sm:$0xff]
    %v1115 = vld [vmem:[%s966 + $0x9] sm:$0xff]
    %v1116 = vld [vmem:[%s966 + $0x11] sm:$0x3]
    %s1117 = sld [smem:[#allocation2 + $0x15]]
    %v1118 = vstv %s1117
    %v1119 = vmul.f32 %v1118, %v1114
    %v1120 = vmul.f32 %v1118, %v1115
    %v1121 = vmul.f32 %v1118, %v1116
    %v1122 = vadd.f32 %v1071, %v1119
    %v1123 = vadd.f32 %v1072, %v1120
    %v1124 = vadd.f32 %v1073, %v1121
    %s1125 = sld [smem:[#allocation2 + $0x30]]
    %v1126 = vstv %s1125
    %v1127 = vmul.f32 %v1126, %v1114
    %v1128 = vmul.f32 %v1126, %v1115
    %v1129 = vmul.f32 %v1126, %v1116
    %v1130 = vadd.f32 %v1091, %v1127
    %v1131 = vadd.f32 %v1092, %v1128
    %v1132 = vadd.f32 %v1093, %v1129
    %s1133 = sld [smem:[#allocation2 + $0x4b]]
    %v1134 = vstv %s1133
    %v1135 = vmul.f32 %v1134, %v1114
    %v1136 = vmul.f32 %v1134, %v1115
    %v1137 = vmul.f32 %v1134, %v1116
    %v1138 = vadd.f32 %v1111, %v1135
    %v1139 = vadd.f32 %v1112, %v1136
    %v1140 = vadd.f32 %v1113, %v1137
    %s1141 = sld [smem:[#allocation2 + $0x16]]
    %v1142 = vstv %s1141
    %v1143 = vmul.f32 %v1142, %v1114
    %v1144 = vmul.f32 %v1142, %v1115
    %v1145 = vmul.f32 %v1142, %v1116
    %1149 = vrot.lane.b32.xlu0 %v1143, 127
    %v1150 = vpop.permute.xlu0 %1149
    %1151 = vrot.lane.b32.xlu0 %v1144, 127
    %v1152 = vpop.permute.xlu0 %1151
    %1153 = vrot.lane.b32.xlu0 %v1145, 127
    %v1154 = vpop.permute.xlu0 %1153
    %v1158 = vadd.f32 %v1122, %v1150
    %v1159 = vadd.f32 %v1123, %v1152
    %v1160 = vadd.f32 %v1124, %v1154
    %s1161 = sld [smem:[#allocation2 + $0x31]]
    %v1162 = vstv %s1161
    %v1163 = vmul.f32 %v1162, %v1114
    %v1164 = vmul.f32 %v1162, %v1115
    %v1165 = vmul.f32 %v1162, %v1116
    %1169 = vrot.lane.b32.xlu0 %v1163, 127
    %v1170 = vpop.permute.xlu0 %1169
    %1171 = vrot.lane.b32.xlu0 %v1164, 127
    %v1172 = vpop.permute.xlu0 %1171
    %1173 = vrot.lane.b32.xlu0 %v1165, 127
    %v1174 = vpop.permute.xlu0 %1173
    %v1178 = vadd.f32 %v1130, %v1170
    %v1179 = vadd.f32 %v1131, %v1172
    %v1180 = vadd.f32 %v1132, %v1174
    %s1181 = sld [smem:[#allocation2 + $0x4c]]
    %v1182 = vstv %s1181
    %v1183 = vmul.f32 %v1182, %v1114
    %v1184 = vmul.f32 %v1182, %v1115
    %v1185 = vmul.f32 %v1182, %v1116
    %1189 = vrot.lane.b32.xlu0 %v1183, 127
    %v1190 = vpop.permute.xlu0 %1189
    %1191 = vrot.lane.b32.xlu0 %v1184, 127
    %v1192 = vpop.permute.xlu0 %1191
    %1193 = vrot.lane.b32.xlu0 %v1185, 127
    %v1194 = vpop.permute.xlu0 %1193
    %v1198 = vadd.f32 %v1138, %v1190
    %v1199 = vadd.f32 %v1139, %v1192
    %v1200 = vadd.f32 %v1140, %v1194
    %s1201 = sld [smem:[#allocation2 + $0x17]]
    %v1202 = vstv %s1201
    %v1203 = vmul.f32 %v1202, %v1114
    %v1204 = vmul.f32 %v1202, %v1115
    %v1205 = vmul.f32 %v1202, %v1116
    %1209 = vrot.lane.b32.xlu0 %v1203, 126
    %v1210 = vpop.permute.xlu0 %1209
    %1211 = vrot.lane.b32.xlu0 %v1204, 126
    %v1212 = vpop.permute.xlu0 %1211
    %1213 = vrot.lane.b32.xlu0 %v1205, 126
    %v1214 = vpop.permute.xlu0 %1213
    %v1218 = vadd.f32 %v1158, %v1210
    %v1219 = vadd.f32 %v1159, %v1212
    %v1220 = vadd.f32 %v1160, %v1214
    %s1221 = sld [smem:[#allocation2 + $0x32]]
    %v1222 = vstv %s1221
    %v1223 = vmul.f32 %v1222, %v1114
    %v1224 = vmul.f32 %v1222, %v1115
    %v1225 = vmul.f32 %v1222, %v1116
    %1229 = vrot.lane.b32.xlu0 %v1223, 126
    %v1230 = vpop.permute.xlu0 %1229
    %1231 = vrot.lane.b32.xlu0 %v1224, 126
    %v1232 = vpop.permute.xlu0 %1231
    %1233 = vrot.lane.b32.xlu0 %v1225, 126
    %v1234 = vpop.permute.xlu0 %1233
    %v1238 = vadd.f32 %v1178, %v1230
    %v1239 = vadd.f32 %v1179, %v1232
    %v1240 = vadd.f32 %v1180, %v1234
    %s1241 = sld [smem:[#allocation2 + $0x4d]]
    %v1242 = vstv %s1241
    %v1243 = vmul.f32 %v1242, %v1114
    %v1244 = vmul.f32 %v1242, %v1115
    %v1245 = vmul.f32 %v1242, %v1116
    %1249 = vrot.lane.b32.xlu0 %v1243, 126
    %v1250 = vpop.permute.xlu0 %1249
    %1251 = vrot.lane.b32.xlu0 %v1244, 126
    %v1252 = vpop.permute.xlu0 %1251
    %1253 = vrot.lane.b32.xlu0 %v1245, 126
    %v1254 = vpop.permute.xlu0 %1253
    %v1258 = vadd.f32 %v1198, %v1250
    %v1259 = vadd.f32 %v1199, %v1252
    %v1260 = vadd.f32 %v1200, %v1254
    %v1261 = vld [vmem:[%s966 + $0x2] sm:$0xff]
    %v1262 = vld [vmem:[%s966 + $0xa] sm:$0xff]
    %v1263 = vld [vmem:[%s966 + $0x12] sm:$0x3]
    %s1264 = sld [smem:[#allocation2 + $0x18]]
    %v1265 = vstv %s1264
    %v1266 = vmul.f32 %v1265, %v1261
    %v1267 = vmul.f32 %v1265, %v1262
    %v1268 = vmul.f32 %v1265, %v1263
    %v1269 = vadd.f32 %v1218, %v1266
    %v1270 = vadd.f32 %v1219, %v1267
    %v1271 = vadd.f32 %v1220, %v1268
    %s1272 = sld [smem:[#allocation2 + $0x33]]
    %v1273 = vstv %s1272
    %v1274 = vmul.f32 %v1273, %v1261
    %v1275 = vmul.f32 %v1273, %v1262
    %v1276 = vmul.f32 %v1273, %v1263
    %v1277 = vadd.f32 %v1238, %v1274
    %v1278 = vadd.f32 %v1239, %v1275
    %v1279 = vadd.f32 %v1240, %v1276
    %s1280 = sld [smem:[#allocation2 + $0x4e]]
    %v1281 = vstv %s1280
    %v1282 = vmul.f32 %v1281, %v1261
    %v1283 = vmul.f32 %v1281, %v1262
    %v1284 = vmul.f32 %v1281, %v1263
    %v1285 = vadd.f32 %v1258, %v1282
    %v1286 = vadd.f32 %v1259, %v1283
    %v1287 = vadd.f32 %v1260, %v1284
    %s1288 = sld [smem:[#allocation2 + $0x19]]
    %v1289 = vstv %s1288
    %v1290 = vmul.f32 %v1289, %v1261
    %v1291 = vmul.f32 %v1289, %v1262
    %v1292 = vmul.f32 %v1289, %v1263
    %1296 = vrot.lane.b32.xlu0 %v1290, 127
    %v1297 = vpop.permute.xlu0 %1296
    %1298 = vrot.lane.b32.xlu0 %v1291, 127
    %v1299 = vpop.permute.xlu0 %1298
    %1300 = vrot.lane.b32.xlu0 %v1292, 127
    %v1301 = vpop.permute.xlu0 %1300
    %v1305 = vadd.f32 %v1269, %v1297
    %v1306 = vadd.f32 %v1270, %v1299
    %v1307 = vadd.f32 %v1271, %v1301
    %s1308 = sld [smem:[#allocation2 + $0x34]]
    %v1309 = vstv %s1308
    %v1310 = vmul.f32 %v1309, %v1261
    %v1311 = vmul.f32 %v1309, %v1262
    %v1312 = vmul.f32 %v1309, %v1263
    %1316 = vrot.lane.b32.xlu0 %v1310, 127
    %v1317 = vpop.permute.xlu0 %1316
    %1318 = vrot.lane.b32.xlu0 %v1311, 127
    %v1319 = vpop.permute.xlu0 %1318
    %1320 = vrot.lane.b32.xlu0 %v1312, 127
    %v1321 = vpop.permute.xlu0 %1320
    %v1325 = vadd.f32 %v1277, %v1317
    %v1326 = vadd.f32 %v1278, %v1319
    %v1327 = vadd.f32 %v1279, %v1321
    %s1328 = sld [smem:[#allocation2 + $0x4f]]
    %v1329 = vstv %s1328
    %v1330 = vmul.f32 %v1329, %v1261
    %v1331 = vmul.f32 %v1329, %v1262
    %v1332 = vmul.f32 %v1329, %v1263
    %1336 = vrot.lane.b32.xlu0 %v1330, 127
    %v1337 = vpop.permute.xlu0 %1336
    %1338 = vrot.lane.b32.xlu0 %v1331, 127
    %v1339 = vpop.permute.xlu0 %1338
    %1340 = vrot.lane.b32.xlu0 %v1332, 127
    %v1341 = vpop.permute.xlu0 %1340
    %v1345 = vadd.f32 %v1285, %v1337
    %v1346 = vadd.f32 %v1286, %v1339
    %v1347 = vadd.f32 %v1287, %v1341
    %s1348 = sld [smem:[#allocation2 + $0x1a]]
    %v1349 = vstv %s1348
    %v1350 = vmul.f32 %v1349, %v1261
    %v1351 = vmul.f32 %v1349, %v1262
    %v1352 = vmul.f32 %v1349, %v1263
    %1356 = vrot.lane.b32.xlu0 %v1350, 126
    %v1357 = vpop.permute.xlu0 %1356
    %1358 = vrot.lane.b32.xlu0 %v1351, 126
    %v1359 = vpop.permute.xlu0 %1358
    %1360 = vrot.lane.b32.xlu0 %v1352, 126
    %v1361 = vpop.permute.xlu0 %1360
    %v1365 = vadd.f32 %v1305, %v1357
    %v1366 = vadd.f32 %v1306, %v1359
    %v1367 = vadd.f32 %v1307, %v1361
    %s1368 = sld [smem:[#allocation2 + $0x35]]
    %v1369 = vstv %s1368
    %v1370 = vmul.f32 %v1369, %v1261
    %v1371 = vmul.f32 %v1369, %v1262
    %v1372 = vmul.f32 %v1369, %v1263
    %1376 = vrot.lane.b32.xlu0 %v1370, 126
    %v1377 = vpop.permute.xlu0 %1376
    %1378 = vrot.lane.b32.xlu0 %v1371, 126
    %v1379 = vpop.permute.xlu0 %1378
    %1380 = vrot.lane.b32.xlu0 %v1372, 126
    %v1381 = vpop.permute.xlu0 %1380
    %v1385 = vadd.f32 %v1325, %v1377
    %v1386 = vadd.f32 %v1326, %v1379
    %v1387 = vadd.f32 %v1327, %v1381
    %s1388 = sld [smem:[#allocation2 + $0x50]]
    %v1389 = vstv %s1388
    %v1390 = vmul.f32 %v1389, %v1261
    %v1391 = vmul.f32 %v1389, %v1262
    %v1392 = vmul.f32 %v1389, %v1263
    %1396 = vrot.lane.b32.xlu0 %v1390, 126
    %v1397 = vpop.permute.xlu0 %1396
    %1398 = vrot.lane.b32.xlu0 %v1391, 126
    %v1399 = vpop.permute.xlu0 %1398
    %1400 = vrot.lane.b32.xlu0 %v1392, 126
    %v1401 = vpop.permute.xlu0 %1400
    %v1405 = vadd.f32 %v1345, %v1397
    %v1406 = vadd.f32 %v1346, %v1399
    %v1407 = vadd.f32 %v1347, %v1401
    %v1408 = vmul.f32 %v1365, %v71
    %v1409 = vmul.f32 %v1366, %v72
    %v1410 = vmul.f32 %v1367, %v73
    %v1411 = vmul.f32 %v1385, %v71
    %v1412 = vmul.f32 %v1386, %v72
    %v1413 = vmul.f32 %v1387, %v73
    %v1414 = vmul.f32 %v1405, %v71
    %v1415 = vmul.f32 %v1406, %v72
    %v1416 = vmul.f32 %v1407, %v73
    %s1417 = sld [smem:[#allocation7]]
    %v1418 = vstv %s1417
    %v1419 = vadd.f32 %v1418, 0.0
    %s1420 = sld [smem:[#allocation7 + $0x1]]
    %v1421 = vstv %s1420
    %v1422 = vadd.f32 %v1421, 0.0
    %s1423 = sld [smem:[#allocation7 + $0x2]]
    %v1424 = vstv %s1423
    %v1425 = vadd.f32 %v1424, 0.0
    %s1426 = sld [smem:[#allocation6]]
    %v1427 = vstv %s1426
    %v1428 = vmul.f32 %v1427, %v1408
    %v1429 = vmul.f32 %v1427, %v1409
    %v1430 = vadd.f32 %v1419, %v1428
    %v1431 = vadd.f32 %v1419, %v1429
    %s1432 = sld [smem:[#allocation6 + $0x1b]]
    %v1433 = vstv %s1432
    %v1434 = vmul.f32 %v1433, %v1408
    %v1435 = vmul.f32 %v1433, %v1409
    %v1436 = vadd.f32 %v1422, %v1434
    %v1437 = vadd.f32 %v1422, %v1435
    %s1438 = sld [smem:[#allocation6 + $0x36]]
    %v1439 = vstv %s1438
    %v1440 = vmul.f32 %v1439, %v1408
    %v1441 = vmul.f32 %v1439, %v1409
    %v1442 = vadd.f32 %v1425, %v1440
    %v1443 = vadd.f32 %v1425, %v1441
    %s1444 = sld [smem:[#allocation6 + $0x1]]
    %v1445 = vstv %s1444
    %v1446 = vmul.f32 %v1445, %v1408
    %v1447 = vmul.f32 %v1445, %v1409
    %1450 = vrot.lane.b32.xlu0 %v1446, 127
    %v1451 = vpop.permute.xlu0 %1450
    %1452 = vrot.lane.b32.xlu0 %v1447, 127
    %v1453 = vpop.permute.xlu0 %1452
    %v1456 = vadd.f32 %v1430, %v1451
    %v1457 = vadd.f32 %v1431, %v1453
    %s1458 = sld [smem:[#allocation6 + $0x1c]]
    %v1459 = vstv %s1458
    %v1460 = vmul.f32 %v1459, %v1408
    %v1461 = vmul.f32 %v1459, %v1409
    %1464 = vrot.lane.b32.xlu0 %v1460, 127
    %v1465 = vpop.permute.xlu0 %1464
    %1466 = vrot.lane.b32.xlu0 %v1461, 127
    %v1467 = vpop.permute.xlu0 %1466
    %v1470 = vadd.f32 %v1436, %v1465
    %v1471 = vadd.f32 %v1437, %v1467
    %s1472 = sld [smem:[#allocation6 + $0x37]]
    %v1473 = vstv %s1472
    %v1474 = vmul.f32 %v1473, %v1408
    %v1475 = vmul.f32 %v1473, %v1409
    %1478 = vrot.lane.b32.xlu0 %v1474, 127
    %v1479 = vpop.permute.xlu0 %1478
    %1480 = vrot.lane.b32.xlu0 %v1475, 127
    %v1481 = vpop.permute.xlu0 %1480
    %v1484 = vadd.f32 %v1442, %v1479
    %v1485 = vadd.f32 %v1443, %v1481
    %s1486 = sld [smem:[#allocation6 + $0x2]]
    %v1487 = vstv %s1486
    %v1488 = vmul.f32 %v1487, %v1408
    %v1489 = vmul.f32 %v1487, %v1409
    %1492 = vrot.lane.b32.xlu0 %v1488, 126
    %v1493 = vpop.permute.xlu0 %1492
    %1494 = vrot.lane.b32.xlu0 %v1489, 126
    %v1495 = vpop.permute.xlu0 %1494
    %v1498 = vadd.f32 %v1456, %v1493
    %v1499 = vadd.f32 %v1457, %v1495
    %s1500 = sld [smem:[#allocation6 + $0x1d]]
    %v1501 = vstv %s1500
    %v1502 = vmul.f32 %v1501, %v1408
    %v1503 = vmul.f32 %v1501, %v1409
    %1506 = vrot.lane.b32.xlu0 %v1502, 126
    %v1507 = vpop.permute.xlu0 %1506
    %1508 = vrot.lane.b32.xlu0 %v1503, 126
    %v1509 = vpop.permute.xlu0 %1508
    %v1512 = vadd.f32 %v1470, %v1507
    %v1513 = vadd.f32 %v1471, %v1509
    %s1514 = sld [smem:[#allocation6 + $0x38]]
    %v1515 = vstv %s1514
    %v1516 = vmul.f32 %v1515, %v1408
    %v1517 = vmul.f32 %v1515, %v1409
    %1520 = vrot.lane.b32.xlu0 %v1516, 126
    %v1521 = vpop.permute.xlu0 %1520
    %1522 = vrot.lane.b32.xlu0 %v1517, 126
    %v1523 = vpop.permute.xlu0 %1522
    %v1526 = vadd.f32 %v1484, %v1521
    %v1527 = vadd.f32 %v1485, %v1523
    %s1528 = sld [smem:[#allocation6 + $0x3]]
    %v1529 = vstv %s1528
    %v1530 = vmul.f32 %v1529, %v1408
    %v1531 = vmul.f32 %v1529, %v1409
    %v1532 = vmul.f32 %v1529, %v1410
    %vm1536 = vcmask 1046528
    %v1537 = vrot.slane %v1530, 1
    %v1538 = vrot.slane %v1531, 1
    %v1539 = vsel %vm1536, %v1537, %v1538
    %v1540 = vrot.slane %v1532, 1
    %v1541 = vsel %vm1536, %v1538, %v1540
    %v1544 = vadd.f32 %v1498, %v1539
    %v1545 = vadd.f32 %v1499, %v1541
    %s1546 = sld [smem:[#allocation6 + $0x1e]]
    %v1547 = vstv %s1546
    %v1548 = vmul.f32 %v1547, %v1408
    %v1549 = vmul.f32 %v1547, %v1409
    %v1550 = vmul.f32 %v1547, %v1410
    %v1554 = vrot.slane %v1548, 1
    %v1555 = vrot.slane %v1549, 1
    %v1556 = vsel %vm1536, %v1554, %v1555
    %v1557 = vrot.slane %v1550, 1
    %v1558 = vsel %vm1536, %v1555, %v1557
    %v1561 = vadd.f32 %v1512, %v1556
    %v1562 = vadd.f32 %v1513, %v1558
    %s1563 = sld [smem:[#allocation6 + $0x39]]
    %v1564 = vstv %s1563
    %v1565 = vmul.f32 %v1564, %v1408
    %v1566 = vmul.f32 %v1564, %v1409
    %v1567 = vmul.f32 %v1564, %v1410
    %v1571 = vrot.slane %v1565, 1
    %v1572 = vrot.slane %v1566, 1
    %v1573 = vsel %vm1536, %v1571, %v1572
    %v1574 = vrot.slane %v1567, 1
    %v1575 = vsel %vm1536, %v1572, %v1574
    %v1578 = vadd.f32 %v1526, %v1573
    %v1579 = vadd.f32 %v1527, %v1575
    %s1580 = sld [smem:[#allocation6 + $0x4]]
    %v1581 = vstv %s1580
    %v1582 = vmul.f32 %v1581, %v1408
    %v1583 = vmul.f32 %v1581, %v1409
    %v1584 = vmul.f32 %v1581, %v1410
    %v1588 = vrot.slane %v1582, 1
    %v1589 = vrot.slane %v1583, 1
    %v1590 = vsel %vm1536, %v1588, %v1589
    %v1591 = vrot.slane %v1584, 1
    %v1592 = vsel %vm1536, %v1589, %v1591
    %1593 = vrot.lane.b32.xlu0 %v1590, 127
    %v1594 = vpop.permute.xlu0 %1593
    %1595 = vrot.lane.b32.xlu0 %v1592, 127
    %v1596 = vpop.permute.xlu0 %1595
    %v1599 = vadd.f32 %v1544, %v1594
    %v1600 = vadd.f32 %v1545, %v1596
    %s1601 = sld [smem:[#allocation6 + $0x1f]]
    %v1602 = vstv %s1601
    %v1603 = vmul.f32 %v1602, %v1408
    %v1604 = vmul.f32 %v1602, %v1409
    %v1605 = vmul.f32 %v1602, %v1410
    %v1609 = vrot.slane %v1603, 1
    %v1610 = vrot.slane %v1604, 1
    %v1611 = vsel %vm1536, %v1609, %v1610
    %v1612 = vrot.slane %v1605, 1
    %v1613 = vsel %vm1536, %v1610, %v1612
    %1614 = vrot.lane.b32.xlu0 %v1611, 127
    %v1615 = vpop.permute.xlu0 %1614
    %1616 = vrot.lane.b32.xlu0 %v1613, 127
    %v1617 = vpop.permute.xlu0 %1616
    %v1620 = vadd.f32 %v1561, %v1615
    %v1621 = vadd.f32 %v1562, %v1617
    %s1622 = sld [smem:[#allocation6 + $0x3a]]
    %v1623 = vstv %s1622
    %v1624 = vmul.f32 %v1623, %v1408
    %v1625 = vmul.f32 %v1623, %v1409
    %v1626 = vmul.f32 %v1623, %v1410
    %v1630 = vrot.slane %v1624, 1
    %v1631 = vrot.slane %v1625, 1
    %v1632 = vsel %vm1536, %v1630, %v1631
    %v1633 = vrot.slane %v1626, 1
    %v1634 = vsel %vm1536, %v1631, %v1633
    %1635 = vrot.lane.b32.xlu0 %v1632, 127
    %v1636 = vpop.permute.xlu0 %1635
    %1637 = vrot.lane.b32.xlu0 %v1634, 127
    %v1638 = vpop.permute.xlu0 %1637
    %v1641 = vadd.f32 %v1578, %v1636
    %v1642 = vadd.f32 %v1579, %v1638
    %s1643 = sld [smem:[#allocation6 + $0x5]]
    %v1644 = vstv %s1643
    %v1645 = vmul.f32 %v1644, %v1408
    %v1646 = vmul.f32 %v1644, %v1409
    %v1647 = vmul.f32 %v1644, %v1410
    %v1651 = vrot.slane %v1645, 1
    %v1652 = vrot.slane %v1646, 1
    %v1653 = vsel %vm1536, %v1651, %v1652
    %v1654 = vrot.slane %v1647, 1
    %v1655 = vsel %vm1536, %v1652, %v1654
    %1656 = vrot.lane.b32.xlu0 %v1653, 126
    %v1657 = vpop.permute.xlu0 %1656
    %1658 = vrot.lane.b32.xlu0 %v1655, 126
    %v1659 = vpop.permute.xlu0 %1658
    %v1662 = vadd.f32 %v1599, %v1657
    %v1663 = vadd.f32 %v1600, %v1659
    %s1664 = sld [smem:[#allocation6 + $0x20]]
    %v1665 = vstv %s1664
    %v1666 = vmul.f32 %v1665, %v1408
    %v1667 = vmul.f32 %v1665, %v1409
    %v1668 = vmul.f32 %v1665, %v1410
    %v1672 = vrot.slane %v1666, 1
    %v1673 = vrot.slane %v1667, 1
    %v1674 = vsel %vm1536, %v1672, %v1673
    %v1675 = vrot.slane %v1668, 1
    %v1676 = vsel %vm1536, %v1673, %v1675
    %1677 = vrot.lane.b32.xlu0 %v1674, 126
    %v1678 = vpop.permute.xlu0 %1677
    %1679 = vrot.lane.b32.xlu0 %v1676, 126
    %v1680 = vpop.permute.xlu0 %1679
    %v1683 = vadd.f32 %v1620, %v1678
    %v1684 = vadd.f32 %v1621, %v1680
    %s1685 = sld [smem:[#allocation6 + $0x3b]]
    %v1686 = vstv %s1685
    %v1687 = vmul.f32 %v1686, %v1408
    %v1688 = vmul.f32 %v1686, %v1409
    %v1689 = vmul.f32 %v1686, %v1410
    %v1693 = vrot.slane %v1687, 1
    %v1694 = vrot.slane %v1688, 1
    %v1695 = vsel %vm1536, %v1693, %v1694
    %v1696 = vrot.slane %v1689, 1
    %v1697 = vsel %vm1536, %v1694, %v1696
    %1698 = vrot.lane.b32.xlu0 %v1695, 126
    %v1699 = vpop.permute.xlu0 %1698
    %1700 = vrot.lane.b32.xlu0 %v1697, 126
    %v1701 = vpop.permute.xlu0 %1700
    %v1704 = vadd.f32 %v1641, %v1699
    %v1705 = vadd.f32 %v1642, %v1701
    %s1706 = sld [smem:[#allocation6 + $0x6]]
    %v1707 = vstv %s1706
    %v1708 = vmul.f32 %v1707, %v1408
    %v1709 = vmul.f32 %v1707, %v1409
    %v1710 = vmul.f32 %v1707, %v1410
    %vm1714 = vcmask 1045504
    %v1715 = vrot.slane %v1708, 2
    %v1716 = vrot.slane %v1709, 2
    %v1717 = vsel %vm1714, %v1715, %v1716
    %v1718 = vrot.slane %v1710, 2
    %v1719 = vsel %vm1714, %v1716, %v1718
    %v1722 = vadd.f32 %v1662, %v1717
    %v1723 = vadd.f32 %v1663, %v1719
    %s1724 = sld [smem:[#allocation6 + $0x21]]
    %v1725 = vstv %s1724
    %v1726 = vmul.f32 %v1725, %v1408
    %v1727 = vmul.f32 %v1725, %v1409
    %v1728 = vmul.f32 %v1725, %v1410
    %v1732 = vrot.slane %v1726, 2
    %v1733 = vrot.slane %v1727, 2
    %v1734 = vsel %vm1714, %v1732, %v1733
    %v1735 = vrot.slane %v1728, 2
    %v1736 = vsel %vm1714, %v1733, %v1735
    %v1739 = vadd.f32 %v1683, %v1734
    %v1740 = vadd.f32 %v1684, %v1736
    %s1741 = sld [smem:[#allocation6 + $0x3c]]
    %v1742 = vstv %s1741
    %v1743 = vmul.f32 %v1742, %v1408
    %v1744 = vmul.f32 %v1742, %v1409
    %v1745 = vmul.f32 %v1742, %v1410
    %v1749 = vrot.slane %v1743, 2
    %v1750 = vrot.slane %v1744, 2
    %v1751 = vsel %vm1714, %v1749, %v1750
    %v1752 = vrot.slane %v1745, 2
    %v1753 = vsel %vm1714, %v1750, %v1752
    %v1756 = vadd.f32 %v1704, %v1751
    %v1757 = vadd.f32 %v1705, %v1753
    %s1758 = sld [smem:[#allocation6 + $0x7]]
    %v1759 = vstv %s1758
    %v1760 = vmul.f32 %v1759, %v1408
    %v1761 = vmul.f32 %v1759, %v1409
    %v1762 = vmul.f32 %v1759, %v1410
    %v1766 = vrot.slane %v1760, 2
    %v1767 = vrot.slane %v1761, 2
    %v1768 = vsel %vm1714, %v1766, %v1767
    %v1769 = vrot.slane %v1762, 2
    %v1770 = vsel %vm1714, %v1767, %v1769
    %1771 = vrot.lane.b32.xlu0 %v1768, 127
    %v1772 = vpop.permute.xlu0 %1771
    %1773 = vrot.lane.b32.xlu0 %v1770, 127
    %v1774 = vpop.permute.xlu0 %1773
    %v1777 = vadd.f32 %v1722, %v1772
    %v1778 = vadd.f32 %v1723, %v1774
    %s1779 = sld [smem:[#allocation6 + $0x22]]
    %v1780 = vstv %s1779
    %v1781 = vmul.f32 %v1780, %v1408
    %v1782 = vmul.f32 %v1780, %v1409
    %v1783 = vmul.f32 %v1780, %v1410
    %v1787 = vrot.slane %v1781, 2
    %v1788 = vrot.slane %v1782, 2
    %v1789 = vsel %vm1714, %v1787, %v1788
    %v1790 = vrot.slane %v1783, 2
    %v1791 = vsel %vm1714, %v1788, %v1790
    %1792 = vrot.lane.b32.xlu0 %v1789, 127
    %v1793 = vpop.permute.xlu0 %1792
    %1794 = vrot.lane.b32.xlu0 %v1791, 127
    %v1795 = vpop.permute.xlu0 %1794
    %v1798 = vadd.f32 %v1739, %v1793
    %v1799 = vadd.f32 %v1740, %v1795
    %s1800 = sld [smem:[#allocation6 + $0x3d]]
    %v1801 = vstv %s1800
    %v1802 = vmul.f32 %v1801, %v1408
    %v1803 = vmul.f32 %v1801, %v1409
    %v1804 = vmul.f32 %v1801, %v1410
    %v1808 = vrot.slane %v1802, 2
    %v1809 = vrot.slane %v1803, 2
    %v1810 = vsel %vm1714, %v1808, %v1809
    %v1811 = vrot.slane %v1804, 2
    %v1812 = vsel %vm1714, %v1809, %v1811
    %1813 = vrot.lane.b32.xlu0 %v1810, 127
    %v1814 = vpop.permute.xlu0 %1813
    %1815 = vrot.lane.b32.xlu0 %v1812, 127
    %v1816 = vpop.permute.xlu0 %1815
    %v1819 = vadd.f32 %v1756, %v1814
    %v1820 = vadd.f32 %v1757, %v1816
    %s1821 = sld [smem:[#allocation6 + $0x8]]
    %v1822 = vstv %s1821
    %v1823 = vmul.f32 %v1822, %v1408
    %v1824 = vmul.f32 %v1822, %v1409
    %v1825 = vmul.f32 %v1822, %v1410
    %v1829 = vrot.slane %v1823, 2
    %v1830 = vrot.slane %v1824, 2
    %v1831 = vsel %vm1714, %v1829, %v1830
    %v1832 = vrot.slane %v1825, 2
    %v1833 = vsel %vm1714, %v1830, %v1832
    %1834 = vrot.lane.b32.xlu0 %v1831, 126
    %v1835 = vpop.permute.xlu0 %1834
    %1836 = vrot.lane.b32.xlu0 %v1833, 126
    %v1837 = vpop.permute.xlu0 %1836
    %v1840 = vadd.f32 %v1777, %v1835
    %v1841 = vadd.f32 %v1778, %v1837
    %s1842 = sld [smem:[#allocation6 + $0x23]]
    %v1843 = vstv %s1842
    %v1844 = vmul.f32 %v1843, %v1408
    %v1845 = vmul.f32 %v1843, %v1409
    %v1846 = vmul.f32 %v1843, %v1410
    %v1850 = vrot.slane %v1844, 2
    %v1851 = vrot.slane %v1845, 2
    %v1852 = vsel %vm1714, %v1850, %v1851
    %v1853 = vrot.slane %v1846, 2
    %v1854 = vsel %vm1714, %v1851, %v1853
    %1855 = vrot.lane.b32.xlu0 %v1852, 126
    %v1856 = vpop.permute.xlu0 %1855
    %1857 = vrot.lane.b32.xlu0 %v1854, 126
    %v1858 = vpop.permute.xlu0 %1857
    %v1861 = vadd.f32 %v1798, %v1856
    %v1862 = vadd.f32 %v1799, %v1858
    %s1863 = sld [smem:[#allocation6 + $0x3e]]
    %v1864 = vstv %s1863
    %v1865 = vmul.f32 %v1864, %v1408
    %v1866 = vmul.f32 %v1864, %v1409
    %v1867 = vmul.f32 %v1864, %v1410
    %v1871 = vrot.slane %v1865, 2
    %v1872 = vrot.slane %v1866, 2
    %v1873 = vsel %vm1714, %v1871, %v1872
    %v1874 = vrot.slane %v1867, 2
    %v1875 = vsel %vm1714, %v1872, %v1874
    %1876 = vrot.lane.b32.xlu0 %v1873, 126
    %v1877 = vpop.permute.xlu0 %1876
    %1878 = vrot.lane.b32.xlu0 %v1875, 126
    %v1879 = vpop.permute.xlu0 %1878
    %v1882 = vadd.f32 %v1819, %v1877
    %v1883 = vadd.f32 %v1820, %v1879
    %s1884 = sld [smem:[#allocation6 + $0x9]]
    %v1885 = vstv %s1884
    %v1886 = vmul.f32 %v1885, %v1411
    %v1887 = vmul.f32 %v1885, %v1412
    %v1888 = vadd.f32 %v1840, %v1886
    %v1889 = vadd.f32 %v1841, %v1887
    %s1890 = sld [smem:[#allocation6 + $0x24]]
    %v1891 = vstv %s1890
    %v1892 = vmul.f32 %v1891, %v1411
    %v1893 = vmul.f32 %v1891, %v1412
    %v1894 = vadd.f32 %v1861, %v1892
    %v1895 = vadd.f32 %v1862, %v1893
    %s1896 = sld [smem:[#allocation6 + $0x3f]]
    %v1897 = vstv %s1896
    %v1898 = vmul.f32 %v1897, %v1411
    %v1899 = vmul.f32 %v1897, %v1412
    %v1900 = vadd.f32 %v1882, %v1898
    %v1901 = vadd.f32 %v1883, %v1899
    %s1902 = sld [smem:[#allocation6 + $0xa]]
    %v1903 = vstv %s1902
    %v1904 = vmul.f32 %v1903, %v1411
    %v1905 = vmul.f32 %v1903, %v1412
    %1908 = vrot.lane.b32.xlu0 %v1904, 127
    %v1909 = vpop.permute.xlu0 %1908
    %1910 = vrot.lane.b32.xlu0 %v1905, 127
    %v1911 = vpop.permute.xlu0 %1910
    %v1914 = vadd.f32 %v1888, %v1909
    %v1915 = vadd.f32 %v1889, %v1911
    %s1916 = sld [smem:[#allocation6 + $0x25]]
    %v1917 = vstv %s1916
    %v1918 = vmul.f32 %v1917, %v1411
    %v1919 = vmul.f32 %v1917, %v1412
    %1922 = vrot.lane.b32.xlu0 %v1918, 127
    %v1923 = vpop.permute.xlu0 %1922
    %1924 = vrot.lane.b32.xlu0 %v1919, 127
    %v1925 = vpop.permute.xlu0 %1924
    %v1928 = vadd.f32 %v1894, %v1923
    %v1929 = vadd.f32 %v1895, %v1925
    %s1930 = sld [smem:[#allocation6 + $0x40]]
    %v1931 = vstv %s1930
    %v1932 = vmul.f32 %v1931, %v1411
    %v1933 = vmul.f32 %v1931, %v1412
    %1936 = vrot.lane.b32.xlu0 %v1932, 127
    %v1937 = vpop.permute.xlu0 %1936
    %1938 = vrot.lane.b32.xlu0 %v1933, 127
    %v1939 = vpop.permute.xlu0 %1938
    %v1942 = vadd.f32 %v1900, %v1937
    %v1943 = vadd.f32 %v1901, %v1939
    %s1944 = sld [smem:[#allocation6 + $0xb]]
    %v1945 = vstv %s1944
    %v1946 = vmul.f32 %v1945, %v1411
    %v1947 = vmul.f32 %v1945, %v1412
    %1950 = vrot.lane.b32.xlu0 %v1946, 126
    %v1951 = vpop.permute.xlu0 %1950
    %1952 = vrot.lane.b32.xlu0 %v1947, 126
    %v1953 = vpop.permute.xlu0 %1952
    %v1956 = vadd.f32 %v1914, %v1951
    %v1957 = vadd.f32 %v1915, %v1953
    %s1958 = sld [smem:[#allocation6 + $0x26]]
    %v1959 = vstv %s1958
    %v1960 = vmul.f32 %v1959, %v1411
    %v1961 = vmul.f32 %v1959, %v1412
    %1964 = vrot.lane.b32.xlu0 %v1960, 126
    %v1965 = vpop.permute.xlu0 %1964
    %1966 = vrot.lane.b32.xlu0 %v1961, 126
    %v1967 = vpop.permute.xlu0 %1966
    %v1970 = vadd.f32 %v1928, %v1965
    %v1971 = vadd.f32 %v1929, %v1967
    %s1972 = sld [smem:[#allocation6 + $0x41]]
    %v1973 = vstv %s1972
    %v1974 = vmul.f32 %v1973, %v1411
    %v1975 = vmul.f32 %v1973, %v1412
    %1978 = vrot.lane.b32.xlu0 %v1974, 126
    %v1979 = vpop.permute.xlu0 %1978
    %1980 = vrot.lane.b32.xlu0 %v1975, 126
    %v1981 = vpop.permute.xlu0 %1980
    %v1984 = vadd.f32 %v1942, %v1979
    %v1985 = vadd.f32 %v1943, %v1981
    %s1986 = sld [smem:[#allocation6 + $0xc]]
    %v1987 = vstv %s1986
    %v1988 = vmul.f32 %v1987, %v1411
    %v1989 = vmul.f32 %v1987, %v1412
    %v1990 = vmul.f32 %v1987, %v1413
    %v1994 = vrot.slane %v1988, 1
    %v1995 = vrot.slane %v1989, 1
    %v1996 = vsel %vm1536, %v1994, %v1995
    %v1997 = vrot.slane %v1990, 1
    %v1998 = vsel %vm1536, %v1995, %v1997
    %v2001 = vadd.f32 %v1956, %v1996
    %v2002 = vadd.f32 %v1957, %v1998
    %s2003 = sld [smem:[#allocation6 + $0x27]]
    %v2004 = vstv %s2003
    %v2005 = vmul.f32 %v2004, %v1411
    %v2006 = vmul.f32 %v2004, %v1412
    %v2007 = vmul.f32 %v2004, %v1413
    %v2011 = vrot.slane %v2005, 1
    %v2012 = vrot.slane %v2006, 1
    %v2013 = vsel %vm1536, %v2011, %v2012
    %v2014 = vrot.slane %v2007, 1
    %v2015 = vsel %vm1536, %v2012, %v2014
    %v2018 = vadd.f32 %v1970, %v2013
    %v2019 = vadd.f32 %v1971, %v2015
    %s2020 = sld [smem:[#allocation6 + $0x42]]
    %v2021 = vstv %s2020
    %v2022 = vmul.f32 %v2021, %v1411
    %v2023 = vmul.f32 %v2021, %v1412
    %v2024 = vmul.f32 %v2021, %v1413
    %v2028 = vrot.slane %v2022, 1
    %v2029 = vrot.slane %v2023, 1
    %v2030 = vsel %vm1536, %v2028, %v2029
    %v2031 = vrot.slane %v2024, 1
    %v2032 = vsel %vm1536, %v2029, %v2031
    %v2035 = vadd.f32 %v1984, %v2030
    %v2036 = vadd.f32 %v1985, %v2032
    %s2037 = sld [smem:[#allocation6 + $0xd]]
    %v2038 = vstv %s2037
    %v2039 = vmul.f32 %v2038, %v1411
    %v2040 = vmul.f32 %v2038, %v1412
    %v2041 = vmul.f32 %v2038, %v1413
    %v2045 = vrot.slane %v2039, 1
    %v2046 = vrot.slane %v2040, 1
    %v2047 = vsel %vm1536, %v2045, %v2046
    %v2048 = vrot.slane %v2041, 1
    %v2049 = vsel %vm1536, %v2046, %v2048
    %2050 = vrot.lane.b32.xlu0 %v2047, 127
    %v2051 = vpop.permute.xlu0 %2050
    %2052 = vrot.lane.b32.xlu0 %v2049, 127
    %v2053 = vpop.permute.xlu0 %2052
    %v2056 = vadd.f32 %v2001, %v2051
    %v2057 = vadd.f32 %v2002, %v2053
    %s2058 = sld [smem:[#allocation6 + $0x28]]
    %v2059 = vstv %s2058
    %v2060 = vmul.f32 %v2059, %v1411
    %v2061 = vmul.f32 %v2059, %v1412
    %v2062 = vmul.f32 %v2059, %v1413
    %v2066 = vrot.slane %v2060, 1
    %v2067 = vrot.slane %v2061, 1
    %v2068 = vsel %vm1536, %v2066, %v2067
    %v2069 = vrot.slane %v2062, 1
    %v2070 = vsel %vm1536, %v2067, %v2069
    %2071 = vrot.lane.b32.xlu0 %v2068, 127
    %v2072 = vpop.permute.xlu0 %2071
    %2073 = vrot.lane.b32.xlu0 %v2070, 127
    %v2074 = vpop.permute.xlu0 %2073
    %v2077 = vadd.f32 %v2018, %v2072
    %v2078 = vadd.f32 %v2019, %v2074
    %s2079 = sld [smem:[#allocation6 + $0x43]]
    %v2080 = vstv %s2079
    %v2081 = vmul.f32 %v2080, %v1411
    %v2082 = vmul.f32 %v2080, %v1412
    %v2083 = vmul.f32 %v2080, %v1413
    %v2087 = vrot.slane %v2081, 1
    %v2088 = vrot.slane %v2082, 1
    %v2089 = vsel %vm1536, %v2087, %v2088
    %v2090 = vrot.slane %v2083, 1
    %v2091 = vsel %vm1536, %v2088, %v2090
    %2092 = vrot.lane.b32.xlu0 %v2089, 127
    %v2093 = vpop.permute.xlu0 %2092
    %2094 = vrot.lane.b32.xlu0 %v2091, 127
    %v2095 = vpop.permute.xlu0 %2094
    %v2098 = vadd.f32 %v2035, %v2093
    %v2099 = vadd.f32 %v2036, %v2095
    %s2100 = sld [smem:[#allocation6 + $0xe]]
    %v2101 = vstv %s2100
    %v2102 = vmul.f32 %v2101, %v1411
    %v2103 = vmul.f32 %v2101, %v1412
    %v2104 = vmul.f32 %v2101, %v1413
    %v2108 = vrot.slane %v2102, 1
    %v2109 = vrot.slane %v2103, 1
    %v2110 = vsel %vm1536, %v2108, %v2109
    %v2111 = vrot.slane %v2104, 1
    %v2112 = vsel %vm1536, %v2109, %v2111
    %2113 = vrot.lane.b32.xlu0 %v2110, 126
    %v2114 = vpop.permute.xlu0 %2113
    %2115 = vrot.lane.b32.xlu0 %v2112, 126
    %v2116 = vpop.permute.xlu0 %2115
    %v2119 = vadd.f32 %v2056, %v2114
    %v2120 = vadd.f32 %v2057, %v2116
    %s2121 = sld [smem:[#allocation6 + $0x29]]
    %v2122 = vstv %s2121
    %v2123 = vmul.f32 %v2122, %v1411
    %v2124 = vmul.f32 %v2122, %v1412
    %v2125 = vmul.f32 %v2122, %v1413
    %v2129 = vrot.slane %v2123, 1
    %v2130 = vrot.slane %v2124, 1
    %v2131 = vsel %vm1536, %v2129, %v2130
    %v2132 = vrot.slane %v2125, 1
    %v2133 = vsel %vm1536, %v2130, %v2132
    %2134 = vrot.lane.b32.xlu0 %v2131, 126
    %v2135 = vpop.permute.xlu0 %2134
    %2136 = vrot.lane.b32.xlu0 %v2133, 126
    %v2137 = vpop.permute.xlu0 %2136
    %v2140 = vadd.f32 %v2077, %v2135
    %v2141 = vadd.f32 %v2078, %v2137
    %s2142 = sld [smem:[#allocation6 + $0x44]]
    %v2143 = vstv %s2142
    %v2144 = vmul.f32 %v2143, %v1411
    %v2145 = vmul.f32 %v2143, %v1412
    %v2146 = vmul.f32 %v2143, %v1413
    %v2150 = vrot.slane %v2144, 1
    %v2151 = vrot.slane %v2145, 1
    %v2152 = vsel %vm1536, %v2150, %v2151
    %v2153 = vrot.slane %v2146, 1
    %v2154 = vsel %vm1536, %v2151, %v2153
    %2155 = vrot.lane.b32.xlu0 %v2152, 126
    %v2156 = vpop.permute.xlu0 %2155
    %2157 = vrot.lane.b32.xlu0 %v2154, 126
    %v2158 = vpop.permute.xlu0 %2157
    %v2161 = vadd.f32 %v2098, %v2156
    %v2162 = vadd.f32 %v2099, %v2158
    %s2163 = sld [smem:[#allocation6 + $0xf]]
    %v2164 = vstv %s2163
    %v2165 = vmul.f32 %v2164, %v1411
    %v2166 = vmul.f32 %v2164, %v1412
    %v2167 = vmul.f32 %v2164, %v1413
    %v2171 = vrot.slane %v2165, 2
    %v2172 = vrot.slane %v2166, 2
    %v2173 = vsel %vm1714, %v2171, %v2172
    %v2174 = vrot.slane %v2167, 2
    %v2175 = vsel %vm1714, %v2172, %v2174
    %v2178 = vadd.f32 %v2119, %v2173
    %v2179 = vadd.f32 %v2120, %v2175
    %s2180 = sld [smem:[#allocation6 + $0x2a]]
    %v2181 = vstv %s2180
    %v2182 = vmul.f32 %v2181, %v1411
    %v2183 = vmul.f32 %v2181, %v1412
    %v2184 = vmul.f32 %v2181, %v1413
    %v2188 = vrot.slane %v2182, 2
    %v2189 = vrot.slane %v2183, 2
    %v2190 = vsel %vm1714, %v2188, %v2189
    %v2191 = vrot.slane %v2184, 2
    %v2192 = vsel %vm1714, %v2189, %v2191
    %v2195 = vadd.f32 %v2140, %v2190
    %v2196 = vadd.f32 %v2141, %v2192
    %s2197 = sld [smem:[#allocation6 + $0x45]]
    %v2198 = vstv %s2197
    %v2199 = vmul.f32 %v2198, %v1411
    %v2200 = vmul.f32 %v2198, %v1412
    %v2201 = vmul.f32 %v2198, %v1413
    %v2205 = vrot.slane %v2199, 2
    %v2206 = vrot.slane %v2200, 2
    %v2207 = vsel %vm1714, %v2205, %v2206
    %v2208 = vrot.slane %v2201, 2
    %v2209 = vsel %vm1714, %v2206, %v2208
    %v2212 = vadd.f32 %v2161, %v2207
    %v2213 = vadd.f32 %v2162, %v2209
    %s2214 = sld [smem:[#allocation6 + $0x10]]
    %v2215 = vstv %s2214
    %v2216 = vmul.f32 %v2215, %v1411
    %v2217 = vmul.f32 %v2215, %v1412
    %v2218 = vmul.f32 %v2215, %v1413
    %v2222 = vrot.slane %v2216, 2
    %v2223 = vrot.slane %v2217, 2
    %v2224 = vsel %vm1714, %v2222, %v2223
    %v2225 = vrot.slane %v2218, 2
    %v2226 = vsel %vm1714, %v2223, %v2225
    %2227 = vrot.lane.b32.xlu0 %v2224, 127
    %v2228 = vpop.permute.xlu0 %2227
    %2229 = vrot.lane.b32.xlu0 %v2226, 127
    %v2230 = vpop.permute.xlu0 %2229
    %v2233 = vadd.f32 %v2178, %v2228
    %v2234 = vadd.f32 %v2179, %v2230
    %s2235 = sld [smem:[#allocation6 + $0x2b]]
    %v2236 = vstv %s2235
    %v2237 = vmul.f32 %v2236, %v1411
    %v2238 = vmul.f32 %v2236, %v1412
    %v2239 = vmul.f32 %v2236, %v1413
    %v2243 = vrot.slane %v2237, 2
    %v2244 = vrot.slane %v2238, 2
    %v2245 = vsel %vm1714, %v2243, %v2244
    %v2246 = vrot.slane %v2239, 2
    %v2247 = vsel %vm1714, %v2244, %v2246
    %2248 = vrot.lane.b32.xlu0 %v2245, 127
    %v2249 = vpop.permute.xlu0 %2248
    %2250 = vrot.lane.b32.xlu0 %v2247, 127
    %v2251 = vpop.permute.xlu0 %2250
    %v2254 = vadd.f32 %v2195, %v2249
    %v2255 = vadd.f32 %v2196, %v2251
    %s2256 = sld [smem:[#allocation6 + $0x46]]
    %v2257 = vstv %s2256
    %v2258 = vmul.f32 %v2257, %v1411
    %v2259 = vmul.f32 %v2257, %v1412
    %v2260 = vmul.f32 %v2257, %v1413
    %v2264 = vrot.slane %v2258, 2
    %v2265 = vrot.slane %v2259, 2
    %v2266 = vsel %vm1714, %v2264, %v2265
    %v2267 = vrot.slane %v2260, 2
    %v2268 = vsel %vm1714, %v2265, %v2267
    %2269 = vrot.lane.b32.xlu0 %v2266, 127
    %v2270 = vpop.permute.xlu0 %2269
    %2271 = vrot.lane.b32.xlu0 %v2268, 127
    %v2272 = vpop.permute.xlu0 %2271
    %v2275 = vadd.f32 %v2212, %v2270
    %v2276 = vadd.f32 %v2213, %v2272
    %s2277 = sld [smem:[#allocation6 + $0x11]]
    %v2278 = vstv %s2277
    %v2279 = vmul.f32 %v2278, %v1411
    %v2280 = vmul.f32 %v2278, %v1412
    %v2281 = vmul.f32 %v2278, %v1413
    %v2285 = vrot.slane %v2279, 2
    %v2286 = vrot.slane %v2280, 2
    %v2287 = vsel %vm1714, %v2285, %v2286
    %v2288 = vrot.slane %v2281, 2
    %v2289 = vsel %vm1714, %v2286, %v2288
    %2290 = vrot.lane.b32.xlu0 %v2287, 126
    %v2291 = vpop.permute.xlu0 %2290
    %2292 = vrot.lane.b32.xlu0 %v2289, 126
    %v2293 = vpop.permute.xlu0 %2292
    %v2296 = vadd.f32 %v2233, %v2291
    %v2297 = vadd.f32 %v2234, %v2293
    %s2298 = sld [smem:[#allocation6 + $0x2c]]
    %v2299 = vstv %s2298
    %v2300 = vmul.f32 %v2299, %v1411
    %v2301 = vmul.f32 %v2299, %v1412
    %v2302 = vmul.f32 %v2299, %v1413
    %v2306 = vrot.slane %v2300, 2
    %v2307 = vrot.slane %v2301, 2
    %v2308 = vsel %vm1714, %v2306, %v2307
    %v2309 = vrot.slane %v2302, 2
    %v2310 = vsel %vm1714, %v2307, %v2309
    %2311 = vrot.lane.b32.xlu0 %v2308, 126
    %v2312 = vpop.permute.xlu0 %2311
    %2313 = vrot.lane.b32.xlu0 %v2310, 126
    %v2314 = vpop.permute.xlu0 %2313
    %v2317 = vadd.f32 %v2254, %v2312
    %v2318 = vadd.f32 %v2255, %v2314
    %s2319 = sld [smem:[#allocation6 + $0x47]]
    %v2320 = vstv %s2319
    %v2321 = vmul.f32 %v2320, %v1411
    %v2322 = vmul.f32 %v2320, %v1412
    %v2323 = vmul.f32 %v2320, %v1413
    %v2327 = vrot.slane %v2321, 2
    %v2328 = vrot.slane %v2322, 2
    %v2329 = vsel %vm1714, %v2327, %v2328
    %v2330 = vrot.slane %v2323, 2
    %v2331 = vsel %vm1714, %v2328, %v2330
    %2332 = vrot.lane.b32.xlu0 %v2329, 126
    %v2333 = vpop.permute.xlu0 %2332
    %2334 = vrot.lane.b32.xlu0 %v2331, 126
    %v2335 = vpop.permute.xlu0 %2334
    %v2338 = vadd.f32 %v2275, %v2333
    %v2339 = vadd.f32 %v2276, %v2335
    %s2340 = sld [smem:[#allocation6 + $0x12]]
    %v2341 = vstv %s2340
    %v2342 = vmul.f32 %v2341, %v1414
    %v2343 = vmul.f32 %v2341, %v1415
    %v2344 = vadd.f32 %v2296, %v2342
    %v2345 = vadd.f32 %v2297, %v2343
    %s2346 = sld [smem:[#allocation6 + $0x2d]]
    %v2347 = vstv %s2346
    %v2348 = vmul.f32 %v2347, %v1414
    %v2349 = vmul.f32 %v2347, %v1415
    %v2350 = vadd.f32 %v2317, %v2348
    %v2351 = vadd.f32 %v2318, %v2349
    %s2352 = sld [smem:[#allocation6 + $0x48]]
    %v2353 = vstv %s2352
    %v2354 = vmul.f32 %v2353, %v1414
    %v2355 = vmul.f32 %v2353, %v1415
    %v2356 = vadd.f32 %v2338, %v2354
    %v2357 = vadd.f32 %v2339, %v2355
    %s2358 = sld [smem:[#allocation6 + $0x13]]
    %v2359 = vstv %s2358
    %v2360 = vmul.f32 %v2359, %v1414
    %v2361 = vmul.f32 %v2359, %v1415
    %2364 = vrot.lane.b32.xlu0 %v2360, 127
    %v2365 = vpop.permute.xlu0 %2364
    %2366 = vrot.lane.b32.xlu0 %v2361, 127
    %v2367 = vpop.permute.xlu0 %2366
    %v2370 = vadd.f32 %v2344, %v2365
    %v2371 = vadd.f32 %v2345, %v2367
    %s2372 = sld [smem:[#allocation6 + $0x2e]]
    %v2373 = vstv %s2372
    %v2374 = vmul.f32 %v2373, %v1414
    %v2375 = vmul.f32 %v2373, %v1415
    %2378 = vrot.lane.b32.xlu0 %v2374, 127
    %v2379 = vpop.permute.xlu0 %2378
    %2380 = vrot.lane.b32.xlu0 %v2375, 127
    %v2381 = vpop.permute.xlu0 %2380
    %v2384 = vadd.f32 %v2350, %v2379
    %v2385 = vadd.f32 %v2351, %v2381
    %s2386 = sld [smem:[#allocation6 + $0x49]]
    %v2387 = vstv %s2386
    %v2388 = vmul.f32 %v2387, %v1414
    %v2389 = vmul.f32 %v2387, %v1415
    %2392 = vrot.lane.b32.xlu0 %v2388, 127
    %v2393 = vpop.permute.xlu0 %2392
    %2394 = vrot.lane.b32.xlu0 %v2389, 127
    %v2395 = vpop.permute.xlu0 %2394
    %v2398 = vadd.f32 %v2356, %v2393
    %v2399 = vadd.f32 %v2357, %v2395
    %s2400 = sld [smem:[#allocation6 + $0x14]]
    %v2401 = vstv %s2400
    %v2402 = vmul.f32 %v2401, %v1414
    %v2403 = vmul.f32 %v2401, %v1415
    %2406 = vrot.lane.b32.xlu0 %v2402, 126
    %v2407 = vpop.permute.xlu0 %2406
    %2408 = vrot.lane.b32.xlu0 %v2403, 126
    %v2409 = vpop.permute.xlu0 %2408
    %v2412 = vadd.f32 %v2370, %v2407
    %v2413 = vadd.f32 %v2371, %v2409
    %s2414 = sld [smem:[#allocation6 + $0x2f]]
    %v2415 = vstv %s2414
    %v2416 = vmul.f32 %v2415, %v1414
    %v2417 = vmul.f32 %v2415, %v1415
    %2420 = vrot.lane.b32.xlu0 %v2416, 126
    %v2421 = vpop.permute.xlu0 %2420
    %2422 = vrot.lane.b32.xlu0 %v2417, 126
    %v2423 = vpop.permute.xlu0 %2422
    %v2426 = vadd.f32 %v2384, %v2421
    %v2427 = vadd.f32 %v2385, %v2423
    %s2428 = sld [smem:[#allocation6 + $0x4a]]
    %v2429 = vstv %s2428
    %v2430 = vmul.f32 %v2429, %v1414
    %v2431 = vmul.f32 %v2429, %v1415
    %2434 = vrot.lane.b32.xlu0 %v2430, 126
    %v2435 = vpop.permute.xlu0 %2434
    %2436 = vrot.lane.b32.xlu0 %v2431, 126
    %v2437 = vpop.permute.xlu0 %2436
    %v2440 = vadd.f32 %v2398, %v2435
    %v2441 = vadd.f32 %v2399, %v2437
    %s2442 = sld [smem:[#allocation6 + $0x15]]
    %v2443 = vstv %s2442
    %v2444 = vmul.f32 %v2443, %v1414
    %v2445 = vmul.f32 %v2443, %v1415
    %v2446 = vmul.f32 %v2443, %v1416
    %v2450 = vrot.slane %v2444, 1
    %v2451 = vrot.slane %v2445, 1
    %v2452 = vsel %vm1536, %v2450, %v2451
    %v2453 = vrot.slane %v2446, 1
    %v2454 = vsel %vm1536, %v2451, %v2453
    %v2457 = vadd.f32 %v2412, %v2452
    %v2458 = vadd.f32 %v2413, %v2454
    %s2459 = sld [smem:[#allocation6 + $0x30]]
    %v2460 = vstv %s2459
    %v2461 = vmul.f32 %v2460, %v1414
    %v2462 = vmul.f32 %v2460, %v1415
    %v2463 = vmul.f32 %v2460, %v1416
    %v2467 = vrot.slane %v2461, 1
    %v2468 = vrot.slane %v2462, 1
    %v2469 = vsel %vm1536, %v2467, %v2468
    %v2470 = vrot.slane %v2463, 1
    %v2471 = vsel %vm1536, %v2468, %v2470
    %v2474 = vadd.f32 %v2426, %v2469
    %v2475 = vadd.f32 %v2427, %v2471
    %s2476 = sld [smem:[#allocation6 + $0x4b]]
    %v2477 = vstv %s2476
    %v2478 = vmul.f32 %v2477, %v1414
    %v2479 = vmul.f32 %v2477, %v1415
    %v2480 = vmul.f32 %v2477, %v1416
    %v2484 = vrot.slane %v2478, 1
    %v2485 = vrot.slane %v2479, 1
    %v2486 = vsel %vm1536, %v2484, %v2485
    %v2487 = vrot.slane %v2480, 1
    %v2488 = vsel %vm1536, %v2485, %v2487
    %v2491 = vadd.f32 %v2440, %v2486
    %v2492 = vadd.f32 %v2441, %v2488
    %s2493 = sld [smem:[#allocation6 + $0x16]]
    %v2494 = vstv %s2493
    %v2495 = vmul.f32 %v2494, %v1414
    %v2496 = vmul.f32 %v2494, %v1415
    %v2497 = vmul.f32 %v2494, %v1416
    %v2501 = vrot.slane %v2495, 1
    %v2502 = vrot.slane %v2496, 1
    %v2503 = vsel %vm1536, %v2501, %v2502
    %v2504 = vrot.slane %v2497, 1
    %v2505 = vsel %vm1536, %v2502, %v2504
    %2506 = vrot.lane.b32.xlu0 %v2503, 127
    %v2507 = vpop.permute.xlu0 %2506
    %2508 = vrot.lane.b32.xlu0 %v2505, 127
    %v2509 = vpop.permute.xlu0 %2508
    %v2512 = vadd.f32 %v2457, %v2507
    %v2513 = vadd.f32 %v2458, %v2509
    %s2514 = sld [smem:[#allocation6 + $0x31]]
    %v2515 = vstv %s2514
    %v2516 = vmul.f32 %v2515, %v1414
    %v2517 = vmul.f32 %v2515, %v1415
    %v2518 = vmul.f32 %v2515, %v1416
    %v2522 = vrot.slane %v2516, 1
    %v2523 = vrot.slane %v2517, 1
    %v2524 = vsel %vm1536, %v2522, %v2523
    %v2525 = vrot.slane %v2518, 1
    %v2526 = vsel %vm1536, %v2523, %v2525
    %2527 = vrot.lane.b32.xlu0 %v2524, 127
    %v2528 = vpop.permute.xlu0 %2527
    %2529 = vrot.lane.b32.xlu0 %v2526, 127
    %v2530 = vpop.permute.xlu0 %2529
    %v2533 = vadd.f32 %v2474, %v2528
    %v2534 = vadd.f32 %v2475, %v2530
    %s2535 = sld [smem:[#allocation6 + $0x4c]]
    %v2536 = vstv %s2535
    %v2537 = vmul.f32 %v2536, %v1414
    %v2538 = vmul.f32 %v2536, %v1415
    %v2539 = vmul.f32 %v2536, %v1416
    %v2543 = vrot.slane %v2537, 1
    %v2544 = vrot.slane %v2538, 1
    %v2545 = vsel %vm1536, %v2543, %v2544
    %v2546 = vrot.slane %v2539, 1
    %v2547 = vsel %vm1536, %v2544, %v2546
    %2548 = vrot.lane.b32.xlu0 %v2545, 127
    %v2549 = vpop.permute.xlu0 %2548
    %2550 = vrot.lane.b32.xlu0 %v2547, 127
    %v2551 = vpop.permute.xlu0 %2550
    %v2554 = vadd.f32 %v2491, %v2549
    %v2555 = vadd.f32 %v2492, %v2551
    %s2556 = sld [smem:[#allocation6 + $0x17]]
    %v2557 = vstv %s2556
    %v2558 = vmul.f32 %v2557, %v1414
    %v2559 = vmul.f32 %v2557, %v1415
    %v2560 = vmul.f32 %v2557, %v1416
    %v2564 = vrot.slane %v2558, 1
    %v2565 = vrot.slane %v2559, 1
    %v2566 = vsel %vm1536, %v2564, %v2565
    %v2567 = vrot.slane %v2560, 1
    %v2568 = vsel %vm1536, %v2565, %v2567
    %2569 = vrot.lane.b32.xlu0 %v2566, 126
    %v2570 = vpop.permute.xlu0 %2569
    %2571 = vrot.lane.b32.xlu0 %v2568, 126
    %v2572 = vpop.permute.xlu0 %2571
    %v2575 = vadd.f32 %v2512, %v2570
    %v2576 = vadd.f32 %v2513, %v2572
    %s2577 = sld [smem:[#allocation6 + $0x32]]
    %v2578 = vstv %s2577
    %v2579 = vmul.f32 %v2578, %v1414
    %v2580 = vmul.f32 %v2578, %v1415
    %v2581 = vmul.f32 %v2578, %v1416
    %v2585 = vrot.slane %v2579, 1
    %v2586 = vrot.slane %v2580, 1
    %v2587 = vsel %vm1536, %v2585, %v2586
    %v2588 = vrot.slane %v2581, 1
    %v2589 = vsel %vm1536, %v2586, %v2588
    %2590 = vrot.lane.b32.xlu0 %v2587, 126
    %v2591 = vpop.permute.xlu0 %2590
    %2592 = vrot.lane.b32.xlu0 %v2589, 126
    %v2593 = vpop.permute.xlu0 %2592
    %v2596 = vadd.f32 %v2533, %v2591
    %v2597 = vadd.f32 %v2534, %v2593
    %s2598 = sld [smem:[#allocation6 + $0x4d]]
    %v2599 = vstv %s2598
    %v2600 = vmul.f32 %v2599, %v1414
    %v2601 = vmul.f32 %v2599, %v1415
    %v2602 = vmul.f32 %v2599, %v1416
    %v2606 = vrot.slane %v2600, 1
    %v2607 = vrot.slane %v2601, 1
    %v2608 = vsel %vm1536, %v2606, %v2607
    %v2609 = vrot.slane %v2602, 1
    %v2610 = vsel %vm1536, %v2607, %v2609
    %2611 = vrot.lane.b32.xlu0 %v2608, 126
    %v2612 = vpop.permute.xlu0 %2611
    %2613 = vrot.lane.b32.xlu0 %v2610, 126
    %v2614 = vpop.permute.xlu0 %2613
    %v2617 = vadd.f32 %v2554, %v2612
    %v2618 = vadd.f32 %v2555, %v2614
    %s2619 = sld [smem:[#allocation6 + $0x18]]
    %v2620 = vstv %s2619
    %v2621 = vmul.f32 %v2620, %v1414
    %v2622 = vmul.f32 %v2620, %v1415
    %v2623 = vmul.f32 %v2620, %v1416
    %v2627 = vrot.slane %v2621, 2
    %v2628 = vrot.slane %v2622, 2
    %v2629 = vsel %vm1714, %v2627, %v2628
    %v2630 = vrot.slane %v2623, 2
    %v2631 = vsel %vm1714, %v2628, %v2630
    %v2634 = vadd.f32 %v2575, %v2629
    %v2635 = vadd.f32 %v2576, %v2631
    %s2636 = sld [smem:[#allocation6 + $0x33]]
    %v2637 = vstv %s2636
    %v2638 = vmul.f32 %v2637, %v1414
    %v2639 = vmul.f32 %v2637, %v1415
    %v2640 = vmul.f32 %v2637, %v1416
    %v2644 = vrot.slane %v2638, 2
    %v2645 = vrot.slane %v2639, 2
    %v2646 = vsel %vm1714, %v2644, %v2645
    %v2647 = vrot.slane %v2640, 2
    %v2648 = vsel %vm1714, %v2645, %v2647
    %v2651 = vadd.f32 %v2596, %v2646
    %v2652 = vadd.f32 %v2597, %v2648
    %s2653 = sld [smem:[#allocation6 + $0x4e]]
    %v2654 = vstv %s2653
    %v2655 = vmul.f32 %v2654, %v1414
    %v2656 = vmul.f32 %v2654, %v1415
    %v2657 = vmul.f32 %v2654, %v1416
    %v2661 = vrot.slane %v2655, 2
    %v2662 = vrot.slane %v2656, 2
    %v2663 = vsel %vm1714, %v2661, %v2662
    %v2664 = vrot.slane %v2657, 2
    %v2665 = vsel %vm1714, %v2662, %v2664
    %v2668 = vadd.f32 %v2617, %v2663
    %v2669 = vadd.f32 %v2618, %v2665
    %s2670 = sld [smem:[#allocation6 + $0x19]]
    %v2671 = vstv %s2670
    %v2672 = vmul.f32 %v2671, %v1414
    %v2673 = vmul.f32 %v2671, %v1415
    %v2674 = vmul.f32 %v2671, %v1416
    %v2678 = vrot.slane %v2672, 2
    %v2679 = vrot.slane %v2673, 2
    %v2680 = vsel %vm1714, %v2678, %v2679
    %v2681 = vrot.slane %v2674, 2
    %v2682 = vsel %vm1714, %v2679, %v2681
    %2683 = vrot.lane.b32.xlu0 %v2680, 127
    %v2684 = vpop.permute.xlu0 %2683
    %2685 = vrot.lane.b32.xlu0 %v2682, 127
    %v2686 = vpop.permute.xlu0 %2685
    %v2689 = vadd.f32 %v2634, %v2684
    %v2690 = vadd.f32 %v2635, %v2686
    %s2691 = sld [smem:[#allocation6 + $0x34]]
    %v2692 = vstv %s2691
    %v2693 = vmul.f32 %v2692, %v1414
    %v2694 = vmul.f32 %v2692, %v1415
    %v2695 = vmul.f32 %v2692, %v1416
    %v2699 = vrot.slane %v2693, 2
    %v2700 = vrot.slane %v2694, 2
    %v2701 = vsel %vm1714, %v2699, %v2700
    %v2702 = vrot.slane %v2695, 2
    %v2703 = vsel %vm1714, %v2700, %v2702
    %2704 = vrot.lane.b32.xlu0 %v2701, 127
    %v2705 = vpop.permute.xlu0 %2704
    %2706 = vrot.lane.b32.xlu0 %v2703, 127
    %v2707 = vpop.permute.xlu0 %2706
    %v2710 = vadd.f32 %v2651, %v2705
    %v2711 = vadd.f32 %v2652, %v2707
    %s2712 = sld [smem:[#allocation6 + $0x4f]]
    %v2713 = vstv %s2712
    %v2714 = vmul.f32 %v2713, %v1414
    %v2715 = vmul.f32 %v2713, %v1415
    %v2716 = vmul.f32 %v2713, %v1416
    %v2720 = vrot.slane %v2714, 2
    %v2721 = vrot.slane %v2715, 2
    %v2722 = vsel %vm1714, %v2720, %v2721
    %v2723 = vrot.slane %v2716, 2
    %v2724 = vsel %vm1714, %v2721, %v2723
    %2725 = vrot.lane.b32.xlu0 %v2722, 127
    %v2726 = vpop.permute.xlu0 %2725
    %2727 = vrot.lane.b32.xlu0 %v2724, 127
    %v2728 = vpop.permute.xlu0 %2727
    %v2731 = vadd.f32 %v2668, %v2726
    %v2732 = vadd.f32 %v2669, %v2728
    %s2733 = sld [smem:[#allocation6 + $0x1a]]
    %v2734 = vstv %s2733
    %v2735 = vmul.f32 %v2734, %v1414
    %v2736 = vmul.f32 %v2734, %v1415
    %v2737 = vmul.f32 %v2734, %v1416
    %v2741 = vrot.slane %v2735, 2
    %v2742 = vrot.slane %v2736, 2
    %v2743 = vsel %vm1714, %v2741, %v2742
    %v2744 = vrot.slane %v2737, 2
    %v2745 = vsel %vm1714, %v2742, %v2744
    %2746 = vrot.lane.b32.xlu0 %v2743, 126
    %v2747 = vpop.permute.xlu0 %2746
    %2748 = vrot.lane.b32.xlu0 %v2745, 126
    %v2749 = vpop.permute.xlu0 %2748
    %v2752 = vadd.f32 %v2689, %v2747
    %v2753 = vadd.f32 %v2690, %v2749
    %s2754 = sld [smem:[#allocation6 + $0x35]]
    %v2755 = vstv %s2754
    %v2756 = vmul.f32 %v2755, %v1414
    %v2757 = vmul.f32 %v2755, %v1415
    %v2758 = vmul.f32 %v2755, %v1416
    %v2762 = vrot.slane %v2756, 2
    %v2763 = vrot.slane %v2757, 2
    %v2764 = vsel %vm1714, %v2762, %v2763
    %v2765 = vrot.slane %v2758, 2
    %v2766 = vsel %vm1714, %v2763, %v2765
    %2767 = vrot.lane.b32.xlu0 %v2764, 126
    %v2768 = vpop.permute.xlu0 %2767
    %2769 = vrot.lane.b32.xlu0 %v2766, 126
    %v2770 = vpop.permute.xlu0 %2769
    %v2773 = vadd.f32 %v2710, %v2768
    %v2774 = vadd.f32 %v2711, %v2770
    %s2775 = sld [smem:[#allocation6 + $0x50]]
    %v2776 = vstv %s2775
    %v2777 = vmul.f32 %v2776, %v1414
    %v2778 = vmul.f32 %v2776, %v1415
    %v2779 = vmul.f32 %v2776, %v1416
    %v2783 = vrot.slane %v2777, 2
    %v2784 = vrot.slane %v2778, 2
    %v2785 = vsel %vm1714, %v2783, %v2784
    %v2786 = vrot.slane %v2779, 2
    %v2787 = vsel %vm1714, %v2784, %v2786
    %2788 = vrot.lane.b32.xlu0 %v2785, 126
    %v2789 = vpop.permute.xlu0 %2788
    %2790 = vrot.lane.b32.xlu0 %v2787, 126
    %v2791 = vpop.permute.xlu0 %2790
    %v2794 = vadd.f32 %v2731, %v2789
    %v2795 = vadd.f32 %v2732, %v2791
    %vm2796 = vcmask 326656
    %2797 = vst.msk [vmem:[%s6] sm:$0xff] %vm2796, %v2752
    %2798 = vst.msk [vmem:[%s6 + $0x8] sm:$0xff] %vm2796, %v2753
    %s2799 = scalar_lea.vmem %s6, 48
    %2800 = vst.msk [vmem:[%s2799] sm:$0xff] %vm2796, %v2752
    %2801 = vst.msk [vmem:[%s2799 + $0x8] sm:$0xff] %vm2796, %v2753
    %s2802 = scalar_lea.vmem %s6, 16
    %2803 = vst.msk [vmem:[%s2802] sm:$0xff] %vm2796, %v2773
    %2804 = vst.msk [vmem:[%s2802 + $0x8] sm:$0xff] %vm2796, %v2774
    %s2805 = scalar_lea.vmem %s6, 64
    %2806 = vst.msk [vmem:[%s2805] sm:$0xff] %vm2796, %v2773
    %2807 = vst.msk [vmem:[%s2805 + $0x8] sm:$0xff] %vm2796, %v2774
    %s2808 = scalar_lea.vmem %s6, 32
    %2809 = vst.msk [vmem:[%s2808] sm:$0xff] %vm2796, %v2794
    %2810 = vst.msk [vmem:[%s2808 + $0x8] sm:$0xff] %vm2796, %v2795
    %s2811 = scalar_lea.vmem %s6, 80
    %2812 = vst.msk [vmem:[%s2811] sm:$0xff] %vm2796, %v2794
    %2813 = vst.msk [vmem:[%s2811 + $0x8] sm:$0xff] %vm2796, %v2795
    // Predicated region
    $region42: #{model_forward.1} parent=1 // pred_check
      _
    $region43: #{model_forward.1} parent=1 // pred_check_branch
      %2815 = sbr.rel (0) target = $region45
    $region44: #{model_forward.1} parent=1 // pred_region
      _
    $region45: #{model_forward.1} parent=1 // pred_fallthru
      _
    // Predicated region
    $region46: #{model_forward.1} parent=1 // pred_check
      _
    $region47: #{model_forward.1} parent=1 // pred_check_branch
      %2817 = sbr.rel (0) target = $region49
    $region48: #{model_forward.1} parent=1 // pred_region
      _
    $region49: #{model_forward.1} parent=1 // pred_fallthru
      _
    %2818 = vsyncpa [#allocation3], 1
    %2819 = vsyncpa [#allocation5], 1
    %2820 = vsyncpa [#allocation8], 1

</llo_original>
